<compile_context>
chip_gen: v6e
topology: v6e:2x2x1
jax: 0.10.0
libtpu: 0.0.40
codegen_flags: <defaults>
</compile_context>

<pallas_src>
import jax
import jax.numpy as jnp
from jax import lax
from jax.experimental import pallas as pl
from jax.experimental.pallas import tpu as pltpu


# ----------------------------------------------------------------------------
# Helpers
# ----------------------------------------------------------------------------
def _vmem_limit_bytes():
    """Scoped-VMEM limit with headroom below physical (128 MiB v5e/v6e, 64 MiB v7x)."""
    cap = 128 * 1024 * 1024
    try:
        cap = int(pltpu.get_tpu_info().vmem_capacity_bytes)
    except Exception:
        pass
    return int(cap - 8 * 1024 * 1024)


def _resident_spec(block_shape, index_map):
    """BlockSpec for batch-invariant parameters.

    Their index_map is constant over the grid, so no prefetch overlap is needed
    and a single buffer halves their VMEM footprint.  Falls back to the default
    double-buffered spec if this JAX version lacks pipeline_mode/Buffered.
    """
    try:
        return pl.BlockSpec(block_shape, index_map,
                            pipeline_mode=pl.Buffered(buffer_count=1))
    except TypeError:
        return pl.BlockSpec(block_shape, index_map)


# ----------------------------------------------------------------------------
# Kernel 1: pairwise negative squared distance  pd[b] = 2 x x^T - xx - xx^T
# ----------------------------------------------------------------------------
def _pairwise_kernel(xr_ref, xc_ref, pd_ref):
    xr = xr_ref[0]                                                 # [TM, D]
    xc = xc_ref[0]                                                 # [TN, D]
    sq_r = jnp.sum(xr * xr, axis=1, keepdims=True)                 # [TM, 1]
    sq_c = jnp.sum(xc * xc, axis=1, keepdims=True)                 # [TN, 1]
    # HIGHEST precision here: exact fp32 distances protect top-k ordering, and
    # the K=D matmul is tiny so the extra MXU passes are negligible.
    inner = lax.dot_general(xr, xc, (((1,), (1,)), ((), ())),
                            preferred_element_type=jnp.float32,
                            precision=lax.Precision.HIGHEST)       # [TM, TN]
    pd_ref[0] = 2.0 * inner - sq_r - jnp.transpose(sq_c, (1, 0))


def _choose_tile(n):
    # Prefer large output tiles: the kernel is store/step-overhead bound.
    for t in (1024, 512, 256, 128):
        if n % t == 0:
            return t
    # TODO(synk): pad N in the wrapper instead of falling back to a full block.
    return n


def pairwise_neg_sqdist(x_t):
    B, N, D = x_t.shape
    t = _choose_tile(N)
    return pl.pallas_call(
        _pairwise_kernel,
        out_shape=jax.ShapeDtypeStruct((B, N, N), jnp.float32),
        grid=(B, N // t, N // t),
        in_specs=[
            pl.BlockSpec((1, t, D), lambda b, i, j: (b, i, 0)),
            pl.BlockSpec((1, t, D), lambda b, i, j: (b, j, 0)),
        ],
        out_specs=pl.BlockSpec((1, t, t), lambda b, i, j: (b, i, j)),
        compiler_params=pltpu.CompilerParams(
            dimension_semantics=("parallel", "parallel", "parallel"),
            vmem_limit_bytes=_vmem_limit_bytes()),
    )(x_t, x_t)


# ----------------------------------------------------------------------------
# Kernel 2: MolConv3 body, one batch element per grid step.
# Layout inside the kernel is channel-first / lane-dense over N:
#   x      [D, N]      centre features
#   gf     [k, D, N]   gathered neighbour features (neighbour slot outermost)
#   dist   [k, N]      neighbour squared distances
#   mask   [1, N]      point validity (float)
# Output is written directly as [out_dim, N] (PyTorch layout, no transpose).
# ----------------------------------------------------------------------------
def _molconv_kernel(x_ref, gf_ref, dist_ref, mask_ref,
                    wd_ref, gd_ref, bd_ref,
                    wc_ref, gc_ref, bc_ref,
                    wu_ref, gu_ref, bu_ref,
                    out_ref, uc_ref):
    eps_norm = 1e-12   # F.normalize eps
    eps_ln = 1e-5      # LayerNorm eps

    x = x_ref[0]                 # [D, N]
    gf = gf_ref[0]               # [k, D, N]
    dist = dist_ref[0]           # [k, N]
    mask = mask_ref[0]           # [1, N]
    k, _, N = gf.shape
    O = wu_ref.shape[0]

    # ---- column 0 of the neighbour gram, F.normalize over the point axis.
    # Only column 0 of the [k,k] gram is consumed downstream and the per-(i,j)
    # normalisation commutes with slicing, so the full gram is never built.
    sub_raw = jnp.sum(gf * gf[0:1], axis=1)                           # [k, N]
    nrm = jnp.sqrt(jnp.sum(sub_raw * sub_raw, axis=1, keepdims=True))  # [k, 1]
    sub = sub_raw / jnp.maximum(nrm, eps_norm)                        # [k, N]
    # Per-(j,i) norms of sub_gm over N:  G[j,i] = sum_n sub[j,n]^2 sub[i,n]^2
    ssq = sub * sub
    G = lax.dot_general(ssq, ssq, (((1,), (1,)), ((), ())),
                        preferred_element_type=jnp.float32,
                        precision=lax.Precision.HIGHEST)              # [k, k]
    sg_nrm = jnp.maximum(jnp.sqrt(G), eps_norm)                       # [k, k]

    # ---- dist_ff: scalar 1x1 conv + LayerNorm + sigmoid (single-sweep stats)
    dconv = dist * wd_ref[0]                                          # [k, N]
    cnt_d = dconv.size
    mu_d = jnp.sum(dconv) / cnt_d
    var_d = jnp.maximum(jnp.sum(dconv * dconv) / cnt_d - mu_d * mu_d, 0.0)
    w = jax.nn.sigmoid((dconv - mu_d) * lax.rsqrt(var_d + eps_ln)
                       * gd_ref[...] + bd_ref[...])                   # [k, N]

    # ---- center_ff: 1x1 conv (bf16 in, f32 acc) + LN stats.  The torch input
    # is repeated over k, so stats over [Cmid, N] equal stats over [Cmid, N, k].
    cconv = lax.dot_general(wc_ref[...].astype(jnp.bfloat16),
                            x.astype(jnp.bfloat16),
                            (((1,), (0,)), ((), ())),
                            preferred_element_type=jnp.float32)       # [Cmid, N]
    cnt_c = cconv.size
    mu_c = jnp.sum(cconv) / cnt_c
    var_c = jnp.maximum(jnp.sum(cconv * cconv) / cnt_c - mu_c * mu_c, 0.0)
    cnorm = (cconv - mu_c) * lax.rsqrt(var_c + eps_ln)                # [Cmid, N]

    wu_b = wu_ref[...].astype(jnp.bfloat16)                           # [O, Cmid]

    # ---- pass 1 over neighbour slots: lane-dense [*, N] slabs, update_ff conv,
    #      stash uconv_i in VMEM scratch and accumulate the global LN stats.
    s_u = jnp.float32(0.0)
    ss_u = jnp.float32(0.0)
    for i in range(k):
        gm2_i = sub * sub[i:i + 1, :] / sg_nrm[:, i:i + 1]            # [k, N]
        feat_n_i = jnp.concatenate([gf[i], gm2_i], axis=0)            # [Cmid, N]
        feat_c_i = jax.nn.sigmoid(cnorm * gc_ref[i] + bc_ref[i])      # [Cmid, N]
        feat_i = w[i:i + 1, :] * feat_n_i + feat_c_i                  # [Cmid, N]
        uconv_i = lax.dot_general(wu_b, feat_i.astype(jnp.bfloat16),
                                  (((1,), (0,)), ((), ())),
                                  preferred_element_type=jnp.float32)  # [O, N]
        uc_ref[i] = uconv_i
        s_u = s_u + jnp.sum(uconv_i)
        ss_u = ss_u + jnp.sum(uconv_i * uconv_i)

    cnt_u = k * O * N
    mu_u = s_u / cnt_u
    var_u = jnp.maximum(ss_u / cnt_u - mu_u * mu_u, 0.0)
    inv_u = lax.rsqrt(var_u + eps_ln)

    # ---- pass 2: LN affine + softplus(beta=1, threshold=20); the masked
    #      neighbour-sum is fused into the accumulation (mask is per point).
    acc = jnp.zeros((O, N), jnp.float32)
    for i in range(k):
        un = (uc_ref[i] - mu_u) * inv_u * gu_ref[i] + bu_ref[i]       # [O, N]
        acc = acc + jnp.where(un > 20.0, un,
                              jnp.log1p(jnp.exp(jnp.minimum(un, 20.0))))
    vcount = jnp.maximum(jnp.sum(mask), 0.1)
    out_ref[0] = acc * mask * (1.0 / vcount)                          # [O, N]


def _molconv_pallas(x, gf, dist_kn, mask_f, wd_flat, gd_kn, bd_kn, wc,
                    gc_kcn, bc_kcn, wu, gu_kon, bu_kon):
    B, D, N = x.shape
    k = gf.shape[1]
    Cmid = wc.shape[0]
    O = wu.shape[0]
    const2 = lambda b: (0, 0)
    const3 = lambda b: (0, 0, 0)
    return pl.pallas_call(
        _molconv_kernel,
        out_shape=jax.ShapeDtypeStruct((B, O, N), jnp.float32),
        grid=(B,),
        in_specs=[
            pl.BlockSpec((1, D, N), lambda b: (b, 0, 0)),       # x       [B, D, N]
            pl.BlockSpec((1, k, D, N), lambda b: (b, 0, 0, 0)),  # gf      [B, k, D, N]
            pl.BlockSpec((1, k, N), lambda b: (b, 0, 0)),        # dist    [B, k, N]
            pl.BlockSpec((1, 1, N), lambda b: (b, 0, 0)),        # mask    [B, 1, N]
            pl.BlockSpec(memory_space=pltpu.MemorySpace.SMEM),   # wd scalar
            _resident_spec((k, N), const2),                      # gamma_d
            _resident_spec((k, N), const2),                      # beta_d
            _resident_spec((Cmid, D), const2),                   # Wc
            _resident_spec((k, Cmid, N), const3),                # gamma_c
            _resident_spec((k, Cmid, N), const3),                # beta_c
            _resident_spec((O, Cmid), const2),                   # Wu
            _resident_spec((k, O, N), const3),                   # gamma_u
            _resident_spec((k, O, N), const3),                   # beta_u
        ],
        out_specs=pl.BlockSpec((1, O, N), lambda b: (b, 0, 0)),
        scratch_shapes=[pltpu.VMEM((k, O, N), jnp.float32)],     # staged uconv
        compiler_params=pltpu.CompilerParams(
            dimension_semantics=("parallel",),
            vmem_limit_bytes=_vmem_limit_bytes()),
    )(x, gf, dist_kn, mask_f, wd_flat, gd_kn, bd_kn, wc,
      gc_kcn, bc_kcn, wu, gu_kon, bu_kon)


# ----------------------------------------------------------------------------
# Full forward (glue: exact top-k neighbour selection + channel-first gather)
# ----------------------------------------------------------------------------
def molconv3_forward(x, idx_base, mask, params, k):
    wd, gd, bd, wc, gc, bc, wu, gu, bu = params
    B, D, N = x.shape
    x = x.astype(jnp.float32)

    # ---- neighbour selection (exact, matches torch.topk semantics)
    x_t = jnp.transpose(x, (0, 2, 1))                              # [B, N, D]
    pd = pairwise_neg_sqdist(x_t)                                  # [B, N, N]
    neg_d, idx = lax.top_k(pd, k)                                  # [B, N, k]
    dist_kn = -jnp.transpose(neg_d, (0, 2, 1))                     # [B, k, N]

    # ---- neighbour gather, directly into kernel layout [B, k, D, N].
    # idx_base (= arange(B)*N) is implied by this per-batch gather.
    del idx_base
    idx_kn = jnp.transpose(idx, (0, 2, 1))                         # [B, k, N]
    gf = jnp.take_along_axis(x[:, None, :, :], idx_kn[:, :, None, :], axis=3)

    mask_f = mask.astype(jnp.float32).reshape(B, 1, N)

    # ---- parameters to kernel layouts (neighbour slot outermost, N lane-dense)
    gd_kn = jnp.transpose(gd, (1, 0))                              # [k, N]
    bd_kn = jnp.transpose(bd, (1, 0))
    gc_kcn = jnp.transpose(gc, (2, 0, 1))                          # [k, Cmid, N]
    bc_kcn = jnp.transpose(bc, (2, 0, 1))
    gu_kon = jnp.transpose(gu, (2, 0, 1))                          # [k, O, N]
    bu_kon = jnp.transpose(bu, (2, 0, 1))

    return _molconv_pallas(x, gf, dist_kn, mask_f,
                           wd.reshape(-1), gd_kn, bd_kn, wc,
                           gc_kcn, bc_kcn, wu, gu_kon, bu_kon)     # [B, O, N]


# ----------------------------------------------------------------------------
# Parameter init (PyTorch layouts; LN affine uses the ones/zeros defaults)
# ----------------------------------------------------------------------------
def init_params(key, in_dim, out_dim, point_num, k):
    Cmid = in_dim + k
    k0, k1, k2 = jax.random.split(key, 3)

    def conv_w(kk, co, ci):
        bound = 1.0 / (ci ** 0.5)
        return jax.random.uniform(kk, (co, ci), jnp.float32, -bound, bound)

    wd = conv_w(k0, 1, 1)                                          # dist_ff conv
    wc = conv_w(k1, Cmid, in_dim)                                  # center_ff conv
    wu = conv_w(k2, out_dim, Cmid)                                 # update_ff conv
    gd = jnp.ones((point_num, k), jnp.float32)                     # LN (1, N, k)
    bd = jnp.zeros((point_num, k), jnp.float32)
    gc = jnp.ones((Cmid, point_num, k), jnp.float32)               # LN (Cmid, N, k)
    bc = jnp.zeros((Cmid, point_num, k), jnp.float32)
    gu = jnp.ones((out_dim, point_num, k), jnp.float32)            # LN (O, N, k)
    bu = jnp.zeros((out_dim, point_num, k), jnp.float32)
    return (wd, gd, bd, wc, gc, bc, wu, gu, bu)


# ----------------------------------------------------------------------------
# Pure-JAX reference (mirrors the PyTorch math, channel-first).  The two conv
# matmuls use the same bf16-in / f32-acc as the kernel so the check is tight.
# ----------------------------------------------------------------------------
def reference_forward(x, idx_base, mask, params, k):
    wd, gd, bd, wc, gc, bc, wu, gu, bu = params
    B, D, N = x.shape
    x = x.astype(jnp.float32)
    x_t = jnp.transpose(x, (0, 2, 1))                              # [B, N, D]
    inner = -2.0 * jnp.einsum('bnd,bmd->bnm', x_t, x_t,
                              precision=lax.Precision.HIGHEST)
    xx = jnp.sum(x * x, axis=1, keepdims=True)
    pd = -xx - inner - jnp.transpose(xx, (0, 2, 1))
    negd, idx = lax.top_k(pd, k)
    dist = -negd                                                   # [B, N, k]
    flat_idx = (idx + idx_base).reshape(-1)
    gf = x_t.reshape(B * N, D)[flat_idx].reshape(B, N, k, D)

    gm = jnp.einsum('bnid,bnjd->bnij', gf, gf,
                    precision=lax.Precision.HIGHEST)
    gm = gm / jnp.maximum(jnp.linalg.norm(gm, axis=1, keepdims=True), 1e-12)
    sub = gm[..., 0]
    sgm = sub[..., :, None] * sub[..., None, :]
    sgm = sgm / jnp.maximum(jnp.linalg.norm(sgm, axis=1, keepdims=True), 1e-12)

    dist_cf = dist[:, None, :, :]                                  # [B, 1, N, k]
    gm2 = jnp.transpose(sgm, (0, 3, 1, 2))                         # [B, k, N, k]
    feat_c_in = jnp.broadcast_to(x[:, :, :, None], (B, D, N, k))
    feat_n = jnp.concatenate([jnp.transpose(gf, (0, 3, 1, 2)), gm2], axis=1)

    def ln(v, g, b):
        mu = jnp.mean(v, axis=(1, 2, 3), keepdims=True)
        var = jnp.mean((v - mu) ** 2, axis=(1, 2, 3), keepdims=True)
        return (v - mu) / jnp.sqrt(var + 1e-5) * g[None] + b[None]

    cc = jnp.einsum('od,bdnk->bonk', wc.astype(jnp.bfloat16),
                    feat_c_in.astype(jnp.bfloat16),
                    preferred_element_type=jnp.float32)
    feat_c = jax.nn.sigmoid(ln(cc, gc, bc))
    dc = dist_cf * wd[0, 0]
    w = jax.nn.sigmoid(ln(dc, gd[None], bd[None]))
    feat = w * feat_n + feat_c
    uc = jnp.einsum('oc,bcnk->bonk', wu.astype(jnp.bfloat16),
                    feat.astype(jnp.bfloat16),
                    preferred_element_type=jnp.float32)
    un = ln(uc, gu, bu)
    ua = jnp.where(un > 20.0, un, jnp.log1p(jnp.exp(jnp.minimum(un, 20.0))))
    m = mask.astype(jnp.float32)
    ua = ua * m[:, None, :, None]
    vc = jnp.maximum(jnp.sum(m, axis=1), 0.1)
    return jnp.sum(ua, axis=3) / vc[:, None, None]


if __name__ == "__main__":
    # Small shapes consistent with the module: x is [B, in_dim, point_num]
    B, in_dim, out_dim, N, k = 2, 8, 16, 16, 8

    key = jax.random.PRNGKey(0)
    kx, kp = jax.random.split(key)
    x = jax.random.normal(kx, (B, in_dim, N), dtype=jnp.float32)
    idx_base = (jnp.arange(B, dtype=jnp.int32) * N).reshape(B, 1, 1)
    mask = jnp.arange(N)[None, :] < jnp.array([[12], [10]])        # [B, N] bool
    params = init_params(kp, in_dim, out_dim, N, k)

    fwd = jax.jit(lambda xx, ib, mm: molconv3_forward(xx, ib, mm, params, k))
    out = fwd(x, idx_base, mask)
    jax.block_until_ready(out)

    ref = reference_forward(x, idx_base, mask, params, k)
    assert out.shape == (B, out_dim, N), out.shape
    err = float(jnp.max(jnp.abs(out - ref)))
    assert jnp.allclose(out, ref, atol=3e-3, rtol=3e-3), err

    print("KERNEL_OK")
</pallas_src>

<mosaic_0001>
module attributes {stable_mosaic.version = 11 : i64} {
  func.func @_pairwise_kernel(%arg0: i32, %arg1: i32, %arg2: i32, %arg3: memref<1x16x8xf32, #tpu.memory_space<vmem>>, %arg4: memref<1x16x8xf32, #tpu.memory_space<vmem>>, %arg5: memref<1x16x16xf32, #tpu.memory_space<vmem>>) attributes {dimension_semantics = [#tpu.dimension_semantics<parallel>, #tpu.dimension_semantics<parallel>, #tpu.dimension_semantics<parallel>], iteration_bounds = array<i64: 2, 1, 1>, scalar_prefetch = 0 : i64, scratch_operands = 0 : i64, tpu.core_type = #tpu.core_type<tc>, window_params = [{transform_indices = @transform_0, window_bounds = array<i64: 1, 16, 8>}, {transform_indices = @transform_1, window_bounds = array<i64: 1, 16, 8>}, {transform_indices = @transform_2, window_bounds = array<i64: 1, 16, 16>}]} {
    %c0 = arith.constant 0 : index
    %c0_0 = arith.constant 0 : index
    %c0_1 = arith.constant 0 : index
    %0 = vector.load %arg3[%c0, %c0_0, %c0_1] : memref<1x16x8xf32, #tpu.memory_space<vmem>>, vector<1x16x8xf32>
    %1 = vector.shape_cast %0 : vector<1x16x8xf32> to vector<16x8xf32>
    %c0_2 = arith.constant 0 : index
    %c0_3 = arith.constant 0 : index
    %c0_4 = arith.constant 0 : index
    %2 = vector.load %arg4[%c0_2, %c0_3, %c0_4] : memref<1x16x8xf32, #tpu.memory_space<vmem>>, vector<1x16x8xf32>
    %3 = vector.shape_cast %2 : vector<1x16x8xf32> to vector<16x8xf32>
    %4 = arith.mulf %1, %1 : vector<16x8xf32>
    %cst = arith.constant dense<0.000000e+00> : vector<16xf32>
    %5 = vector.multi_reduction <add>, %4, %cst [1] : vector<16x8xf32> to vector<16xf32>
    %6 = vector.shape_cast %5 : vector<16xf32> to vector<16x1xf32>
    %7 = arith.mulf %3, %3 : vector<16x8xf32>
    %cst_5 = arith.constant dense<0.000000e+00> : vector<16xf32>
    %8 = vector.multi_reduction <add>, %7, %cst_5 [1] : vector<16x8xf32> to vector<16xf32>
    %9 = vector.shape_cast %8 : vector<16xf32> to vector<16x1xf32>
    %cst_6 = arith.constant dense<0.000000e+00> : vector<16x16xf32>
    %10 = tpu.matmul %1, %3, %cst_6 {dimension_numbers = #tpu.dot_dimension_numbers<[1], [1], [0], [0], [0, 0, 1, 0], [], []>, precision = #tpu.contract_precision<fp32>} : vector<16x8xf32>, vector<16x8xf32>, vector<16x16xf32> -> vector<16x16xf32>
    %cst_7 = arith.constant 2.000000e+00 : f32
    %11 = vector.broadcast %cst_7 : f32 to vector<16x16xf32>
    %12 = arith.mulf %11, %10 : vector<16x16xf32>
    %13 = vector.broadcast %6 : vector<16x1xf32> to vector<16x16xf32>
    %14 = arith.subf %12, %13 : vector<16x16xf32>
    %15 = tpu.transpose %9, [1, 0] : vector<16x1xf32> -> vector<1x16xf32>
    %16 = vector.broadcast %15 : vector<1x16xf32> to vector<16x16xf32>
    %17 = arith.subf %14, %16 : vector<16x16xf32>
    %c0_8 = arith.constant 0 : index
    %c0_9 = arith.constant 0 : index
    %c0_10 = arith.constant 0 : index
    %18 = vector.load %arg5[%c0_8, %c0_9, %c0_10] : memref<1x16x16xf32, #tpu.memory_space<vmem>>, vector<1x16x16xf32>
    %19 = vector.shape_cast %18 : vector<1x16x16xf32> to vector<16x16xf32>
    %20 = vector.shape_cast %17 : vector<16x16xf32> to vector<1x16x16xf32>
    tpu.vector_store %arg5[%c0_8, %c0_9, %c0_10], %20 {strides = array<i32>} : memref<1x16x16xf32, #tpu.memory_space<vmem>>, vector<1x16x16xf32>,
    return
  }
  func.func @transform_0(%arg0: i32, %arg1: i32, %arg2: i32) -> (i32, i32, i32) {
    %c0_i32 = arith.constant 0 : i32
    %c0_i32_0 = arith.constant 0 : i32
    return %arg0, %arg1, %c0_i32 : i32, i32, i32
  }
  func.func @transform_1(%arg0: i32, %arg1: i32, %arg2: i32) -> (i32, i32, i32) {
    %c0_i32 = arith.constant 0 : i32
    %c0_i32_0 = arith.constant 0 : i32
    return %arg0, %arg2, %c0_i32 : i32, i32, i32
  }
  func.func @transform_2(%arg0: i32, %arg1: i32, %arg2: i32) -> (i32, i32, i32) {
    %c0_i32 = arith.constant 0 : i32
    return %arg0, %arg1, %arg2 : i32, i32, i32
  }
}

module attributes {stable_mosaic.version = 11 : i64} {
  func.func @_molconv_kernel(%arg0: i32, %arg1: memref<1x8x16xf32, #tpu.memory_space<vmem>>, %arg2: memref<1x8x8x16xf32, #tpu.memory_space<vmem>>, %arg3: memref<1x8x16xf32, #tpu.memory_space<vmem>>, %arg4: memref<1x1x16xf32, #tpu.memory_space<vmem>>, %arg5: memref<1xf32, #tpu.memory_space<smem>>, %arg6: memref<8x16xf32, #tpu.memory_space<vmem>>, %arg7: memref<8x16xf32, #tpu.memory_space<vmem>>, %arg8: memref<16x8xf32, #tpu.memory_space<vmem>>, %arg9: memref<8x16x16xf32, #tpu.memory_space<vmem>>, %arg10: memref<8x16x16xf32, #tpu.memory_space<vmem>>, %arg11: memref<16x16xf32, #tpu.memory_space<vmem>>, %arg12: memref<8x16x16xf32, #tpu.memory_space<vmem>>, %arg13: memref<8x16x16xf32, #tpu.memory_space<vmem>>, %arg14: memref<1x16x16xf32, #tpu.memory_space<vmem>>, %arg15: memref<8x16x16xf32, #tpu.memory_space<vmem>>) attributes {dimension_semantics = [#tpu.dimension_semantics<parallel>], iteration_bounds = array<i64: 2>, scalar_prefetch = 0 : i64, scratch_operands = 1 : i64, tpu.core_type = #tpu.core_type<tc>, window_params = [{transform_indices = @transform_0, window_bounds = array<i64: 1, 8, 16>}, {transform_indices = @transform_1, window_bounds = array<i64: 1, 8, 8, 16>}, {transform_indices = @transform_2, window_bounds = array<i64: 1, 8, 16>}, {transform_indices = @transform_3, window_bounds = array<i64: 1, 1, 16>}, {transform_indices = @transform_4, window_bounds = array<i64: 1>}, {pipeline_mode = #tpu.pipeline_mode<synchronous>, transform_indices = @transform_5, window_bounds = array<i64: 8, 16>}, {pipeline_mode = #tpu.pipeline_mode<synchronous>, transform_indices = @transform_6, window_bounds = array<i64: 8, 16>}, {pipeline_mode = #tpu.pipeline_mode<synchronous>, transform_indices = @transform_7, window_bounds = array<i64: 16, 8>}, {pipeline_mode = #tpu.pipeline_mode<synchronous>, transform_indices = @transform_8, window_bounds = array<i64: 8, 16, 16>}, {pipeline_mode = #tpu.pipeline_mode<synchronous>, transform_indices = @transform_9, window_bounds = array<i64: 8, 16, 16>}, {pipeline_mode = #tpu.pipeline_mode<synchronous>, transform_indices = @transform_10, window_bounds = array<i64: 16, 16>}, {pipeline_mode = #tpu.pipeline_mode<synchronous>, transform_indices = @transform_11, window_bounds = array<i64: 8, 16, 16>}, {pipeline_mode = #tpu.pipeline_mode<synchronous>, transform_indices = @transform_12, window_bounds = array<i64: 8, 16, 16>}, {transform_indices = @transform_13, window_bounds = array<i64: 1, 16, 16>}]} {
    %c0 = arith.constant 0 : index
    %c0_0 = arith.constant 0 : index
    %c0_1 = arith.constant 0 : index
    %0 = vector.load %arg1[%c0, %c0_0, %c0_1] : memref<1x8x16xf32, #tpu.memory_space<vmem>>, vector<1x8x16xf32>
    %1 = vector.shape_cast %0 : vector<1x8x16xf32> to vector<8x16xf32>
    %c0_2 = arith.constant 0 : index
    %c0_3 = arith.constant 0 : index
    %c0_4 = arith.constant 0 : index
    %c0_5 = arith.constant 0 : index
    %2 = vector.load %arg2[%c0_2, %c0_3, %c0_4, %c0_5] : memref<1x8x8x16xf32, #tpu.memory_space<vmem>>, vector<1x8x8x16xf32>
    %3 = vector.shape_cast %2 : vector<1x8x8x16xf32> to vector<8x8x16xf32>
    %c0_6 = arith.constant 0 : index
    %c0_7 = arith.constant 0 : index
    %c0_8 = arith.constant 0 : index
    %4 = vector.load %arg3[%c0_6, %c0_7, %c0_8] : memref<1x8x16xf32, #tpu.memory_space<vmem>>, vector<1x8x16xf32>
    %5 = vector.shape_cast %4 : vector<1x8x16xf32> to vector<8x16xf32>
    %c0_9 = arith.constant 0 : index
    %c0_10 = arith.constant 0 : index
    %c0_11 = arith.constant 0 : index
    %6 = vector.load %arg4[%c0_9, %c0_10, %c0_11] : memref<1x1x16xf32, #tpu.memory_space<vmem>>, vector<1x1x16xf32>
    %7 = vector.shape_cast %6 : vector<1x1x16xf32> to vector<1x16xf32>
    %8 = vector.extract_strided_slice %3 {offsets = [0, 0, 0], sizes = [1, 8, 16], strides = [1, 1, 1]} : vector<8x8x16xf32> to vector<1x8x16xf32>
    %9 = vector.broadcast %8 : vector<1x8x16xf32> to vector<8x8x16xf32>
    %10 = arith.mulf %3, %9 : vector<8x8x16xf32>
    %cst = arith.constant dense<0.000000e+00> : vector<8x16xf32>
    %11 = vector.multi_reduction <add>, %10, %cst [1] : vector<8x8x16xf32> to vector<8x16xf32>
    %12 = arith.mulf %11, %11 : vector<8x16xf32>
    %cst_12 = arith.constant dense<0.000000e+00> : vector<8xf32>
    %13 = vector.multi_reduction <add>, %12, %cst_12 [1] : vector<8x16xf32> to vector<8xf32>
    %14 = vector.shape_cast %13 : vector<8xf32> to vector<8x1xf32>
    %15 = math.sqrt %14 : vector<8x1xf32>
    %cst_13 = arith.constant 9.99999996E-13 : f32
    %16 = vector.broadcast %cst_13 : f32 to vector<8x1xf32>
    %17 = arith.maximumf %15, %16 : vector<8x1xf32>
    %18 = vector.broadcast %17 : vector<8x1xf32> to vector<8x16xf32>
    %19 = arith.divf %11, %18 : vector<8x16xf32>
    %20 = arith.mulf %19, %19 : vector<8x16xf32>
    %cst_14 = arith.constant dense<0.000000e+00> : vector<8x8xf32>
    %21 = tpu.matmul %20, %20, %cst_14 {dimension_numbers = #tpu.dot_dimension_numbers<[1], [1], [0], [0], [0, 0, 1, 0], [], []>, precision = #tpu.contract_precision<fp32>} : vector<8x16xf32>, vector<8x16xf32>, vector<8x8xf32> -> vector<8x8xf32>
    %22 = math.sqrt %21 : vector<8x8xf32>
    %cst_15 = arith.constant 9.99999996E-13 : f32
    %23 = vector.broadcast %cst_15 : f32 to vector<8x8xf32>
    %24 = arith.maximumf %22, %23 : vector<8x8xf32>
    %c0_16 = arith.constant 0 : index
    %25 = memref.load %arg5[%c0_16] : memref<1xf32, #tpu.memory_space<smem>>
    %26 = vector.broadcast %25 : f32 to vector<8x16xf32>
    %27 = arith.mulf %5, %26 : vector<8x16xf32>
    %28 = vector.shape_cast %27 : vector<8x16xf32> to vector<1x8x16xf32>
    %cst_17 = arith.constant dense<0.000000e+00> : vector<1xf32>
    %29 = vector.multi_reduction <add>, %28, %cst_17 [1, 2] : vector<1x8x16xf32> to vector<1xf32>
    %30 = vector.shape_cast %29 : vector<1xf32> to vector<1x1x1xf32>
    %31 = vector.extract %30[0, 0, 0] : f32 from vector<1x1x1xf32>
    %cst_18 = arith.constant 1.280000e+02 : f32
    %32 = arith.divf %31, %cst_18 : f32
    %33 = arith.mulf %27, %27 : vector<8x16xf32>
    %34 = vector.shape_cast %33 : vector<8x16xf32> to vector<1x8x16xf32>
    %cst_19 = arith.constant dense<0.000000e+00> : vector<1xf32>
    %35 = vector.multi_reduction <add>, %34, %cst_19 [1, 2] : vector<1x8x16xf32> to vector<1xf32>
    %36 = vector.shape_cast %35 : vector<1xf32> to vector<1x1x1xf32>
    %37 = vector.extract %36[0, 0, 0] : f32 from vector<1x1x1xf32>
    %cst_20 = arith.constant 1.280000e+02 : f32
    %38 = arith.divf %37, %cst_20 : f32
    %39 = arith.mulf %32, %32 : f32
    %40 = arith.subf %38, %39 : f32
    %cst_21 = arith.constant 0.000000e+00 : f32
    %41 = arith.maximumf %40, %cst_21 : f32
    %42 = vector.broadcast %32 : f32 to vector<8x16xf32>
    %43 = arith.subf %27, %42 : vector<8x16xf32>
    %cst_22 = arith.constant 9.99999974E-6 : f32
    %44 = arith.addf %41, %cst_22 : f32
    %45 = math.rsqrt %44 : f32
    %46 = vector.broadcast %45 : f32 to vector<8x16xf32>
    %47 = arith.mulf %43, %46 : vector<8x16xf32>
    %c0_23 = arith.constant 0 : index
    %c0_24 = arith.constant 0 : index
    %48 = vector.load %arg6[%c0_23, %c0_24] : memref<8x16xf32, #tpu.memory_space<vmem>>, vector<8x16xf32>
    %49 = arith.mulf %47, %48 : vector<8x16xf32>
    %c0_25 = arith.constant 0 : index
    %c0_26 = arith.constant 0 : index
    %50 = vector.load %arg7[%c0_25, %c0_26] : memref<8x16xf32, #tpu.memory_space<vmem>>, vector<8x16xf32>
    %51 = arith.addf %49, %50 : vector<8x16xf32>
    %52 = arith.negf %51 : vector<8x16xf32>
    %53 = math.exp %52 : vector<8x16xf32>
    %cst_27 = arith.constant 1.000000e+00 : f32
    %54 = vector.broadcast %cst_27 : f32 to vector<8x16xf32>
    %55 = arith.addf %54, %53 : vector<8x16xf32>
    %56 = arith.divf %54, %55 : vector<8x16xf32>
    %c0_28 = arith.constant 0 : index
    %c0_29 = arith.constant 0 : index
    %57 = vector.load %arg8[%c0_28, %c0_29] : memref<16x8xf32, #tpu.memory_space<vmem>>, vector<16x8xf32>
    %58 = arith.truncf %57 : vector<16x8xf32> to vector<16x8xbf16>
    %59 = arith.truncf %1 : vector<8x16xf32> to vector<8x16xbf16>
    %cst_30 = arith.constant dense<0.000000e+00> : vector<16x16xf32>
    %60 = tpu.matmul %58, %59, %cst_30 {dimension_numbers = #tpu.dot_dimension_numbers<[1], [0], [0], [1], [0, 0, 1, 1], [], []>} : vector<16x8xbf16>, vector<8x16xbf16>, vector<16x16xf32> -> vector<16x16xf32>
    %61 = vector.shape_cast %60 : vector<16x16xf32> to vector<1x16x16xf32>
    %cst_31 = arith.constant dense<0.000000e+00> : vector<1xf32>
    %62 = vector.multi_reduction <add>, %61, %cst_31 [1, 2] : vector<1x16x16xf32> to vector<1xf32>
    %63 = vector.shape_cast %62 : vector<1xf32> to vector<1x1x1xf32>
    %64 = vector.extract %63[0, 0, 0] : f32 from vector<1x1x1xf32>
    %cst_32 = arith.constant 2.560000e+02 : f32
    %65 = arith.divf %64, %cst_32 : f32
    %66 = arith.mulf %60, %60 : vector<16x16xf32>
    %67 = vector.shape_cast %66 : vector<16x16xf32> to vector<1x16x16xf32>
    %cst_33 = arith.constant dense<0.000000e+00> : vector<1xf32>
    %68 = vector.multi_reduction <add>, %67, %cst_33 [1, 2] : vector<1x16x16xf32> to vector<1xf32>
    %69 = vector.shape_cast %68 : vector<1xf32> to vector<1x1x1xf32>
    %70 = vector.extract %69[0, 0, 0] : f32 from vector<1x1x1xf32>
    %cst_34 = arith.constant 2.560000e+02 : f32
    %71 = arith.divf %70, %cst_34 : f32
    %72 = arith.mulf %65, %65 : f32
    %73 = arith.subf %71, %72 : f32
    %cst_35 = arith.constant 0.000000e+00 : f32
    %74 = arith.maximumf %73, %cst_35 : f32
    %75 = vector.broadcast %65 : f32 to vector<16x16xf32>
    %76 = arith.subf %60, %75 : vector<16x16xf32>
    %cst_36 = arith.constant 9.99999974E-6 : f32
    %77 = arith.addf %74, %cst_36 : f32
    %78 = math.rsqrt %77 : f32
    %79 = vector.broadcast %78 : f32 to vector<16x16xf32>
    %80 = arith.mulf %76, %79 : vector<16x16xf32>
    %c0_37 = arith.constant 0 : index
    %c0_38 = arith.constant 0 : index
    %81 = vector.load %arg11[%c0_37, %c0_38] : memref<16x16xf32, #tpu.memory_space<vmem>>, vector<16x16xf32>
    %82 = arith.truncf %81 : vector<16x16xf32> to vector<16x16xbf16>
    %83 = vector.extract_strided_slice %19 {offsets = [0, 0], sizes = [1, 16], strides = [1, 1]} : vector<8x16xf32> to vector<1x16xf32>
    %84 = vector.broadcast %83 : vector<1x16xf32> to vector<8x16xf32>
    %85 = arith.mulf %19, %84 : vector<8x16xf32>
    %86 = vector.extract_strided_slice %24 {offsets = [0, 0], sizes = [8, 1], strides = [1, 1]} : vector<8x8xf32> to vector<8x1xf32>
    %87 = vector.broadcast %86 : vector<8x1xf32> to vector<8x16xf32>
    %88 = arith.divf %85, %87 : vector<8x16xf32>
    %89 = vector.extract_strided_slice %3 {offsets = [0, 0, 0], sizes = [1, 8, 16], strides = [1, 1, 1]} : vector<8x8x16xf32> to vector<1x8x16xf32>
    %90 = vector.shape_cast %89 : vector<1x8x16xf32> to vector<8x16xf32>
    %91 = tpu.concatenate %90, %88 in 0 : vector<8x16xf32>, vector<8x16xf32> -> vector<16x16xf32>
    %c0_39 = arith.constant 0 : index
    %c0_40 = arith.constant 0 : index
    %c0_41 = arith.constant 0 : index
    %92 = vector.load %arg9[%c0_39, %c0_40, %c0_41] : memref<8x16x16xf32, #tpu.memory_space<vmem>>, vector<1x16x16xf32>
    %93 = vector.shape_cast %92 : vector<1x16x16xf32> to vector<16x16xf32>
    %94 = arith.mulf %80, %93 : vector<16x16xf32>
    %c0_42 = arith.constant 0 : index
    %c0_43 = arith.constant 0 : index
    %c0_44 = arith.constant 0 : index
    %95 = vector.load %arg10[%c0_42, %c0_43, %c0_44] : memref<8x16x16xf32, #tpu.memory_space<vmem>>, vector<1x16x16xf32>
    %96 = vector.shape_cast %95 : vector<1x16x16xf32> to vector<16x16xf32>
    %97 = arith.addf %94, %96 : vector<16x16xf32>
    %98 = arith.negf %97 : vector<16x16xf32>
    %99 = math.exp %98 : vector<16x16xf32>
    %cst_45 = arith.constant 1.000000e+00 : f32
    %100 = vector.broadcast %cst_45 : f32 to vector<16x16xf32>
    %101 = arith.addf %100, %99 : vector<16x16xf32>
    %102 = arith.divf %100, %101 : vector<16x16xf32>
    %103 = vector.extract_strided_slice %56 {offsets = [0, 0], sizes = [1, 16], strides = [1, 1]} : vector<8x16xf32> to vector<1x16xf32>
    %104 = vector.broadcast %103 : vector<1x16xf32> to vector<16x16xf32>
    %105 = arith.mulf %104, %91 : vector<16x16xf32>
    %106 = arith.addf %105, %102 : vector<16x16xf32>
    %107 = arith.truncf %106 : vector<16x16xf32> to vector<16x16xbf16>
    %cst_46 = arith.constant dense<0.000000e+00> : vector<16x16xf32>
    %108 = tpu.matmul %82, %107, %cst_46 {dimension_numbers = #tpu.dot_dimension_numbers<[1], [0], [0], [1], [0, 0, 1, 1], [], []>} : vector<16x16xbf16>, vector<16x16xbf16>, vector<16x16xf32> -> vector<16x16xf32>
    %c0_47 = arith.constant 0 : index
    %c0_48 = arith.constant 0 : index
    %c0_49 = arith.constant 0 : index
    %109 = vector.load %arg15[%c0_47, %c0_48, %c0_49] : memref<8x16x16xf32, #tpu.memory_space<vmem>>, vector<1x16x16xf32>
    %110 = vector.shape_cast %109 : vector<1x16x16xf32> to vector<16x16xf32>
    %111 = vector.shape_cast %108 : vector<16x16xf32> to vector<1x16x16xf32>
    tpu.vector_store %arg15[%c0_47, %c0_48, %c0_49], %111 {strides = array<i32>} : memref<8x16x16xf32, #tpu.memory_space<vmem>>, vector<1x16x16xf32>,
    %112 = vector.shape_cast %108 : vector<16x16xf32> to vector<1x16x16xf32>
    %cst_50 = arith.constant dense<0.000000e+00> : vector<1xf32>
    %113 = vector.multi_reduction <add>, %112, %cst_50 [1, 2] : vector<1x16x16xf32> to vector<1xf32>
    %114 = vector.shape_cast %113 : vector<1xf32> to vector<1x1x1xf32>
    %115 = vector.extract %114[0, 0, 0] : f32 from vector<1x1x1xf32>
    %cst_51 = arith.constant 0.000000e+00 : f32
    %116 = arith.addf %cst_51, %115 : f32
    %117 = arith.mulf %108, %108 : vector<16x16xf32>
    %118 = vector.shape_cast %117 : vector<16x16xf32> to vector<1x16x16xf32>
    %cst_52 = arith.constant dense<0.000000e+00> : vector<1xf32>
    %119 = vector.multi_reduction <add>, %118, %cst_52 [1, 2] : vector<1x16x16xf32> to vector<1xf32>
    %120 = vector.shape_cast %119 : vector<1xf32> to vector<1x1x1xf32>
    %121 = vector.extract %120[0, 0, 0] : f32 from vector<1x1x1xf32>
    %cst_53 = arith.constant 0.000000e+00 : f32
    %122 = arith.addf %cst_53, %121 : f32
    %123 = vector.extract_strided_slice %19 {offsets = [1, 0], sizes = [1, 16], strides = [1, 1]} : vector<8x16xf32> to vector<1x16xf32>
    %124 = vector.broadcast %123 : vector<1x16xf32> to vector<8x16xf32>
    %125 = arith.mulf %19, %124 : vector<8x16xf32>
    %126 = vector.extract_strided_slice %24 {offsets = [0, 1], sizes = [8, 1], strides = [1, 1]} : vector<8x8xf32> to vector<8x1xf32>
    %127 = vector.broadcast %126 : vector<8x1xf32> to vector<8x16xf32>
    %128 = arith.divf %125, %127 : vector<8x16xf32>
    %129 = vector.extract_strided_slice %3 {offsets = [1, 0, 0], sizes = [1, 8, 16], strides = [1, 1, 1]} : vector<8x8x16xf32> to vector<1x8x16xf32>
    %130 = vector.shape_cast %129 : vector<1x8x16xf32> to vector<8x16xf32>
    %131 = tpu.concatenate %130, %128 in 0 : vector<8x16xf32>, vector<8x16xf32> -> vector<16x16xf32>
    %c1 = arith.constant 1 : index
    %c0_54 = arith.constant 0 : index
    %c0_55 = arith.constant 0 : index
    %132 = vector.load %arg9[%c1, %c0_54, %c0_55] : memref<8x16x16xf32, #tpu.memory_space<vmem>>, vector<1x16x16xf32>
    %133 = vector.shape_cast %132 : vector<1x16x16xf32> to vector<16x16xf32>
    %134 = arith.mulf %80, %133 : vector<16x16xf32>
    %c1_56 = arith.constant 1 : index
    %c0_57 = arith.constant 0 : index
    %c0_58 = arith.constant 0 : index
    %135 = vector.load %arg10[%c1_56, %c0_57, %c0_58] : memref<8x16x16xf32, #tpu.memory_space<vmem>>, vector<1x16x16xf32>
    %136 = vector.shape_cast %135 : vector<1x16x16xf32> to vector<16x16xf32>
    %137 = arith.addf %134, %136 : vector<16x16xf32>
    %138 = arith.negf %137 : vector<16x16xf32>
    %139 = math.exp %138 : vector<16x16xf32>
    %cst_59 = arith.constant 1.000000e+00 : f32
    %140 = vector.broadcast %cst_59 : f32 to vector<16x16xf32>
    %141 = arith.addf %140, %139 : vector<16x16xf32>
    %142 = arith.divf %140, %141 : vector<16x16xf32>
    %143 = vector.extract_strided_slice %56 {offsets = [1, 0], sizes = [1, 16], strides = [1, 1]} : vector<8x16xf32> to vector<1x16xf32>
    %144 = vector.broadcast %143 : vector<1x16xf32> to vector<16x16xf32>
    %145 = arith.mulf %144, %131 : vector<16x16xf32>
    %146 = arith.addf %145, %142 : vector<16x16xf32>
    %147 = arith.truncf %146 : vector<16x16xf32> to vector<16x16xbf16>
    %cst_60 = arith.constant dense<0.000000e+00> : vector<16x16xf32>
    %148 = tpu.matmul %82, %147, %cst_60 {dimension_numbers = #tpu.dot_dimension_numbers<[1], [0], [0], [1], [0, 0, 1, 1], [], []>} : vector<16x16xbf16>, vector<16x16xbf16>, vector<16x16xf32> -> vector<16x16xf32>
    %c1_61 = arith.constant 1 : index
    %c0_62 = arith.constant 0 : index
    %c0_63 = arith.constant 0 : index
    %149 = vector.load %arg15[%c1_61, %c0_62, %c0_63] : memref<8x16x16xf32, #tpu.memory_space<vmem>>, vector<1x16x16xf32>
    %150 = vector.shape_cast %149 : vector<1x16x16xf32> to vector<16x16xf32>
    %151 = vector.shape_cast %148 : vector<16x16xf32> to vector<1x16x16xf32>
    tpu.vector_store %arg15[%c1_61, %c0_62, %c0_63], %151 {strides = array<i32>} : memref<8x16x16xf32, #tpu.memory_space<vmem>>, vector<1x16x16xf32>,
    %152 = vector.shape_cast %148 : vector<16x16xf32> to vector<1x16x16xf32>
    %cst_64 = arith.constant dense<0.000000e+00> : vector<1xf32>
    %153 = vector.multi_reduction <add>, %152, %cst_64 [1, 2] : vector<1x16x16xf32> to vector<1xf32>
    %154 = vector.shape_cast %153 : vector<1xf32> to vector<1x1x1xf32>
    %155 = vector.extract %154[0, 0, 0] : f32 from vector<1x1x1xf32>
    %156 = arith.addf %116, %155 : f32
    %157 = arith.mulf %148, %148 : vector<16x16xf32>
    %158 = vector.shape_cast %157 : vector<16x16xf32> to vector<1x16x16xf32>
    %cst_65 = arith.constant dense<0.000000e+00> : vector<1xf32>
    %159 = vector.multi_reduction <add>, %158, %cst_65 [1, 2] : vector<1x16x16xf32> to vector<1xf32>
    %160 = vector.shape_cast %159 : vector<1xf32> to vector<1x1x1xf32>
    %161 = vector.extract %160[0, 0, 0] : f32 from vector<1x1x1xf32>
    %162 = arith.addf %122, %161 : f32
    %163 = vector.extract_strided_slice %19 {offsets = [2, 0], sizes = [1, 16], strides = [1, 1]} : vector<8x16xf32> to vector<1x16xf32>
    %164 = vector.broadcast %163 : vector<1x16xf32> to vector<8x16xf32>
    %165 = arith.mulf %19, %164 : vector<8x16xf32>
    %166 = vector.extract_strided_slice %24 {offsets = [0, 2], sizes = [8, 1], strides = [1, 1]} : vector<8x8xf32> to vector<8x1xf32>
    %167 = vector.broadcast %166 : vector<8x1xf32> to vector<8x16xf32>
    %168 = arith.divf %165, %167 : vector<8x16xf32>
    %169 = vector.extract_strided_slice %3 {offsets = [2, 0, 0], sizes = [1, 8, 16], strides = [1, 1, 1]} : vector<8x8x16xf32> to vector<1x8x16xf32>
    %170 = vector.shape_cast %169 : vector<1x8x16xf32> to vector<8x16xf32>
    %171 = tpu.concatenate %170, %168 in 0 : vector<8x16xf32>, vector<8x16xf32> -> vector<16x16xf32>
    %c2 = arith.constant 2 : index
    %c0_66 = arith.constant 0 : index
    %c0_67 = arith.constant 0 : index
    %172 = vector.load %arg9[%c2, %c0_66, %c0_67] : memref<8x16x16xf32, #tpu.memory_space<vmem>>, vector<1x16x16xf32>
    %173 = vector.shape_cast %172 : vector<1x16x16xf32> to vector<16x16xf32>
    %174 = arith.mulf %80, %173 : vector<16x16xf32>
    %c2_68 = arith.constant 2 : index
    %c0_69 = arith.constant 0 : index
    %c0_70 = arith.constant 0 : index
    %175 = vector.load %arg10[%c2_68, %c0_69, %c0_70] : memref<8x16x16xf32, #tpu.memory_space<vmem>>, vector<1x16x16xf32>
    %176 = vector.shape_cast %175 : vector<1x16x16xf32> to vector<16x16xf32>
    %177 = arith.addf %174, %176 : vector<16x16xf32>
    %178 = arith.negf %177 : vector<16x16xf32>
    %179 = math.exp %178 : vector<16x16xf32>
    %cst_71 = arith.constant 1.000000e+00 : f32
    %180 = vector.broadcast %cst_71 : f32 to vector<16x16xf32>
    %181 = arith.addf %180, %179 : vector<16x16xf32>
    %182 = arith.divf %180, %181 : vector<16x16xf32>
    %183 = vector.extract_strided_slice %56 {offsets = [2, 0], sizes = [1, 16], strides = [1, 1]} : vector<8x16xf32> to vector<1x16xf32>
    %184 = vector.broadcast %183 : vector<1x16xf32> to vector<16x16xf32>
    %185 = arith.mulf %184, %171 : vector<16x16xf32>
    %186 = arith.addf %185, %182 : vector<16x16xf32>
    %187 = arith.truncf %186 : vector<16x16xf32> to vector<16x16xbf16>
    %cst_72 = arith.constant dense<0.000000e+00> : vector<16x16xf32>
    %188 = tpu.matmul %82, %187, %cst_72 {dimension_numbers = #tpu.dot_dimension_numbers<[1], [0], [0], [1], [0, 0, 1, 1], [], []>} : vector<16x16xbf16>, vector<16x16xbf16>, vector<16x16xf32> -> vector<16x16xf32>
    %c2_73 = arith.constant 2 : index
    %c0_74 = arith.constant 0 : index
    %c0_75 = arith.constant 0 : index
    %189 = vector.load %arg15[%c2_73, %c0_74, %c0_75] : memref<8x16x16xf32, #tpu.memory_space<vmem>>, vector<1x16x16xf32>
    %190 = vector.shape_cast %189 : vector<1x16x16xf32> to vector<16x16xf32>
    %191 = vector.shape_cast %188 : vector<16x16xf32> to vector<1x16x16xf32>
    tpu.vector_store %arg15[%c2_73, %c0_74, %c0_75], %191 {strides = array<i32>} : memref<8x16x16xf32, #tpu.memory_space<vmem>>, vector<1x16x16xf32>,
    %192 = vector.shape_cast %188 : vector<16x16xf32> to vector<1x16x16xf32>
    %cst_76 = arith.constant dense<0.000000e+00> : vector<1xf32>
    %193 = vector.multi_reduction <add>, %192, %cst_76 [1, 2] : vector<1x16x16xf32> to vector<1xf32>
    %194 = vector.shape_cast %193 : vector<1xf32> to vector<1x1x1xf32>
    %195 = vector.extract %194[0, 0, 0] : f32 from vector<1x1x1xf32>
    %196 = arith.addf %156, %195 : f32
    %197 = arith.mulf %188, %188 : vector<16x16xf32>
    %198 = vector.shape_cast %197 : vector<16x16xf32> to vector<1x16x16xf32>
    %cst_77 = arith.constant dense<0.000000e+00> : vector<1xf32>
    %199 = vector.multi_reduction <add>, %198, %cst_77 [1, 2] : vector<1x16x16xf32> to vector<1xf32>
    %200 = vector.shape_cast %199 : vector<1xf32> to vector<1x1x1xf32>
    %201 = vector.extract %200[0, 0, 0] : f32 from vector<1x1x1xf32>
    %202 = arith.addf %162, %201 : f32
    %203 = vector.extract_strided_slice %19 {offsets = [3, 0], sizes = [1, 16], strides = [1, 1]} : vector<8x16xf32> to vector<1x16xf32>
    %204 = vector.broadcast %203 : vector<1x16xf32> to vector<8x16xf32>
    %205 = arith.mulf %19, %204 : vector<8x16xf32>
    %206 = vector.extract_strided_slice %24 {offsets = [0, 3], sizes = [8, 1], strides = [1, 1]} : vector<8x8xf32> to vector<8x1xf32>
    %207 = vector.broadcast %206 : vector<8x1xf32> to vector<8x16xf32>
    %208 = arith.divf %205, %207 : vector<8x16xf32>
    %209 = vector.extract_strided_slice %3 {offsets = [3, 0, 0], sizes = [1, 8, 16], strides = [1, 1, 1]} : vector<8x8x16xf32> to vector<1x8x16xf32>
    %210 = vector.shape_cast %209 : vector<1x8x16xf32> to vector<8x16xf32>
    %211 = tpu.concatenate %210, %208 in 0 : vector<8x16xf32>, vector<8x16xf32> -> vector<16x16xf32>
    %c3 = arith.constant 3 : index
    %c0_78 = arith.constant 0 : index
    %c0_79 = arith.constant 0 : index
    %212 = vector.load %arg9[%c3, %c0_78, %c0_79] : memref<8x16x16xf32, #tpu.memory_space<vmem>>, vector<1x16x16xf32>
    %213 = vector.shape_cast %212 : vector<1x16x16xf32> to vector<16x16xf32>
    %214 = arith.mulf %80, %213 : vector<16x16xf32>
    %c3_80 = arith.constant 3 : index
    %c0_81 = arith.constant 0 : index
    %c0_82 = arith.constant 0 : index
    %215 = vector.load %arg10[%c3_80, %c0_81, %c0_82] : memref<8x16x16xf32, #tpu.memory_space<vmem>>, vector<1x16x16xf32>
    %216 = vector.shape_cast %215 : vector<1x16x16xf32> to vector<16x16xf32>
    %217 = arith.addf %214, %216 : vector<16x16xf32>
    %218 = arith.negf %217 : vector<16x16xf32>
    %219 = math.exp %218 : vector<16x16xf32>
    %cst_83 = arith.constant 1.000000e+00 : f32
    %220 = vector.broadcast %cst_83 : f32 to vector<16x16xf32>
    %221 = arith.addf %220, %219 : vector<16x16xf32>
    %222 = arith.divf %220, %221 : vector<16x16xf32>
    %223 = vector.extract_strided_slice %56 {offsets = [3, 0], sizes = [1, 16], strides = [1, 1]} : vector<8x16xf32> to vector<1x16xf32>
    %224 = vector.broadcast %223 : vector<1x16xf32> to vector<16x16xf32>
    %225 = arith.mulf %224, %211 : vector<16x16xf32>
    %226 = arith.addf %225, %222 : vector<16x16xf32>
    %227 = arith.truncf %226 : vector<16x16xf32> to vector<16x16xbf16>
    %cst_84 = arith.constant dense<0.000000e+00> : vector<16x16xf32>
    %228 = tpu.matmul %82, %227, %cst_84 {dimension_numbers = #tpu.dot_dimension_numbers<[1], [0], [0], [1], [0, 0, 1, 1], [], []>} : vector<16x16xbf16>, vector<16x16xbf16>, vector<16x16xf32> -> vector<16x16xf32>
    %c3_85 = arith.constant 3 : index
    %c0_86 = arith.constant 0 : index
    %c0_87 = arith.constant 0 : index
    %229 = vector.load %arg15[%c3_85, %c0_86, %c0_87] : memref<8x16x16xf32, #tpu.memory_space<vmem>>, vector<1x16x16xf32>
    %230 = vector.shape_cast %229 : vector<1x16x16xf32> to vector<16x16xf32>
    %231 = vector.shape_cast %228 : vector<16x16xf32> to vector<1x16x16xf32>
    tpu.vector_store %arg15[%c3_85, %c0_86, %c0_87], %231 {strides = array<i32>} : memref<8x16x16xf32, #tpu.memory_space<vmem>>, vector<1x16x16xf32>,
    %232 = vector.shape_cast %228 : vector<16x16xf32> to vector<1x16x16xf32>
    %cst_88 = arith.constant dense<0.000000e+00> : vector<1xf32>
    %233 = vector.multi_reduction <add>, %232, %cst_88 [1, 2] : vector<1x16x16xf32> to vector<1xf32>
    %234 = vector.shape_cast %233 : vector<1xf32> to vector<1x1x1xf32>
    %235 = vector.extract %234[0, 0, 0] : f32 from vector<1x1x1xf32>
    %236 = arith.addf %196, %235 : f32
    %237 = arith.mulf %228, %228 : vector<16x16xf32>
    %238 = vector.shape_cast %237 : vector<16x16xf32> to vector<1x16x16xf32>
    %cst_89 = arith.constant dense<0.000000e+00> : vector<1xf32>
    %239 = vector.multi_reduction <add>, %238, %cst_89 [1, 2] : vector<1x16x16xf32> to vector<1xf32>
    %240 = vector.shape_cast %239 : vector<1xf32> to vector<1x1x1xf32>
    %241 = vector.extract %240[0, 0, 0] : f32 from vector<1x1x1xf32>
    %242 = arith.addf %202, %241 : f32
    %243 = vector.extract_strided_slice %19 {offsets = [4, 0], sizes = [1, 16], strides = [1, 1]} : vector<8x16xf32> to vector<1x16xf32>
    %244 = vector.broadcast %243 : vector<1x16xf32> to vector<8x16xf32>
    %245 = arith.mulf %19, %244 : vector<8x16xf32>
    %246 = vector.extract_strided_slice %24 {offsets = [0, 4], sizes = [8, 1], strides = [1, 1]} : vector<8x8xf32> to vector<8x1xf32>
    %247 = vector.broadcast %246 : vector<8x1xf32> to vector<8x16xf32>
    %248 = arith.divf %245, %247 : vector<8x16xf32>
    %249 = vector.extract_strided_slice %3 {offsets = [4, 0, 0], sizes = [1, 8, 16], strides = [1, 1, 1]} : vector<8x8x16xf32> to vector<1x8x16xf32>
    %250 = vector.shape_cast %249 : vector<1x8x16xf32> to vector<8x16xf32>
    %251 = tpu.concatenate %250, %248 in 0 : vector<8x16xf32>, vector<8x16xf32> -> vector<16x16xf32>
    %c4 = arith.constant 4 : index
    %c0_90 = arith.constant 0 : index
    %c0_91 = arith.constant 0 : index
    %252 = vector.load %arg9[%c4, %c0_90, %c0_91] : memref<8x16x16xf32, #tpu.memory_space<vmem>>, vector<1x16x16xf32>
    %253 = vector.shape_cast %252 : vector<1x16x16xf32> to vector<16x16xf32>
    %254 = arith.mulf %80, %253 : vector<16x16xf32>
    %c4_92 = arith.constant 4 : index
    %c0_93 = arith.constant 0 : index
    %c0_94 = arith.constant 0 : index
    %255 = vector.load %arg10[%c4_92, %c0_93, %c0_94] : memref<8x16x16xf32, #tpu.memory_space<vmem>>, vector<1x16x16xf32>
    %256 = vector.shape_cast %255 : vector<1x16x16xf32> to vector<16x16xf32>
    %257 = arith.addf %254, %256 : vector<16x16xf32>
    %258 = arith.negf %257 : vector<16x16xf32>
    %259 = math.exp %258 : vector<16x16xf32>
    %cst_95 = arith.constant 1.000000e+00 : f32
    %260 = vector.broadcast %cst_95 : f32 to vector<16x16xf32>
    %261 = arith.addf %260, %259 : vector<16x16xf32>
    %262 = arith.divf %260, %261 : vector<16x16xf32>
    %263 = vector.extract_strided_slice %56 {offsets = [4, 0], sizes = [1, 16], strides = [1, 1]} : vector<8x16xf32> to vector<1x16xf32>
    %264 = vector.broadcast %263 : vector<1x16xf32> to vector<16x16xf32>
    %265 = arith.mulf %264, %251 : vector<16x16xf32>
    %266 = arith.addf %265, %262 : vector<16x16xf32>
    %267 = arith.truncf %266 : vector<16x16xf32> to vector<16x16xbf16>
    %cst_96 = arith.constant dense<0.000000e+00> : vector<16x16xf32>
    %268 = tpu.matmul %82, %267, %cst_96 {dimension_numbers = #tpu.dot_dimension_numbers<[1], [0], [0], [1], [0, 0, 1, 1], [], []>} : vector<16x16xbf16>, vector<16x16xbf16>, vector<16x16xf32> -> vector<16x16xf32>
    %c4_97 = arith.constant 4 : index
    %c0_98 = arith.constant 0 : index
    %c0_99 = arith.constant 0 : index
    %269 = vector.load %arg15[%c4_97, %c0_98, %c0_99] : memref<8x16x16xf32, #tpu.memory_space<vmem>>, vector<1x16x16xf32>
    %270 = vector.shape_cast %269 : vector<1x16x16xf32> to vector<16x16xf32>
    %271 = vector.shape_cast %268 : vector<16x16xf32> to vector<1x16x16xf32>
    tpu.vector_store %arg15[%c4_97, %c0_98, %c0_99], %271 {strides = array<i32>} : memref<8x16x16xf32, #tpu.memory_space<vmem>>, vector<1x16x16xf32>,
    %272 = vector.shape_cast %268 : vector<16x16xf32> to vector<1x16x16xf32>
    %cst_100 = arith.constant dense<0.000000e+00> : vector<1xf32>
    %273 = vector.multi_reduction <add>, %272, %cst_100 [1, 2] : vector<1x16x16xf32> to vector<1xf32>
    %274 = vector.shape_cast %273 : vector<1xf32> to vector<1x1x1xf32>
    %275 = vector.extract %274[0, 0, 0] : f32 from vector<1x1x1xf32>
    %276 = arith.addf %236, %275 : f32
    %277 = arith.mulf %268, %268 : vector<16x16xf32>
    %278 = vector.shape_cast %277 : vector<16x16xf32> to vector<1x16x16xf32>
    %cst_101 = arith.constant dense<0.000000e+00> : vector<1xf32>
    %279 = vector.multi_reduction <add>, %278, %cst_101 [1, 2] : vector<1x16x16xf32> to vector<1xf32>
    %280 = vector.shape_cast %279 : vector<1xf32> to vector<1x1x1xf32>
    %281 = vector.extract %280[0, 0, 0] : f32 from vector<1x1x1xf32>
    %282 = arith.addf %242, %281 : f32
    %283 = vector.extract_strided_slice %19 {offsets = [5, 0], sizes = [1, 16], strides = [1, 1]} : vector<8x16xf32> to vector<1x16xf32>
    %284 = vector.broadcast %283 : vector<1x16xf32> to vector<8x16xf32>
    %285 = arith.mulf %19, %284 : vector<8x16xf32>
    %286 = vector.extract_strided_slice %24 {offsets = [0, 5], sizes = [8, 1], strides = [1, 1]} : vector<8x8xf32> to vector<8x1xf32>
    %287 = vector.broadcast %286 : vector<8x1xf32> to vector<8x16xf32>
    %288 = arith.divf %285, %287 : vector<8x16xf32>
    %289 = vector.extract_strided_slice %3 {offsets = [5, 0, 0], sizes = [1, 8, 16], strides = [1, 1, 1]} : vector<8x8x16xf32> to vector<1x8x16xf32>
    %290 = vector.shape_cast %289 : vector<1x8x16xf32> to vector<8x16xf32>
    %291 = tpu.concatenate %290, %288 in 0 : vector<8x16xf32>, vector<8x16xf32> -> vector<16x16xf32>
    %c5 = arith.constant 5 : index
    %c0_102 = arith.constant 0 : index
    %c0_103 = arith.constant 0 : index
    %292 = vector.load %arg9[%c5, %c0_102, %c0_103] : memref<8x16x16xf32, #tpu.memory_space<vmem>>, vector<1x16x16xf32>
    %293 = vector.shape_cast %292 : vector<1x16x16xf32> to vector<16x16xf32>
    %294 = arith.mulf %80, %293 : vector<16x16xf32>
    %c5_104 = arith.constant 5 : index
    %c0_105 = arith.constant 0 : index
    %c0_106 = arith.constant 0 : index
    %295 = vector.load %arg10[%c5_104, %c0_105, %c0_106] : memref<8x16x16xf32, #tpu.memory_space<vmem>>, vector<1x16x16xf32>
    %296 = vector.shape_cast %295 : vector<1x16x16xf32> to vector<16x16xf32>
    %297 = arith.addf %294, %296 : vector<16x16xf32>
    %298 = arith.negf %297 : vector<16x16xf32>
    %299 = math.exp %298 : vector<16x16xf32>
    %cst_107 = arith.constant 1.000000e+00 : f32
    %300 = vector.broadcast %cst_107 : f32 to vector<16x16xf32>
    %301 = arith.addf %300, %299 : vector<16x16xf32>
    %302 = arith.divf %300, %301 : vector<16x16xf32>
    %303 = vector.extract_strided_slice %56 {offsets = [5, 0], sizes = [1, 16], strides = [1, 1]} : vector<8x16xf32> to vector<1x16xf32>
    %304 = vector.broadcast %303 : vector<1x16xf32> to vector<16x16xf32>
    %305 = arith.mulf %304, %291 : vector<16x16xf32>
    %306 = arith.addf %305, %302 : vector<16x16xf32>
    %307 = arith.truncf %306 : vector<16x16xf32> to vector<16x16xbf16>
    %cst_108 = arith.constant dense<0.000000e+00> : vector<16x16xf32>
    %308 = tpu.matmul %82, %307, %cst_108 {dimension_numbers = #tpu.dot_dimension_numbers<[1], [0], [0], [1], [0, 0, 1, 1], [], []>} : vector<16x16xbf16>, vector<16x16xbf16>, vector<16x16xf32> -> vector<16x16xf32>
    %c5_109 = arith.constant 5 : index
    %c0_110 = arith.constant 0 : index
    %c0_111 = arith.constant 0 : index
    %309 = vector.load %arg15[%c5_109, %c0_110, %c0_111] : memref<8x16x16xf32, #tpu.memory_space<vmem>>, vector<1x16x16xf32>
    %310 = vector.shape_cast %309 : vector<1x16x16xf32> to vector<16x16xf32>
    %311 = vector.shape_cast %308 : vector<16x16xf32> to vector<1x16x16xf32>
    tpu.vector_store %arg15[%c5_109, %c0_110, %c0_111], %311 {strides = array<i32>} : memref<8x16x16xf32, #tpu.memory_space<vmem>>, vector<1x16x16xf32>,
    %312 = vector.shape_cast %308 : vector<16x16xf32> to vector<1x16x16xf32>
    %cst_112 = arith.constant dense<0.000000e+00> : vector<1xf32>
    %313 = vector.multi_reduction <add>, %312, %cst_112 [1, 2] : vector<1x16x16xf32> to vector<1xf32>
    %314 = vector.shape_cast %313 : vector<1xf32> to vector<1x1x1xf32>
    %315 = vector.extract %314[0, 0, 0] : f32 from vector<1x1x1xf32>
    %316 = arith.addf %276, %315 : f32
    %317 = arith.mulf %308, %308 : vector<16x16xf32>
    %318 = vector.shape_cast %317 : vector<16x16xf32> to vector<1x16x16xf32>
    %cst_113 = arith.constant dense<0.000000e+00> : vector<1xf32>
    %319 = vector.multi_reduction <add>, %318, %cst_113 [1, 2] : vector<1x16x16xf32> to vector<1xf32>
    %320 = vector.shape_cast %319 : vector<1xf32> to vector<1x1x1xf32>
    %321 = vector.extract %320[0, 0, 0] : f32 from vector<1x1x1xf32>
    %322 = arith.addf %282, %321 : f32
    %323 = vector.extract_strided_slice %19 {offsets = [6, 0], sizes = [1, 16], strides = [1, 1]} : vector<8x16xf32> to vector<1x16xf32>
    %324 = vector.broadcast %323 : vector<1x16xf32> to vector<8x16xf32>
    %325 = arith.mulf %19, %324 : vector<8x16xf32>
    %326 = vector.extract_strided_slice %24 {offsets = [0, 6], sizes = [8, 1], strides = [1, 1]} : vector<8x8xf32> to vector<8x1xf32>
    %327 = vector.broadcast %326 : vector<8x1xf32> to vector<8x16xf32>
    %328 = arith.divf %325, %327 : vector<8x16xf32>
    %329 = vector.extract_strided_slice %3 {offsets = [6, 0, 0], sizes = [1, 8, 16], strides = [1, 1, 1]} : vector<8x8x16xf32> to vector<1x8x16xf32>
    %330 = vector.shape_cast %329 : vector<1x8x16xf32> to vector<8x16xf32>
    %331 = tpu.concatenate %330, %328 in 0 : vector<8x16xf32>, vector<8x16xf32> -> vector<16x16xf32>
    %c6 = arith.constant 6 : index
    %c0_114 = arith.constant 0 : index
    %c0_115 = arith.constant 0 : index
    %332 = vector.load %arg9[%c6, %c0_114, %c0_115] : memref<8x16x16xf32, #tpu.memory_space<vmem>>, vector<1x16x16xf32>
    %333 = vector.shape_cast %332 : vector<1x16x16xf32> to vector<16x16xf32>
    %334 = arith.mulf %80, %333 : vector<16x16xf32>
    %c6_116 = arith.constant 6 : index
    %c0_117 = arith.constant 0 : index
    %c0_118 = arith.constant 0 : index
    %335 = vector.load %arg10[%c6_116, %c0_117, %c0_118] : memref<8x16x16xf32, #tpu.memory_space<vmem>>, vector<1x16x16xf32>
    %336 = vector.shape_cast %335 : vector<1x16x16xf32> to vector<16x16xf32>
    %337 = arith.addf %334, %336 : vector<16x16xf32>
    %338 = arith.negf %337 : vector<16x16xf32>
    %339 = math.exp %338 : vector<16x16xf32>
    %cst_119 = arith.constant 1.000000e+00 : f32
    %340 = vector.broadcast %cst_119 : f32 to vector<16x16xf32>
    %341 = arith.addf %340, %339 : vector<16x16xf32>
    %342 = arith.divf %340, %341 : vector<16x16xf32>
    %343 = vector.extract_strided_slice %56 {offsets = [6, 0], sizes = [1, 16], strides = [1, 1]} : vector<8x16xf32> to vector<1x16xf32>
    %344 = vector.broadcast %343 : vector<1x16xf32> to vector<16x16xf32>
    %345 = arith.mulf %344, %331 : vector<16x16xf32>
    %346 = arith.addf %345, %342 : vector<16x16xf32>
    %347 = arith.truncf %346 : vector<16x16xf32> to vector<16x16xbf16>
    %cst_120 = arith.constant dense<0.000000e+00> : vector<16x16xf32>
    %348 = tpu.matmul %82, %347, %cst_120 {dimension_numbers = #tpu.dot_dimension_numbers<[1], [0], [0], [1], [0, 0, 1, 1], [], []>} : vector<16x16xbf16>, vector<16x16xbf16>, vector<16x16xf32> -> vector<16x16xf32>
    %c6_121 = arith.constant 6 : index
    %c0_122 = arith.constant 0 : index
    %c0_123 = arith.constant 0 : index
    %349 = vector.load %arg15[%c6_121, %c0_122, %c0_123] : memref<8x16x16xf32, #tpu.memory_space<vmem>>, vector<1x16x16xf32>
    %350 = vector.shape_cast %349 : vector<1x16x16xf32> to vector<16x16xf32>
    %351 = vector.shape_cast %348 : vector<16x16xf32> to vector<1x16x16xf32>
    tpu.vector_store %arg15[%c6_121, %c0_122, %c0_123], %351 {strides = array<i32>} : memref<8x16x16xf32, #tpu.memory_space<vmem>>, vector<1x16x16xf32>,
    %352 = vector.shape_cast %348 : vector<16x16xf32> to vector<1x16x16xf32>
    %cst_124 = arith.constant dense<0.000000e+00> : vector<1xf32>
    %353 = vector.multi_reduction <add>, %352, %cst_124 [1, 2] : vector<1x16x16xf32> to vector<1xf32>
    %354 = vector.shape_cast %353 : vector<1xf32> to vector<1x1x1xf32>
    %355 = vector.extract %354[0, 0, 0] : f32 from vector<1x1x1xf32>
    %356 = arith.addf %316, %355 : f32
    %357 = arith.mulf %348, %348 : vector<16x16xf32>
    %358 = vector.shape_cast %357 : vector<16x16xf32> to vector<1x16x16xf32>
    %cst_125 = arith.constant dense<0.000000e+00> : vector<1xf32>
    %359 = vector.multi_reduction <add>, %358, %cst_125 [1, 2] : vector<1x16x16xf32> to vector<1xf32>
    %360 = vector.shape_cast %359 : vector<1xf32> to vector<1x1x1xf32>
    %361 = vector.extract %360[0, 0, 0] : f32 from vector<1x1x1xf32>
    %362 = arith.addf %322, %361 : f32
    %363 = vector.extract_strided_slice %19 {offsets = [7, 0], sizes = [1, 16], strides = [1, 1]} : vector<8x16xf32> to vector<1x16xf32>
    %364 = vector.broadcast %363 : vector<1x16xf32> to vector<8x16xf32>
    %365 = arith.mulf %19, %364 : vector<8x16xf32>
    %366 = vector.extract_strided_slice %24 {offsets = [0, 7], sizes = [8, 1], strides = [1, 1]} : vector<8x8xf32> to vector<8x1xf32>
    %367 = vector.broadcast %366 : vector<8x1xf32> to vector<8x16xf32>
    %368 = arith.divf %365, %367 : vector<8x16xf32>
    %369 = vector.extract_strided_slice %3 {offsets = [7, 0, 0], sizes = [1, 8, 16], strides = [1, 1, 1]} : vector<8x8x16xf32> to vector<1x8x16xf32>
    %370 = vector.shape_cast %369 : vector<1x8x16xf32> to vector<8x16xf32>
    %371 = tpu.concatenate %370, %368 in 0 : vector<8x16xf32>, vector<8x16xf32> -> vector<16x16xf32>
    %c7 = arith.constant 7 : index
    %c0_126 = arith.constant 0 : index
    %c0_127 = arith.constant 0 : index
    %372 = vector.load %arg9[%c7, %c0_126, %c0_127] : memref<8x16x16xf32, #tpu.memory_space<vmem>>, vector<1x16x16xf32>
    %373 = vector.shape_cast %372 : vector<1x16x16xf32> to vector<16x16xf32>
    %374 = arith.mulf %80, %373 : vector<16x16xf32>
    %c7_128 = arith.constant 7 : index
    %c0_129 = arith.constant 0 : index
    %c0_130 = arith.constant 0 : index
    %375 = vector.load %arg10[%c7_128, %c0_129, %c0_130] : memref<8x16x16xf32, #tpu.memory_space<vmem>>, vector<1x16x16xf32>
    %376 = vector.shape_cast %375 : vector<1x16x16xf32> to vector<16x16xf32>
    %377 = arith.addf %374, %376 : vector<16x16xf32>
    %378 = arith.negf %377 : vector<16x16xf32>
    %379 = math.exp %378 : vector<16x16xf32>
    %cst_131 = arith.constant 1.000000e+00 : f32
    %380 = vector.broadcast %cst_131 : f32 to vector<16x16xf32>
    %381 = arith.addf %380, %379 : vector<16x16xf32>
    %382 = arith.divf %380, %381 : vector<16x16xf32>
    %383 = vector.extract_strided_slice %56 {offsets = [7, 0], sizes = [1, 16], strides = [1, 1]} : vector<8x16xf32> to vector<1x16xf32>
    %384 = vector.broadcast %383 : vector<1x16xf32> to vector<16x16xf32>
    %385 = arith.mulf %384, %371 : vector<16x16xf32>
    %386 = arith.addf %385, %382 : vector<16x16xf32>
    %387 = arith.truncf %386 : vector<16x16xf32> to vector<16x16xbf16>
    %cst_132 = arith.constant dense<0.000000e+00> : vector<16x16xf32>
    %388 = tpu.matmul %82, %387, %cst_132 {dimension_numbers = #tpu.dot_dimension_numbers<[1], [0], [0], [1], [0, 0, 1, 1], [], []>} : vector<16x16xbf16>, vector<16x16xbf16>, vector<16x16xf32> -> vector<16x16xf32>
    %c7_133 = arith.constant 7 : index
    %c0_134 = arith.constant 0 : index
    %c0_135 = arith.constant 0 : index
    %389 = vector.load %arg15[%c7_133, %c0_134, %c0_135] : memref<8x16x16xf32, #tpu.memory_space<vmem>>, vector<1x16x16xf32>
    %390 = vector.shape_cast %389 : vector<1x16x16xf32> to vector<16x16xf32>
    %391 = vector.shape_cast %388 : vector<16x16xf32> to vector<1x16x16xf32>
    tpu.vector_store %arg15[%c7_133, %c0_134, %c0_135], %391 {strides = array<i32>} : memref<8x16x16xf32, #tpu.memory_space<vmem>>, vector<1x16x16xf32>,
    %392 = vector.shape_cast %388 : vector<16x16xf32> to vector<1x16x16xf32>
    %cst_136 = arith.constant dense<0.000000e+00> : vector<1xf32>
    %393 = vector.multi_reduction <add>, %392, %cst_136 [1, 2] : vector<1x16x16xf32> to vector<1xf32>
    %394 = vector.shape_cast %393 : vector<1xf32> to vector<1x1x1xf32>
    %395 = vector.extract %394[0, 0, 0] : f32 from vector<1x1x1xf32>
    %396 = arith.addf %356, %395 : f32
    %397 = arith.mulf %388, %388 : vector<16x16xf32>
    %398 = vector.shape_cast %397 : vector<16x16xf32> to vector<1x16x16xf32>
    %cst_137 = arith.constant dense<0.000000e+00> : vector<1xf32>
    %399 = vector.multi_reduction <add>, %398, %cst_137 [1, 2] : vector<1x16x16xf32> to vector<1xf32>
    %400 = vector.shape_cast %399 : vector<1xf32> to vector<1x1x1xf32>
    %401 = vector.extract %400[0, 0, 0] : f32 from vector<1x1x1xf32>
    %402 = arith.addf %362, %401 : f32
    %cst_138 = arith.constant 2.048000e+03 : f32
    %403 = arith.divf %396, %cst_138 : f32
    %cst_139 = arith.constant 2.048000e+03 : f32
    %404 = arith.divf %402, %cst_139 : f32
    %405 = arith.mulf %403, %403 : f32
    %406 = arith.subf %404, %405 : f32
    %cst_140 = arith.constant 0.000000e+00 : f32
    %407 = arith.maximumf %406, %cst_140 : f32
    %cst_141 = arith.constant 9.99999974E-6 : f32
    %408 = arith.addf %407, %cst_141 : f32
    %409 = math.rsqrt %408 : f32
    %cst_142 = arith.constant 0.000000e+00 : f32
    %410 = vector.broadcast %cst_142 : f32 to vector<16x16xf32>
    %c0_143 = arith.constant 0 : index
    %c0_144 = arith.constant 0 : index
    %c0_145 = arith.constant 0 : index
    %411 = vector.load %arg15[%c0_143, %c0_144, %c0_145] : memref<8x16x16xf32, #tpu.memory_space<vmem>>, vector<1x16x16xf32>
    %412 = vector.shape_cast %411 : vector<1x16x16xf32> to vector<16x16xf32>
    %413 = vector.broadcast %403 : f32 to vector<16x16xf32>
    %414 = arith.subf %412, %413 : vector<16x16xf32>
    %415 = vector.broadcast %409 : f32 to vector<16x16xf32>
    %416 = arith.mulf %414, %415 : vector<16x16xf32>
    %c0_146 = arith.constant 0 : index
    %c0_147 = arith.constant 0 : index
    %c0_148 = arith.constant 0 : index
    %417 = vector.load %arg12[%c0_146, %c0_147, %c0_148] : memref<8x16x16xf32, #tpu.memory_space<vmem>>, vector<1x16x16xf32>
    %418 = vector.shape_cast %417 : vector<1x16x16xf32> to vector<16x16xf32>
    %419 = arith.mulf %416, %418 : vector<16x16xf32>
    %c0_149 = arith.constant 0 : index
    %c0_150 = arith.constant 0 : index
    %c0_151 = arith.constant 0 : index
    %420 = vector.load %arg13[%c0_149, %c0_150, %c0_151] : memref<8x16x16xf32, #tpu.memory_space<vmem>>, vector<1x16x16xf32>
    %421 = vector.shape_cast %420 : vector<1x16x16xf32> to vector<16x16xf32>
    %422 = arith.addf %419, %421 : vector<16x16xf32>
    %cst_152 = arith.constant 2.000000e+01 : f32
    %423 = vector.broadcast %cst_152 : f32 to vector<16x16xf32>
    %424 = arith.cmpf ogt, %422, %423 : vector<16x16xf32>
    %cst_153 = arith.constant 2.000000e+01 : f32
    %425 = vector.broadcast %cst_153 : f32 to vector<16x16xf32>
    %426 = arith.minimumf %422, %425 : vector<16x16xf32>
    %427 = math.exp %426 : vector<16x16xf32>
    %428 = math.log1p %427 : vector<16x16xf32>
    %429 = arith.select %424, %422, %428 : vector<16x16xi1>, vector<16x16xf32>
    %430 = arith.addf %410, %429 : vector<16x16xf32>
    %c1_154 = arith.constant 1 : index
    %c0_155 = arith.constant 0 : index
    %c0_156 = arith.constant 0 : index
    %431 = vector.load %arg15[%c1_154, %c0_155, %c0_156] : memref<8x16x16xf32, #tpu.memory_space<vmem>>, vector<1x16x16xf32>
    %432 = vector.shape_cast %431 : vector<1x16x16xf32> to vector<16x16xf32>
    %433 = vector.broadcast %403 : f32 to vector<16x16xf32>
    %434 = arith.subf %432, %433 : vector<16x16xf32>
    %435 = vector.broadcast %409 : f32 to vector<16x16xf32>
    %436 = arith.mulf %434, %435 : vector<16x16xf32>
    %c1_157 = arith.constant 1 : index
    %c0_158 = arith.constant 0 : index
    %c0_159 = arith.constant 0 : index
    %437 = vector.load %arg12[%c1_157, %c0_158, %c0_159] : memref<8x16x16xf32, #tpu.memory_space<vmem>>, vector<1x16x16xf32>
    %438 = vector.shape_cast %437 : vector<1x16x16xf32> to vector<16x16xf32>
    %439 = arith.mulf %436, %438 : vector<16x16xf32>
    %c1_160 = arith.constant 1 : index
    %c0_161 = arith.constant 0 : index
    %c0_162 = arith.constant 0 : index
    %440 = vector.load %arg13[%c1_160, %c0_161, %c0_162] : memref<8x16x16xf32, #tpu.memory_space<vmem>>, vector<1x16x16xf32>
    %441 = vector.shape_cast %440 : vector<1x16x16xf32> to vector<16x16xf32>
    %442 = arith.addf %439, %441 : vector<16x16xf32>
    %cst_163 = arith.constant 2.000000e+01 : f32
    %443 = vector.broadcast %cst_163 : f32 to vector<16x16xf32>
    %444 = arith.cmpf ogt, %442, %443 : vector<16x16xf32>
    %cst_164 = arith.constant 2.000000e+01 : f32
    %445 = vector.broadcast %cst_164 : f32 to vector<16x16xf32>
    %446 = arith.minimumf %442, %445 : vector<16x16xf32>
    %447 = math.exp %446 : vector<16x16xf32>
    %448 = math.log1p %447 : vector<16x16xf32>
    %449 = arith.select %444, %442, %448 : vector<16x16xi1>, vector<16x16xf32>
    %450 = arith.addf %430, %449 : vector<16x16xf32>
    %c2_165 = arith.constant 2 : index
    %c0_166 = arith.constant 0 : index
    %c0_167 = arith.constant 0 : index
    %451 = vector.load %arg15[%c2_165, %c0_166, %c0_167] : memref<8x16x16xf32, #tpu.memory_space<vmem>>, vector<1x16x16xf32>
    %452 = vector.shape_cast %451 : vector<1x16x16xf32> to vector<16x16xf32>
    %453 = vector.broadcast %403 : f32 to vector<16x16xf32>
    %454 = arith.subf %452, %453 : vector<16x16xf32>
    %455 = vector.broadcast %409 : f32 to vector<16x16xf32>
    %456 = arith.mulf %454, %455 : vector<16x16xf32>
    %c2_168 = arith.constant 2 : index
    %c0_169 = arith.constant 0 : index
    %c0_170 = arith.constant 0 : index
    %457 = vector.load %arg12[%c2_168, %c0_169, %c0_170] : memref<8x16x16xf32, #tpu.memory_space<vmem>>, vector<1x16x16xf32>
    %458 = vector.shape_cast %457 : vector<1x16x16xf32> to vector<16x16xf32>
    %459 = arith.mulf %456, %458 : vector<16x16xf32>
    %c2_171 = arith.constant 2 : index
    %c0_172 = arith.constant 0 : index
    %c0_173 = arith.constant 0 : index
    %460 = vector.load %arg13[%c2_171, %c0_172, %c0_173] : memref<8x16x16xf32, #tpu.memory_space<vmem>>, vector<1x16x16xf32>
    %461 = vector.shape_cast %460 : vector<1x16x16xf32> to vector<16x16xf32>
    %462 = arith.addf %459, %461 : vector<16x16xf32>
    %cst_174 = arith.constant 2.000000e+01 : f32
    %463 = vector.broadcast %cst_174 : f32 to vector<16x16xf32>
    %464 = arith.cmpf ogt, %462, %463 : vector<16x16xf32>
    %cst_175 = arith.constant 2.000000e+01 : f32
    %465 = vector.broadcast %cst_175 : f32 to vector<16x16xf32>
    %466 = arith.minimumf %462, %465 : vector<16x16xf32>
    %467 = math.exp %466 : vector<16x16xf32>
    %468 = math.log1p %467 : vector<16x16xf32>
    %469 = arith.select %464, %462, %468 : vector<16x16xi1>, vector<16x16xf32>
    %470 = arith.addf %450, %469 : vector<16x16xf32>
    %c3_176 = arith.constant 3 : index
    %c0_177 = arith.constant 0 : index
    %c0_178 = arith.constant 0 : index
    %471 = vector.load %arg15[%c3_176, %c0_177, %c0_178] : memref<8x16x16xf32, #tpu.memory_space<vmem>>, vector<1x16x16xf32>
    %472 = vector.shape_cast %471 : vector<1x16x16xf32> to vector<16x16xf32>
    %473 = vector.broadcast %403 : f32 to vector<16x16xf32>
    %474 = arith.subf %472, %473 : vector<16x16xf32>
    %475 = vector.broadcast %409 : f32 to vector<16x16xf32>
    %476 = arith.mulf %474, %475 : vector<16x16xf32>
    %c3_179 = arith.constant 3 : index
    %c0_180 = arith.constant 0 : index
    %c0_181 = arith.constant 0 : index
    %477 = vector.load %arg12[%c3_179, %c0_180, %c0_181] : memref<8x16x16xf32, #tpu.memory_space<vmem>>, vector<1x16x16xf32>
    %478 = vector.shape_cast %477 : vector<1x16x16xf32> to vector<16x16xf32>
    %479 = arith.mulf %476, %478 : vector<16x16xf32>
    %c3_182 = arith.constant 3 : index
    %c0_183 = arith.constant 0 : index
    %c0_184 = arith.constant 0 : index
    %480 = vector.load %arg13[%c3_182, %c0_183, %c0_184] : memref<8x16x16xf32, #tpu.memory_space<vmem>>, vector<1x16x16xf32>
    %481 = vector.shape_cast %480 : vector<1x16x16xf32> to vector<16x16xf32>
    %482 = arith.addf %479, %481 : vector<16x16xf32>
    %cst_185 = arith.constant 2.000000e+01 : f32
    %483 = vector.broadcast %cst_185 : f32 to vector<16x16xf32>
    %484 = arith.cmpf ogt, %482, %483 : vector<16x16xf32>
    %cst_186 = arith.constant 2.000000e+01 : f32
    %485 = vector.broadcast %cst_186 : f32 to vector<16x16xf32>
    %486 = arith.minimumf %482, %485 : vector<16x16xf32>
    %487 = math.exp %486 : vector<16x16xf32>
    %488 = math.log1p %487 : vector<16x16xf32>
    %489 = arith.select %484, %482, %488 : vector<16x16xi1>, vector<16x16xf32>
    %490 = arith.addf %470, %489 : vector<16x16xf32>
    %c4_187 = arith.constant 4 : index
    %c0_188 = arith.constant 0 : index
    %c0_189 = arith.constant 0 : index
    %491 = vector.load %arg15[%c4_187, %c0_188, %c0_189] : memref<8x16x16xf32, #tpu.memory_space<vmem>>, vector<1x16x16xf32>
    %492 = vector.shape_cast %491 : vector<1x16x16xf32> to vector<16x16xf32>
    %493 = vector.broadcast %403 : f32 to vector<16x16xf32>
    %494 = arith.subf %492, %493 : vector<16x16xf32>
    %495 = vector.broadcast %409 : f32 to vector<16x16xf32>
    %496 = arith.mulf %494, %495 : vector<16x16xf32>
    %c4_190 = arith.constant 4 : index
    %c0_191 = arith.constant 0 : index
    %c0_192 = arith.constant 0 : index
    %497 = vector.load %arg12[%c4_190, %c0_191, %c0_192] : memref<8x16x16xf32, #tpu.memory_space<vmem>>, vector<1x16x16xf32>
    %498 = vector.shape_cast %497 : vector<1x16x16xf32> to vector<16x16xf32>
    %499 = arith.mulf %496, %498 : vector<16x16xf32>
    %c4_193 = arith.constant 4 : index
    %c0_194 = arith.constant 0 : index
    %c0_195 = arith.constant 0 : index
    %500 = vector.load %arg13[%c4_193, %c0_194, %c0_195] : memref<8x16x16xf32, #tpu.memory_space<vmem>>, vector<1x16x16xf32>
    %501 = vector.shape_cast %500 : vector<1x16x16xf32> to vector<16x16xf32>
    %502 = arith.addf %499, %501 : vector<16x16xf32>
    %cst_196 = arith.constant 2.000000e+01 : f32
    %503 = vector.broadcast %cst_196 : f32 to vector<16x16xf32>
    %504 = arith.cmpf ogt, %502, %503 : vector<16x16xf32>
    %cst_197 = arith.constant 2.000000e+01 : f32
    %505 = vector.broadcast %cst_197 : f32 to vector<16x16xf32>
    %506 = arith.minimumf %502, %505 : vector<16x16xf32>
    %507 = math.exp %506 : vector<16x16xf32>
    %508 = math.log1p %507 : vector<16x16xf32>
    %509 = arith.select %504, %502, %508 : vector<16x16xi1>, vector<16x16xf32>
    %510 = arith.addf %490, %509 : vector<16x16xf32>
    %c5_198 = arith.constant 5 : index
    %c0_199 = arith.constant 0 : index
    %c0_200 = arith.constant 0 : index
    %511 = vector.load %arg15[%c5_198, %c0_199, %c0_200] : memref<8x16x16xf32, #tpu.memory_space<vmem>>, vector<1x16x16xf32>
    %512 = vector.shape_cast %511 : vector<1x16x16xf32> to vector<16x16xf32>
    %513 = vector.broadcast %403 : f32 to vector<16x16xf32>
    %514 = arith.subf %512, %513 : vector<16x16xf32>
    %515 = vector.broadcast %409 : f32 to vector<16x16xf32>
    %516 = arith.mulf %514, %515 : vector<16x16xf32>
    %c5_201 = arith.constant 5 : index
    %c0_202 = arith.constant 0 : index
    %c0_203 = arith.constant 0 : index
    %517 = vector.load %arg12[%c5_201, %c0_202, %c0_203] : memref<8x16x16xf32, #tpu.memory_space<vmem>>, vector<1x16x16xf32>
    %518 = vector.shape_cast %517 : vector<1x16x16xf32> to vector<16x16xf32>
    %519 = arith.mulf %516, %518 : vector<16x16xf32>
    %c5_204 = arith.constant 5 : index
    %c0_205 = arith.constant 0 : index
    %c0_206 = arith.constant 0 : index
    %520 = vector.load %arg13[%c5_204, %c0_205, %c0_206] : memref<8x16x16xf32, #tpu.memory_space<vmem>>, vector<1x16x16xf32>
    %521 = vector.shape_cast %520 : vector<1x16x16xf32> to vector<16x16xf32>
    %522 = arith.addf %519, %521 : vector<16x16xf32>
    %cst_207 = arith.constant 2.000000e+01 : f32
    %523 = vector.broadcast %cst_207 : f32 to vector<16x16xf32>
    %524 = arith.cmpf ogt, %522, %523 : vector<16x16xf32>
    %cst_208 = arith.constant 2.000000e+01 : f32
    %525 = vector.broadcast %cst_208 : f32 to vector<16x16xf32>
    %526 = arith.minimumf %522, %525 : vector<16x16xf32>
    %527 = math.exp %526 : vector<16x16xf32>
    %528 = math.log1p %527 : vector<16x16xf32>
    %529 = arith.select %524, %522, %528 : vector<16x16xi1>, vector<16x16xf32>
    %530 = arith.addf %510, %529 : vector<16x16xf32>
    %c6_209 = arith.constant 6 : index
    %c0_210 = arith.constant 0 : index
    %c0_211 = arith.constant 0 : index
    %531 = vector.load %arg15[%c6_209, %c0_210, %c0_211] : memref<8x16x16xf32, #tpu.memory_space<vmem>>, vector<1x16x16xf32>
    %532 = vector.shape_cast %531 : vector<1x16x16xf32> to vector<16x16xf32>
    %533 = vector.broadcast %403 : f32 to vector<16x16xf32>
    %534 = arith.subf %532, %533 : vector<16x16xf32>
    %535 = vector.broadcast %409 : f32 to vector<16x16xf32>
    %536 = arith.mulf %534, %535 : vector<16x16xf32>
    %c6_212 = arith.constant 6 : index
    %c0_213 = arith.constant 0 : index
    %c0_214 = arith.constant 0 : index
    %537 = vector.load %arg12[%c6_212, %c0_213, %c0_214] : memref<8x16x16xf32, #tpu.memory_space<vmem>>, vector<1x16x16xf32>
    %538 = vector.shape_cast %537 : vector<1x16x16xf32> to vector<16x16xf32>
    %539 = arith.mulf %536, %538 : vector<16x16xf32>
    %c6_215 = arith.constant 6 : index
    %c0_216 = arith.constant 0 : index
    %c0_217 = arith.constant 0 : index
    %540 = vector.load %arg13[%c6_215, %c0_216, %c0_217] : memref<8x16x16xf32, #tpu.memory_space<vmem>>, vector<1x16x16xf32>
    %541 = vector.shape_cast %540 : vector<1x16x16xf32> to vector<16x16xf32>
    %542 = arith.addf %539, %541 : vector<16x16xf32>
    %cst_218 = arith.constant 2.000000e+01 : f32
    %543 = vector.broadcast %cst_218 : f32 to vector<16x16xf32>
    %544 = arith.cmpf ogt, %542, %543 : vector<16x16xf32>
    %cst_219 = arith.constant 2.000000e+01 : f32
    %545 = vector.broadcast %cst_219 : f32 to vector<16x16xf32>
    %546 = arith.minimumf %542, %545 : vector<16x16xf32>
    %547 = math.exp %546 : vector<16x16xf32>
    %548 = math.log1p %547 : vector<16x16xf32>
    %549 = arith.select %544, %542, %548 : vector<16x16xi1>, vector<16x16xf32>
    %550 = arith.addf %530, %549 : vector<16x16xf32>
    %c7_220 = arith.constant 7 : index
    %c0_221 = arith.constant 0 : index
    %c0_222 = arith.constant 0 : index
    %551 = vector.load %arg15[%c7_220, %c0_221, %c0_222] : memref<8x16x16xf32, #tpu.memory_space<vmem>>, vector<1x16x16xf32>
    %552 = vector.shape_cast %551 : vector<1x16x16xf32> to vector<16x16xf32>
    %553 = vector.broadcast %403 : f32 to vector<16x16xf32>
    %554 = arith.subf %552, %553 : vector<16x16xf32>
    %555 = vector.broadcast %409 : f32 to vector<16x16xf32>
    %556 = arith.mulf %554, %555 : vector<16x16xf32>
    %c7_223 = arith.constant 7 : index
    %c0_224 = arith.constant 0 : index
    %c0_225 = arith.constant 0 : index
    %557 = vector.load %arg12[%c7_223, %c0_224, %c0_225] : memref<8x16x16xf32, #tpu.memory_space<vmem>>, vector<1x16x16xf32>
    %558 = vector.shape_cast %557 : vector<1x16x16xf32> to vector<16x16xf32>
    %559 = arith.mulf %556, %558 : vector<16x16xf32>
    %c7_226 = arith.constant 7 : index
    %c0_227 = arith.constant 0 : index
    %c0_228 = arith.constant 0 : index
    %560 = vector.load %arg13[%c7_226, %c0_227, %c0_228] : memref<8x16x16xf32, #tpu.memory_space<vmem>>, vector<1x16x16xf32>
    %561 = vector.shape_cast %560 : vector<1x16x16xf32> to vector<16x16xf32>
    %562 = arith.addf %559, %561 : vector<16x16xf32>
    %cst_229 = arith.constant 2.000000e+01 : f32
    %563 = vector.broadcast %cst_229 : f32 to vector<16x16xf32>
    %564 = arith.cmpf ogt, %562, %563 : vector<16x16xf32>
    %cst_230 = arith.constant 2.000000e+01 : f32
    %565 = vector.broadcast %cst_230 : f32 to vector<16x16xf32>
    %566 = arith.minimumf %562, %565 : vector<16x16xf32>
    %567 = math.exp %566 : vector<16x16xf32>
    %568 = math.log1p %567 : vector<16x16xf32>
    %569 = arith.select %564, %562, %568 : vector<16x16xi1>, vector<16x16xf32>
    %570 = arith.addf %550, %569 : vector<16x16xf32>
    %571 = vector.shape_cast %7 : vector<1x16xf32> to vector<1x1x16xf32>
    %cst_231 = arith.constant dense<0.000000e+00> : vector<1xf32>
    %572 = vector.multi_reduction <add>, %571, %cst_231 [1, 2] : vector<1x1x16xf32> to vector<1xf32>
    %573 = vector.shape_cast %572 : vector<1xf32> to vector<1x1x1xf32>
    %574 = vector.extract %573[0, 0, 0] : f32 from vector<1x1x1xf32>
    %cst_232 = arith.constant 1.000000e-01 : f32
    %575 = arith.maximumf %574, %cst_232 : f32
    %576 = vector.broadcast %7 : vector<1x16xf32> to vector<16x16xf32>
    %577 = arith.mulf %570, %576 : vector<16x16xf32>
    %cst_233 = arith.constant 1.000000e+00 : f32
    %578 = arith.divf %cst_233, %575 : f32
    %579 = vector.broadcast %578 : f32 to vector<16x16xf32>
    %580 = arith.mulf %577, %579 : vector<16x16xf32>
    %c0_234 = arith.constant 0 : index
    %c0_235 = arith.constant 0 : index
    %c0_236 = arith.constant 0 : index
    %581 = vector.load %arg14[%c0_234, %c0_235, %c0_236] : memref<1x16x16xf32, #tpu.memory_space<vmem>>, vector<1x16x16xf32>
    %582 = vector.shape_cast %581 : vector<1x16x16xf32> to vector<16x16xf32>
    %583 = vector.shape_cast %580 : vector<16x16xf32> to vector<1x16x16xf32>
    tpu.vector_store %arg14[%c0_234, %c0_235, %c0_236], %583 {strides = array<i32>} : memref<1x16x16xf32, #tpu.memory_space<vmem>>, vector<1x16x16xf32>,
    return
  }
  func.func @transform_0(%arg0: i32) -> (i32, i32, i32) {
    %c0_i32 = arith.constant 0 : i32
    %c0_i32_0 = arith.constant 0 : i32
    %c0_i32_1 = arith.constant 0 : i32
    return %arg0, %c0_i32, %c0_i32_0 : i32, i32, i32
  }
  func.func @transform_1(%arg0: i32) -> (i32, i32, i32, i32) {
    %c0_i32 = arith.constant 0 : i32
    %c0_i32_0 = arith.constant 0 : i32
    %c0_i32_1 = arith.constant 0 : i32
    %c0_i32_2 = arith.constant 0 : i32
    return %arg0, %c0_i32, %c0_i32_0, %c0_i32_1 : i32, i32, i32, i32
  }
  func.func @transform_2(%arg0: i32) -> (i32, i32, i32) {
    %c0_i32 = arith.constant 0 : i32
    %c0_i32_0 = arith.constant 0 : i32
    %c0_i32_1 = arith.constant 0 : i32
    return %arg0, %c0_i32, %c0_i32_0 : i32, i32, i32
  }
  func.func @transform_3(%arg0: i32) -> (i32, i32, i32) {
    %c0_i32 = arith.constant 0 : i32
    %c0_i32_0 = arith.constant 0 : i32
    %c0_i32_1 = arith.constant 0 : i32
    return %arg0, %c0_i32, %c0_i32_0 : i32, i32, i32
  }
  func.func @transform_4(%arg0: i32) -> i32 {
    %c0_i32 = arith.constant 0 : i32
    %c0_i32_0 = arith.constant 0 : i32
    return %c0_i32 : i32
  }
  func.func @transform_5(%arg0: i32) -> (i32, i32) {
    %c0_i32 = arith.constant 0 : i32
    %c0_i32_0 = arith.constant 0 : i32
    %c0_i32_1 = arith.constant 0 : i32
    return %c0_i32, %c0_i32_0 : i32, i32
  }
  func.func @transform_6(%arg0: i32) -> (i32, i32) {
    %c0_i32 = arith.constant 0 : i32
    %c0_i32_0 = arith.constant 0 : i32
    %c0_i32_1 = arith.constant 0 : i32
    return %c0_i32, %c0_i32_0 : i32, i32
  }
  func.func @transform_7(%arg0: i32) -> (i32, i32) {
    %c0_i32 = arith.constant 0 : i32
    %c0_i32_0 = arith.constant 0 : i32
    %c0_i32_1 = arith.constant 0 : i32
    return %c0_i32, %c0_i32_0 : i32, i32
  }
  func.func @transform_8(%arg0: i32) -> (i32, i32, i32) {
    %c0_i32 = arith.constant 0 : i32
    %c0_i32_0 = arith.constant 0 : i32
    %c0_i32_1 = arith.constant 0 : i32
    %c0_i32_2 = arith.constant 0 : i32
    return %c0_i32, %c0_i32_0, %c0_i32_1 : i32, i32, i32
  }
  func.func @transform_9(%arg0: i32) -> (i32, i32, i32) {
    %c0_i32 = arith.constant 0 : i32
    %c0_i32_0 = arith.constant 0 : i32
    %c0_i32_1 = arith.constant 0 : i32
    %c0_i32_2 = arith.constant 0 : i32
    return %c0_i32, %c0_i32_0, %c0_i32_1 : i32, i32, i32
  }
  func.func @transform_10(%arg0: i32) -> (i32, i32) {
    %c0_i32 = arith.constant 0 : i32
    %c0_i32_0 = arith.constant 0 : i32
    %c0_i32_1 = arith.constant 0 : i32
    return %c0_i32, %c0_i32_0 : i32, i32
  }
  func.func @transform_11(%arg0: i32) -> (i32, i32, i32) {
    %c0_i32 = arith.constant 0 : i32
    %c0_i32_0 = arith.constant 0 : i32
    %c0_i32_1 = arith.constant 0 : i32
    %c0_i32_2 = arith.constant 0 : i32
    return %c0_i32, %c0_i32_0, %c0_i32_1 : i32, i32, i32
  }
  func.func @transform_12(%arg0: i32) -> (i32, i32, i32) {
    %c0_i32 = arith.constant 0 : i32
    %c0_i32_0 = arith.constant 0 : i32
    %c0_i32_1 = arith.constant 0 : i32
    %c0_i32_2 = arith.constant 0 : i32
    return %c0_i32, %c0_i32_0, %c0_i32_1 : i32, i32, i32
  }
  func.func @transform_13(%arg0: i32) -> (i32, i32, i32) {
    %c0_i32 = arith.constant 0 : i32
    %c0_i32_0 = arith.constant 0 : i32
    %c0_i32_1 = arith.constant 0 : i32
    return %arg0, %c0_i32, %c0_i32_0 : i32, i32, i32
  }
}

</mosaic_0001>

<llo_original>
// kernel: _lambda_.2
$region0: #{_lambda_.2}
  #allocation0 [shape = 'u32[]', space=smem, size = 0x4, offset = 0x4, fixed_abs, tag = 'smem constant byte address 0x4 - core index']
  #allocation1 [shape = 'u32[144,128]{1,0:T(1,128)}', space=vmem, size = 0x12000, scoped, tag = 'internal scratch']
  %s0 = inlined_call_operand.vmem [shape: f32[2,16,8], index: 0, kind: input, shape index: {}, may-alias: {0,1}]
  %s1 = inlined_call_operand.vmem [shape: f32[2,16,8], index: 1, kind: input, shape index: {}, may-alias: {0,1}]
  %s2 = inlined_call_operand.vmem [shape: f32[2,16,16], index: 2, kind: output, shape index: {}]
  %s3 = sld [smem:[#allocation0]]
  $region41: #{_lambda_.2} parent=0
    _
  %s5 = ssub.s32 1, %s3
  %s6 = scalar_select 0, %s5, %s3
  loop: start=0, step=1, limit=4
  $region2: #{_lambda_.2} parent=0 // loop_pre_header
    _
  $region3: #{_lambda_.2} parent=0 // loop_header
    %s8 = sphi 0, %s12
    %p9 = scmp.ge.s32.totalorder %s8, 4
    %s15 = sphi 0, %s34
    %s16 = sphi 0, %s30
    %s17 = sphi 0, %s26
    %s18 = sphi 0, %s15
    %s19 = sphi 0, %s16
    %s20 = sphi 0, %s17
    %s21 = sphi 0, %s18
    %s22 = sphi 0, %s19
    %s23 = sphi 0, %s20
    %s39 = sphi 0, %s41
    %s42 = sphi 0, %s39
    %s43 = sphi 0, %s42
    %s59 = sphi 0, %s43
    %s67 = sphi 0, %s69
    %s70 = sphi 0, %s67
    %s71 = sphi 0, %s70
    %s87 = sphi 0, %s71
    %s97 = sphi 0, %s99
    %s100 = sphi 0, %s97
    %s101 = sphi 0, %s100
    %s117 = sphi 0, %s101
  $region4: #{_lambda_.2} parent=0 // loop_header_branch
    %11 = sbr.rel (%p9) target = $region8
  $region5: #{_lambda_.2} parent=0 // loop_body
    %s13 = ssub.s32 %s8, 1
    %s14 = ssub.s32 %s8, 2
    %s24 = sadd.s32 1, %s17
    %p25 = scmp.ge.s32.totalorder %s24, 1
    %s26 = scalar_select %p25, 0, %s24
    %s27 = sadd.s32 1, %s16
    %s28 = scalar_select %p25, %s27, %s16
    %p29 = scmp.ge.s32.totalorder %s28, 1
    %s30 = scalar_select %p29, 0, %s28
    %s31 = sadd.s32 1, %s15
    %s32 = scalar_select %p29, %s31, %s15
    %p33 = scmp.ge.s32.totalorder %s32, 2
    %s34 = scalar_select %p33, 0, %s32
    %s35 = ssub.s32 %s15, %s34
    %s36 = ssub.s32 %s16, %s30
    %s37 = sor.u32 %s35, %s36
    %p38 = scmp.eq.s32.totalorder %s37, 0
    %s40 = sadd.s32 %s39, 1
    %s41 = scalar_select %p38, %s39, %s40
    %p44 = pneg %p38
    %p45 = scmp.eq.s32.totalorder %s8, 1
    %p46 = por %p44, %p45
    %p47 = scmp.ne.s32.totalorder %s39, %s42
    %p48 = scmp.eq.s32.totalorder %s8, 0
    %p49 = por %p47, %p48
    %p50 = scmp.ne.s32.totalorder %s39, %s42
    %p51 = scmp.eq.s32.totalorder %s13, 1
    %p52 = por %p50, %p51
    %p53 = scmp.ne.s32.totalorder %s42, %s43
    %p54 = scmp.eq.s32.totalorder %s13, 0
    %p55 = por %p53, %p54
    %p56 = scmp.ne.s32.totalorder %s42, %s43
    %p57 = scmp.eq.s32.totalorder %s14, 1
    %p58 = por %p56, %p57
    %p60 = scmp.ne.s32.totalorder %s43, %s59
    %p61 = scmp.eq.s32.totalorder %s14, 0
    %p62 = por %p60, %p61
    %s63 = ssub.s32 %s15, %s34
    %s64 = ssub.s32 %s17, %s26
    %s65 = sor.u32 %s63, %s64
    %p66 = scmp.eq.s32.totalorder %s65, 0
    %s68 = sadd.s32 %s67, 1
    %s69 = scalar_select %p66, %s67, %s68
    %p72 = pneg %p66
    %p73 = scmp.eq.s32.totalorder %s8, 1
    %p74 = por %p72, %p73
    %p75 = scmp.ne.s32.totalorder %s67, %s70
    %p76 = scmp.eq.s32.totalorder %s8, 0
    %p77 = por %p75, %p76
    %p78 = scmp.ne.s32.totalorder %s67, %s70
    %p79 = scmp.eq.s32.totalorder %s13, 1
    %p80 = por %p78, %p79
    %p81 = scmp.ne.s32.totalorder %s70, %s71
    %p82 = scmp.eq.s32.totalorder %s13, 0
    %p83 = por %p81, %p82
    %p84 = scmp.ne.s32.totalorder %s70, %s71
    %p85 = scmp.eq.s32.totalorder %s14, 1
    %p86 = por %p84, %p85
    %p88 = scmp.ne.s32.totalorder %s71, %s87
    %p89 = scmp.eq.s32.totalorder %s14, 0
    %p90 = por %p88, %p89
    %s91 = ssub.s32 %s15, %s34
    %s92 = ssub.s32 %s16, %s30
    %s93 = sor.u32 %s91, %s92
    %s94 = ssub.s32 %s17, %s26
    %s95 = sor.u32 %s93, %s94
    %p96 = scmp.eq.s32.totalorder %s95, 0
    %s98 = sadd.s32 %s97, 1
    %s99 = scalar_select %p96, %s97, %s98
    %p102 = pneg %p96
    %p103 = scmp.eq.s32.totalorder %s8, 1
    %p104 = por %p102, %p103
    %p105 = scmp.ne.s32.totalorder %s97, %s100
    %p106 = scmp.eq.s32.totalorder %s8, 0
    %p107 = por %p105, %p106
    %p108 = scmp.ne.s32.totalorder %s97, %s100
    %p109 = scmp.eq.s32.totalorder %s13, 1
    %p110 = por %p108, %p109
    %p111 = scmp.ne.s32.totalorder %s100, %s101
    %p112 = scmp.eq.s32.totalorder %s13, 0
    %p113 = por %p111, %p112
    %p114 = scmp.ne.s32.totalorder %s100, %s101
    %p115 = scmp.eq.s32.totalorder %s14, 1
    %p116 = por %p114, %p115
    %p118 = scmp.ne.s32.totalorder %s101, %s117
    %p119 = scmp.eq.s32.totalorder %s14, 0
    %p120 = por %p118, %p119
    %p121 = scmp.le.s32.totalorder 1, %s8
    %p122 = scmp.lt.s32.totalorder %s8, 3
    %p123 = pnand %p121, %p122
    %p124 = pneg %p123
    // Predicated region
    $region9: #{_lambda_.2} parent=5 // pred_check
      _
    $region10: #{_lambda_.2} parent=5 // pred_check_branch
      %126 = sbr.rel (%p123) target = $region12
    $region11: #{_lambda_.2} parent=5 // pred_region
      %s127 = ssub.s32 %s8, 1
    $region12: #{_lambda_.2} parent=5 // pred_fallthru
      _
    %p128 = scmp.lt.s32.totalorder %s8, 2
    // Predicated region
    $region13: #{_lambda_.2} parent=5 // pred_check
      %p129 = pneg %p128
    $region14: #{_lambda_.2} parent=5 // pred_check_branch
      %131 = sbr.rel (%p129) target = $region16
    $region15: #{_lambda_.2} parent=5 // pred_region
      // Predicated region
      $region17: #{_lambda_.2} parent=15 // pred_check
        %p132 = pneg %p49
      $region18: #{_lambda_.2} parent=15 // pred_check_branch
        %134 = sbr.rel (%p132) target = $region20
      $region19: #{_lambda_.2} parent=15 // pred_region
        %s135 = smul.u32 2, %s16
        %p136 = scmp.lt.s32.totalorder %s15, 1
        %s137 = scalar_select %p136, %s15, 1
        %p138 = scmp.lt.s32.totalorder %s135, 1
        %s139 = scalar_select %p138, %s135, 1
        %s140 = smul.addr %s137, 2
        %s141 = sadd.s32 %s139, %s140
        %s142 = smul.addr %s141, 8
        %s143 = scalar_lea.vmem %s0, %s142
        %s144 = smul.u32 2, %s16
      $region20: #{_lambda_.2} parent=15 // pred_fallthru
        _
      // Predicated region
      $region21: #{_lambda_.2} parent=15 // pred_check
        %p145 = pneg %p77
      $region22: #{_lambda_.2} parent=15 // pred_check_branch
        %147 = sbr.rel (%p145) target = $region24
      $region23: #{_lambda_.2} parent=15 // pred_region
        %s148 = smul.u32 2, %s17
        %p149 = scmp.lt.s32.totalorder %s15, 1
        %s150 = scalar_select %p149, %s15, 1
        %p151 = scmp.lt.s32.totalorder %s148, 1
        %s152 = scalar_select %p151, %s148, 1
        %s153 = smul.addr %s150, 2
        %s154 = sadd.s32 %s152, %s153
        %s155 = smul.addr %s154, 8
        %s156 = scalar_lea.vmem %s1, %s155
        %s157 = smul.u32 2, %s17
      $region24: #{_lambda_.2} parent=15 // pred_fallthru
        _
    $region16: #{_lambda_.2} parent=5 // pred_fallthru
      _
    %p158 = scmp.le.s32.totalorder 1, %s8
    %p159 = scmp.lt.s32.totalorder %s8, 3
    %p160 = pnand %p158, %p159
    %p161 = pneg %p160
    // Predicated region
    $region25: #{_lambda_.2} parent=5 // pred_check
      _
    $region26: #{_lambda_.2} parent=5 // pred_check_branch
      %163 = sbr.rel (%p160) target = $region28
    $region27: #{_lambda_.2} parent=5 // pred_region
      %s164 = ssub.s32 %s8, 1
      %s165 = smul.u32 2, %s19
      %p166 = scmp.lt.s32.totalorder %s18, 1
      %s167 = scalar_select %p166, %s18, 1
      %p168 = scmp.lt.s32.totalorder %s165, 1
      %s169 = scalar_select %p168, %s165, 1
      %s170 = smul.addr %s167, 2
      %s171 = sadd.s32 %s169, %s170
      %s172 = smul.addr %s171, 8
      %s173 = scalar_lea.vmem %s0, %s172
      %p174 = pneg %p55
      %p175 = pneg %p52
      %s176 = smul.u32 2, %s20
      %p177 = scmp.lt.s32.totalorder %s18, 1
      %s178 = scalar_select %p177, %s18, 1
      %p179 = scmp.lt.s32.totalorder %s176, 1
      %s180 = scalar_select %p179, %s176, 1
      %s181 = smul.addr %s178, 2
      %s182 = sadd.s32 %s180, %s181
      %s183 = smul.addr %s182, 8
      %s184 = scalar_lea.vmem %s1, %s183
      %p185 = pneg %p83
      %p186 = pneg %p80
      %p187 = pneg %p113
      %p188 = pneg %p110
      %s189 = smul.u32 2, %s19
      %p190 = scmp.lt.s32.totalorder %s18, 1
      %s191 = scalar_select %p190, %s18, 1
      %p192 = scmp.lt.s32.totalorder %s189, 1
      %s193 = scalar_select %p192, %s189, 1
      %p194 = scmp.lt.s32.totalorder %s20, 0
      %s195 = scalar_select %p194, %s20, 0
      %s196 = sadd.s32 %s195, %s193
      %s197 = smul.addr %s191, 2
      %s198 = sadd.s32 %s196, %s197
      %s199 = smul.addr %s198, 8
      %s200 = scalar_lea.vmem %s2, %s199
      %s201 = smul.u32 2, %s19
      %p202 = scmp.lt.s32.totalorder %s18, 1
      %s203 = scalar_select %p202, %s18, 1
      %p204 = scmp.lt.s32.totalorder %s201, 1
      %s205 = scalar_select %p204, %s201, 1
      %s206 = smul.addr %s203, 2
      %s207 = sadd.s32 %s205, %s206
      %s208 = smul.addr %s207, 8
      %s209 = scalar_lea.vmem %s0, %s208
      %s210 = smul.u32 2, %s19
      %s211 = smul.u32 2, %s20
      %p212 = scmp.lt.s32.totalorder %s18, 1
      %s213 = scalar_select %p212, %s18, 1
      %p214 = scmp.lt.s32.totalorder %s211, 1
      %s215 = scalar_select %p214, %s211, 1
      %s216 = smul.addr %s213, 2
      %s217 = sadd.s32 %s215, %s216
      %s218 = smul.addr %s217, 8
      %s219 = scalar_lea.vmem %s1, %s218
      %s220 = smul.u32 2, %s20
      %s221 = smul.u32 2, %s19
      %p222 = scmp.lt.s32.totalorder %s18, 1
      %s223 = scalar_select %p222, %s18, 1
      %p224 = scmp.lt.s32.totalorder %s221, 1
      %s225 = scalar_select %p224, %s221, 1
      %p226 = scmp.lt.s32.totalorder %s20, 0
      %s227 = scalar_select %p226, %s20, 0
      %s228 = sadd.s32 %s227, %s225
      %s229 = smul.addr %s223, 2
      %s230 = sadd.s32 %s228, %s229
      %s231 = smul.addr %s230, 8
      %s232 = scalar_lea.vmem %s2, %s231
      %s233 = smul.u32 2, %s19
      %v234 = vld [vmem:[%s209] sm:$0xff]
      %v235 = vld [vmem:[%s209 + $0x8] sm:$0xff]
      %v236 = vld [vmem:[%s219] sm:$0xff]
      %v237 = vld [vmem:[%s219 + $0x8] sm:$0xff]
      %v238 = vmul.f32 %v234, %v234
      %v239 = vmul.f32 %v235, %v235
      %vm240 = vcmask 64512
      %v241 = vsel %vm240, %v238, 0.0
      %242 = vadd.xlane.f32.xlu0 %v241
      %v243 = vpop.xlane.xlu0 %242
      %v244 = vsel %vm240, %v239, 0.0
      %245 = vadd.xlane.f32.xlu0 %v244
      %v246 = vpop.xlane.xlu0 %245
      %v247 = vmul.f32 %v236, %v236
      %v248 = vmul.f32 %v237, %v237
      %v249 = vsel %vm240, %v247, 0.0
      %250 = vadd.xlane.f32.xlu0 %v249
      %v251 = vpop.xlane.xlu0 %250
      %v252 = vsel %vm240, %v248, 0.0
      %253 = vadd.xlane.f32.xlu0 %v252
      %v254 = vpop.xlane.xlu0 %253
      %v256 = vsel %vm240, %v234, 0
      %v259 = vsel %vm240, %v235, 0
      %v262 = vsel %vm240, %v236, 0
      %v265 = vsel %vm240, %v237, 0
      %267 = vmatprep.subr.mxu0 0.0
      %268 = vmatpush1.xpose.msra.mxu0 0.0
      %269 = vmatprep.subr.mxu0 0.0
      %270 = vmatpush1.xpose.msra.mxu0 0.0
      %271 = vmatprep.subr.mxu0 0.0
      %272 = vmatpush1.xpose.msra.mxu0 0.0
      %273 = vmatprep.subr.mxu0 0.0
      %274 = vmatpush1.xpose.msra.mxu0 0.0
      %275 = vmatprep.subr.mxu0 0.0
      %276 = vmatpush1.xpose.msra.mxu0 0.0
      %277 = vmatprep.subr.mxu0 0.0
      %278 = vmatpush1.xpose.msra.mxu0 0.0
      %279 = vmatprep.subr.mxu0 0.0
      %280 = vmatpush1.xpose.msra.mxu0 0.0
      %281 = vmatprep.subr.mxu0 0.0
      %282 = vmatpush1.xpose.msra.mxu0 0.0
      %283 = vmatprep.subr.mxu0 0.0
      %284 = vmatpush1.xpose.msra.mxu0 0.0
      %285 = vmatprep.subr.mxu0 0.0
      %286 = vmatpush1.xpose.msra.mxu0 0.0
      %287 = vmatprep.subr.mxu0 0.0
      %288 = vmatpush1.xpose.msra.mxu0 0.0
      %289 = vmatprep.subr.mxu0 0.0
      %290 = vmatpush1.xpose.msra.mxu0 0.0
      %291 = vmatprep.subr.mxu0 0.0
      %292 = vmatpush1.xpose.msra.mxu0 0.0
      %293 = vmatprep.subr.mxu0 0.0
      %294 = vmatpush1.xpose.msra.mxu0 0.0
      %295 = vmatprep.subr.mxu0 0.0
      %v296 = vand.u32 %v265, 4294901760
      %297 = vmatpush1.xpose.msra.mxu0 %v296
      %298 = vmatprep.subr.mxu0 0.0
      %v299 = vand.u32 %v262, 4294901760
      %300 = vmatpush1.xpose.msra.mxu0 %v299
      %301 = vmatprep.subr.mxu0 0.0
      %302 = vmatpush2.xpose.msra.mxu0 0.0
      %303 = vmatprep.subr.mxu0 0.0
      %304 = vmatpush2.xpose.msra.mxu0 0.0
      %305 = vmatprep.subr.mxu0 0.0
      %306 = vmatpush2.xpose.msra.mxu0 0.0
      %307 = vmatprep.subr.mxu0 0.0
      %308 = vmatpush2.xpose.msra.mxu0 0.0
      %309 = vmatprep.subr.mxu0 0.0
      %310 = vmatpush2.xpose.msra.mxu0 0.0
      %311 = vmatprep.subr.mxu0 0.0
      %312 = vmatpush2.xpose.msra.mxu0 0.0
      %313 = vmatprep.subr.mxu0 0.0
      %314 = vmatpush2.xpose.msra.mxu0 0.0
      %315 = vmatprep.subr.mxu0 0.0
      %316 = vmatpush2.xpose.msra.mxu0 0.0
      %317 = vmatprep.subr.mxu0 0.0
      %318 = vmatpush2.xpose.msra.mxu0 0.0
      %319 = vmatprep.subr.mxu0 0.0
      %320 = vmatpush2.xpose.msra.mxu0 0.0
      %321 = vmatprep.subr.mxu0 0.0
      %322 = vmatpush2.xpose.msra.mxu0 0.0
      %323 = vmatprep.subr.mxu0 0.0
      %324 = vmatpush2.xpose.msra.mxu0 0.0
      %325 = vmatprep.subr.mxu0 0.0
      %326 = vmatpush2.xpose.msra.mxu0 0.0
      %327 = vmatprep.subr.mxu0 0.0
      %328 = vmatpush2.xpose.msra.mxu0 0.0
      %329 = vmatprep.subr.mxu0 0.0
      %330 = vmatpush2.xpose.msra.mxu0 0.0
      %331 = vmatprep.subr.mxu0 0.0
      %332 = vmatpush2.xpose.msra.mxu0 0.0
      %333 = vmatprep.mubr.f32.mxu0 0.0
      %v334 = vand.u32 %v256, 4294901760
      %v335 = vsub.f32 %v256, %v334
      %v336 = vand.u32 %v335, 4294901760
      %v337 = vsub.f32 %v335, %v336
      %v338 = vand.u32 %v337, 4294901760
      %339 = vmatmul.mubr.f32.gmra.mxu0 %v338
      %v340 = vpop.f32.mrf.mxu0
      %v341 = vadd.f32 0.0, %v340
      %v342 = vpop.f32.mrf.mxu0
      %343 = vmatprep.mubr.f32.mxu0 0.0
      %v344 = vand.u32 %v259, 4294901760
      %v345 = vsub.f32 %v259, %v344
      %v346 = vand.u32 %v345, 4294901760
      %v347 = vsub.f32 %v345, %v346
      %v348 = vand.u32 %v347, 4294901760
      %349 = vmatmul.mubr.f32.gmra.mxu0 %v348
      %v350 = vpop.f32.mrf.mxu0
      %v351 = vadd.f32 0.0, %v350
      %v352 = vpop.f32.mrf.mxu0
      %353 = vdwg.mxu0
      %354 = vmatprep.subr.mxu0 0.0
      %355 = vmatpush1.xpose.msra.mxu0 0.0
      %356 = vmatprep.subr.mxu0 0.0
      %357 = vmatpush1.xpose.msra.mxu0 0.0
      %358 = vmatprep.subr.mxu0 0.0
      %359 = vmatpush1.xpose.msra.mxu0 0.0
      %360 = vmatprep.subr.mxu0 0.0
      %361 = vmatpush1.xpose.msra.mxu0 0.0
      %362 = vmatprep.subr.mxu0 0.0
      %363 = vmatpush1.xpose.msra.mxu0 0.0
      %364 = vmatprep.subr.mxu0 0.0
      %365 = vmatpush1.xpose.msra.mxu0 0.0
      %366 = vmatprep.subr.mxu0 0.0
      %367 = vmatpush1.xpose.msra.mxu0 0.0
      %368 = vmatprep.subr.mxu0 0.0
      %369 = vmatpush1.xpose.msra.mxu0 0.0
      %370 = vmatprep.subr.mxu0 0.0
      %371 = vmatpush1.xpose.msra.mxu0 0.0
      %372 = vmatprep.subr.mxu0 0.0
      %373 = vmatpush1.xpose.msra.mxu0 0.0
      %374 = vmatprep.subr.mxu0 0.0
      %375 = vmatpush1.xpose.msra.mxu0 0.0
      %376 = vmatprep.subr.mxu0 0.0
      %377 = vmatpush1.xpose.msra.mxu0 0.0
      %378 = vmatprep.subr.mxu0 0.0
      %379 = vmatpush1.xpose.msra.mxu0 0.0
      %380 = vmatprep.subr.mxu0 0.0
      %381 = vmatpush1.xpose.msra.mxu0 0.0
      %382 = vmatprep.subr.mxu0 0.0
      %v383 = vand.u32 %v265, 4294901760
      %v384 = vsub.f32 %v265, %v383
      %v385 = vand.u32 %v384, 4294901760
      %v386 = vsub.f32 %v384, %v385
      %v387 = vand.u32 %v386, 4294901760
      %388 = vmatpush1.xpose.msra.mxu0 %v387
      %389 = vmatprep.subr.mxu0 0.0
      %v390 = vand.u32 %v262, 4294901760
      %v391 = vsub.f32 %v262, %v390
      %v392 = vand.u32 %v391, 4294901760
      %v393 = vsub.f32 %v391, %v392
      %v394 = vand.u32 %v393, 4294901760
      %395 = vmatpush1.xpose.msra.mxu0 %v394
      %396 = vmatprep.subr.mxu0 0.0
      %397 = vmatpush2.xpose.msra.mxu0 0.0
      %398 = vmatprep.subr.mxu0 0.0
      %399 = vmatpush2.xpose.msra.mxu0 0.0
      %400 = vmatprep.subr.mxu0 0.0
      %401 = vmatpush2.xpose.msra.mxu0 0.0
      %402 = vmatprep.subr.mxu0 0.0
      %403 = vmatpush2.xpose.msra.mxu0 0.0
      %404 = vmatprep.subr.mxu0 0.0
      %405 = vmatpush2.xpose.msra.mxu0 0.0
      %406 = vmatprep.subr.mxu0 0.0
      %407 = vmatpush2.xpose.msra.mxu0 0.0
      %408 = vmatprep.subr.mxu0 0.0
      %409 = vmatpush2.xpose.msra.mxu0 0.0
      %410 = vmatprep.subr.mxu0 0.0
      %411 = vmatpush2.xpose.msra.mxu0 0.0
      %412 = vmatprep.subr.mxu0 0.0
      %413 = vmatpush2.xpose.msra.mxu0 0.0
      %414 = vmatprep.subr.mxu0 0.0
      %415 = vmatpush2.xpose.msra.mxu0 0.0
      %416 = vmatprep.subr.mxu0 0.0
      %417 = vmatpush2.xpose.msra.mxu0 0.0
      %418 = vmatprep.subr.mxu0 0.0
      %419 = vmatpush2.xpose.msra.mxu0 0.0
      %420 = vmatprep.subr.mxu0 0.0
      %421 = vmatpush2.xpose.msra.mxu0 0.0
      %422 = vmatprep.subr.mxu0 0.0
      %423 = vmatpush2.xpose.msra.mxu0 0.0
      %424 = vmatprep.subr.mxu0 0.0
      %425 = vmatpush2.xpose.msra.mxu0 0.0
      %426 = vmatprep.subr.mxu0 0.0
      %427 = vmatpush2.xpose.msra.mxu0 0.0
      %428 = vmatprep.mubr.f32.mxu0 0.0
      %v429 = vand.u32 %v256, 4294901760
      %430 = vmatmul.mubr.f32.gmra.mxu0 %v429
      %v431 = vpop.f32.mrf.mxu0
      %v432 = vadd.f32 %v341, %v431
      %v433 = vpop.f32.mrf.mxu0
      %434 = vmatprep.mubr.f32.mxu0 0.0
      %v435 = vand.u32 %v259, 4294901760
      %436 = vmatmul.mubr.f32.gmra.mxu0 %v435
      %v437 = vpop.f32.mrf.mxu0
      %v438 = vadd.f32 %v351, %v437
      %v439 = vpop.f32.mrf.mxu0
      %440 = vdwg.mxu0
      %441 = vmatprep.subr.mxu0 0.0
      %442 = vmatpush1.xpose.msra.mxu0 0.0
      %443 = vmatprep.subr.mxu0 0.0
      %444 = vmatpush1.xpose.msra.mxu0 0.0
      %445 = vmatprep.subr.mxu0 0.0
      %446 = vmatpush1.xpose.msra.mxu0 0.0
      %447 = vmatprep.subr.mxu0 0.0
      %448 = vmatpush1.xpose.msra.mxu0 0.0
      %449 = vmatprep.subr.mxu0 0.0
      %450 = vmatpush1.xpose.msra.mxu0 0.0
      %451 = vmatprep.subr.mxu0 0.0
      %452 = vmatpush1.xpose.msra.mxu0 0.0
      %453 = vmatprep.subr.mxu0 0.0
      %454 = vmatpush1.xpose.msra.mxu0 0.0
      %455 = vmatprep.subr.mxu0 0.0
      %456 = vmatpush1.xpose.msra.mxu0 0.0
      %457 = vmatprep.subr.mxu0 0.0
      %458 = vmatpush1.xpose.msra.mxu0 0.0
      %459 = vmatprep.subr.mxu0 0.0
      %460 = vmatpush1.xpose.msra.mxu0 0.0
      %461 = vmatprep.subr.mxu0 0.0
      %462 = vmatpush1.xpose.msra.mxu0 0.0
      %463 = vmatprep.subr.mxu0 0.0
      %464 = vmatpush1.xpose.msra.mxu0 0.0
      %465 = vmatprep.subr.mxu0 0.0
      %466 = vmatpush1.xpose.msra.mxu0 0.0
      %467 = vmatprep.subr.mxu0 0.0
      %468 = vmatpush1.xpose.msra.mxu0 0.0
      %469 = vmatprep.subr.mxu0 0.0
      %v470 = vand.u32 %v265, 4294901760
      %v471 = vsub.f32 %v265, %v470
      %472 = vmatpush1.xpose.msra.mxu0 %v471
      %473 = vmatprep.subr.mxu0 0.0
      %v474 = vand.u32 %v262, 4294901760
      %v475 = vsub.f32 %v262, %v474
      %476 = vmatpush1.xpose.msra.mxu0 %v475
      %477 = vmatprep.subr.mxu0 0.0
      %478 = vmatpush2.xpose.msra.mxu0 0.0
      %479 = vmatprep.subr.mxu0 0.0
      %480 = vmatpush2.xpose.msra.mxu0 0.0
      %481 = vmatprep.subr.mxu0 0.0
      %482 = vmatpush2.xpose.msra.mxu0 0.0
      %483 = vmatprep.subr.mxu0 0.0
      %484 = vmatpush2.xpose.msra.mxu0 0.0
      %485 = vmatprep.subr.mxu0 0.0
      %486 = vmatpush2.xpose.msra.mxu0 0.0
      %487 = vmatprep.subr.mxu0 0.0
      %488 = vmatpush2.xpose.msra.mxu0 0.0
      %489 = vmatprep.subr.mxu0 0.0
      %490 = vmatpush2.xpose.msra.mxu0 0.0
      %491 = vmatprep.subr.mxu0 0.0
      %492 = vmatpush2.xpose.msra.mxu0 0.0
      %493 = vmatprep.subr.mxu0 0.0
      %494 = vmatpush2.xpose.msra.mxu0 0.0
      %495 = vmatprep.subr.mxu0 0.0
      %496 = vmatpush2.xpose.msra.mxu0 0.0
      %497 = vmatprep.subr.mxu0 0.0
      %498 = vmatpush2.xpose.msra.mxu0 0.0
      %499 = vmatprep.subr.mxu0 0.0
      %500 = vmatpush2.xpose.msra.mxu0 0.0
      %501 = vmatprep.subr.mxu0 0.0
      %502 = vmatpush2.xpose.msra.mxu0 0.0
      %503 = vmatprep.subr.mxu0 0.0
      %504 = vmatpush2.xpose.msra.mxu0 0.0
      %505 = vmatprep.subr.mxu0 0.0
      %506 = vmatpush2.xpose.msra.mxu0 0.0
      %507 = vmatprep.subr.mxu0 0.0
      %508 = vmatpush2.xpose.msra.mxu0 0.0
      %509 = vmatprep.mubr.f32.mxu0 0.0
      %v510 = vand.u32 %v256, 4294901760
      %v511 = vsub.f32 %v256, %v510
      %512 = vmatmul.mubr.f32.gmra.mxu0 %v511
      %v513 = vpop.f32.mrf.mxu0
      %v514 = vadd.f32 %v432, %v513
      %v515 = vpop.f32.mrf.mxu0
      %516 = vmatprep.mubr.f32.mxu0 0.0
      %v517 = vand.u32 %v259, 4294901760
      %v518 = vsub.f32 %v259, %v517
      %519 = vmatmul.mubr.f32.gmra.mxu0 %v518
      %v520 = vpop.f32.mrf.mxu0
      %v521 = vadd.f32 %v438, %v520
      %v522 = vpop.f32.mrf.mxu0
      %523 = vdwg.mxu0
      %524 = vmatprep.subr.mxu0 0.0
      %525 = vmatpush1.xpose.msra.mxu0 0.0
      %526 = vmatprep.subr.mxu0 0.0
      %527 = vmatpush1.xpose.msra.mxu0 0.0
      %528 = vmatprep.subr.mxu0 0.0
      %529 = vmatpush1.xpose.msra.mxu0 0.0
      %530 = vmatprep.subr.mxu0 0.0
      %531 = vmatpush1.xpose.msra.mxu0 0.0
      %532 = vmatprep.subr.mxu0 0.0
      %533 = vmatpush1.xpose.msra.mxu0 0.0
      %534 = vmatprep.subr.mxu0 0.0
      %535 = vmatpush1.xpose.msra.mxu0 0.0
      %536 = vmatprep.subr.mxu0 0.0
      %537 = vmatpush1.xpose.msra.mxu0 0.0
      %538 = vmatprep.subr.mxu0 0.0
      %539 = vmatpush1.xpose.msra.mxu0 0.0
      %540 = vmatprep.subr.mxu0 0.0
      %541 = vmatpush1.xpose.msra.mxu0 0.0
      %542 = vmatprep.subr.mxu0 0.0
      %543 = vmatpush1.xpose.msra.mxu0 0.0
      %544 = vmatprep.subr.mxu0 0.0
      %545 = vmatpush1.xpose.msra.mxu0 0.0
      %546 = vmatprep.subr.mxu0 0.0
      %547 = vmatpush1.xpose.msra.mxu0 0.0
      %548 = vmatprep.subr.mxu0 0.0
      %549 = vmatpush1.xpose.msra.mxu0 0.0
      %550 = vmatprep.subr.mxu0 0.0
      %551 = vmatpush1.xpose.msra.mxu0 0.0
      %552 = vmatprep.subr.mxu0 0.0
      %v553 = vand.u32 %v265, 4294901760
      %554 = vmatpush1.xpose.msra.mxu0 %v553
      %555 = vmatprep.subr.mxu0 0.0
      %v556 = vand.u32 %v262, 4294901760
      %557 = vmatpush1.xpose.msra.mxu0 %v556
      %558 = vmatprep.subr.mxu0 0.0
      %559 = vmatpush2.xpose.msra.mxu0 0.0
      %560 = vmatprep.subr.mxu0 0.0
      %561 = vmatpush2.xpose.msra.mxu0 0.0
      %562 = vmatprep.subr.mxu0 0.0
      %563 = vmatpush2.xpose.msra.mxu0 0.0
      %564 = vmatprep.subr.mxu0 0.0
      %565 = vmatpush2.xpose.msra.mxu0 0.0
      %566 = vmatprep.subr.mxu0 0.0
      %567 = vmatpush2.xpose.msra.mxu0 0.0
      %568 = vmatprep.subr.mxu0 0.0
      %569 = vmatpush2.xpose.msra.mxu0 0.0
      %570 = vmatprep.subr.mxu0 0.0
      %571 = vmatpush2.xpose.msra.mxu0 0.0
      %572 = vmatprep.subr.mxu0 0.0
      %573 = vmatpush2.xpose.msra.mxu0 0.0
      %574 = vmatprep.subr.mxu0 0.0
      %575 = vmatpush2.xpose.msra.mxu0 0.0
      %576 = vmatprep.subr.mxu0 0.0
      %577 = vmatpush2.xpose.msra.mxu0 0.0
      %578 = vmatprep.subr.mxu0 0.0
      %579 = vmatpush2.xpose.msra.mxu0 0.0
      %580 = vmatprep.subr.mxu0 0.0
      %581 = vmatpush2.xpose.msra.mxu0 0.0
      %582 = vmatprep.subr.mxu0 0.0
      %583 = vmatpush2.xpose.msra.mxu0 0.0
      %584 = vmatprep.subr.mxu0 0.0
      %585 = vmatpush2.xpose.msra.mxu0 0.0
      %586 = vmatprep.subr.mxu0 0.0
      %587 = vmatpush2.xpose.msra.mxu0 0.0
      %588 = vmatprep.subr.mxu0 0.0
      %589 = vmatpush2.xpose.msra.mxu0 0.0
      %590 = vmatprep.mubr.f32.mxu0 0.0
      %v591 = vand.u32 %v256, 4294901760
      %v592 = vsub.f32 %v256, %v591
      %v593 = vand.u32 %v592, 4294901760
      %594 = vmatmul.mubr.f32.gmra.mxu0 %v593
      %v595 = vpop.f32.mrf.mxu0
      %v596 = vadd.f32 %v514, %v595
      %v597 = vpop.f32.mrf.mxu0
      %598 = vmatprep.mubr.f32.mxu0 0.0
      %v599 = vand.u32 %v259, 4294901760
      %v600 = vsub.f32 %v259, %v599
      %v601 = vand.u32 %v600, 4294901760
      %602 = vmatmul.mubr.f32.gmra.mxu0 %v601
      %v603 = vpop.f32.mrf.mxu0
      %v604 = vadd.f32 %v521, %v603
      %v605 = vpop.f32.mrf.mxu0
      %606 = vdwg.mxu0
      %607 = vmatprep.subr.mxu0 0.0
      %608 = vmatpush1.xpose.msra.mxu0 0.0
      %609 = vmatprep.subr.mxu0 0.0
      %610 = vmatpush1.xpose.msra.mxu0 0.0
      %611 = vmatprep.subr.mxu0 0.0
      %612 = vmatpush1.xpose.msra.mxu0 0.0
      %613 = vmatprep.subr.mxu0 0.0
      %614 = vmatpush1.xpose.msra.mxu0 0.0
      %615 = vmatprep.subr.mxu0 0.0
      %616 = vmatpush1.xpose.msra.mxu0 0.0
      %617 = vmatprep.subr.mxu0 0.0
      %618 = vmatpush1.xpose.msra.mxu0 0.0
      %619 = vmatprep.subr.mxu0 0.0
      %620 = vmatpush1.xpose.msra.mxu0 0.0
      %621 = vmatprep.subr.mxu0 0.0
      %622 = vmatpush1.xpose.msra.mxu0 0.0
      %623 = vmatprep.subr.mxu0 0.0
      %624 = vmatpush1.xpose.msra.mxu0 0.0
      %625 = vmatprep.subr.mxu0 0.0
      %626 = vmatpush1.xpose.msra.mxu0 0.0
      %627 = vmatprep.subr.mxu0 0.0
      %628 = vmatpush1.xpose.msra.mxu0 0.0
      %629 = vmatprep.subr.mxu0 0.0
      %630 = vmatpush1.xpose.msra.mxu0 0.0
      %631 = vmatprep.subr.mxu0 0.0
      %632 = vmatpush1.xpose.msra.mxu0 0.0
      %633 = vmatprep.subr.mxu0 0.0
      %634 = vmatpush1.xpose.msra.mxu0 0.0
      %635 = vmatprep.subr.mxu0 0.0
      %v636 = vand.u32 %v265, 4294901760
      %v637 = vsub.f32 %v265, %v636
      %v638 = vand.u32 %v637, 4294901760
      %639 = vmatpush1.xpose.msra.mxu0 %v638
      %640 = vmatprep.subr.mxu0 0.0
      %v641 = vand.u32 %v262, 4294901760
      %v642 = vsub.f32 %v262, %v641
      %v643 = vand.u32 %v642, 4294901760
      %644 = vmatpush1.xpose.msra.mxu0 %v643
      %645 = vmatprep.subr.mxu0 0.0
      %646 = vmatpush2.xpose.msra.mxu0 0.0
      %647 = vmatprep.subr.mxu0 0.0
      %648 = vmatpush2.xpose.msra.mxu0 0.0
      %649 = vmatprep.subr.mxu0 0.0
      %650 = vmatpush2.xpose.msra.mxu0 0.0
      %651 = vmatprep.subr.mxu0 0.0
      %652 = vmatpush2.xpose.msra.mxu0 0.0
      %653 = vmatprep.subr.mxu0 0.0
      %654 = vmatpush2.xpose.msra.mxu0 0.0
      %655 = vmatprep.subr.mxu0 0.0
      %656 = vmatpush2.xpose.msra.mxu0 0.0
      %657 = vmatprep.subr.mxu0 0.0
      %658 = vmatpush2.xpose.msra.mxu0 0.0
      %659 = vmatprep.subr.mxu0 0.0
      %660 = vmatpush2.xpose.msra.mxu0 0.0
      %661 = vmatprep.subr.mxu0 0.0
      %662 = vmatpush2.xpose.msra.mxu0 0.0
      %663 = vmatprep.subr.mxu0 0.0
      %664 = vmatpush2.xpose.msra.mxu0 0.0
      %665 = vmatprep.subr.mxu0 0.0
      %666 = vmatpush2.xpose.msra.mxu0 0.0
      %667 = vmatprep.subr.mxu0 0.0
      %668 = vmatpush2.xpose.msra.mxu0 0.0
      %669 = vmatprep.subr.mxu0 0.0
      %670 = vmatpush2.xpose.msra.mxu0 0.0
      %671 = vmatprep.subr.mxu0 0.0
      %672 = vmatpush2.xpose.msra.mxu0 0.0
      %673 = vmatprep.subr.mxu0 0.0
      %674 = vmatpush2.xpose.msra.mxu0 0.0
      %675 = vmatprep.subr.mxu0 0.0
      %676 = vmatpush2.xpose.msra.mxu0 0.0
      %677 = vmatprep.mubr.f32.mxu0 0.0
      %v678 = vand.u32 %v256, 4294901760
      %679 = vmatmul.mubr.f32.gmra.mxu0 %v678
      %v680 = vpop.f32.mrf.mxu0
      %v681 = vadd.f32 %v596, %v680
      %v682 = vpop.f32.mrf.mxu0
      %683 = vmatprep.mubr.f32.mxu0 0.0
      %v684 = vand.u32 %v259, 4294901760
      %685 = vmatmul.mubr.f32.gmra.mxu0 %v684
      %v686 = vpop.f32.mrf.mxu0
      %v687 = vadd.f32 %v604, %v686
      %v688 = vpop.f32.mrf.mxu0
      %689 = vdwg.mxu0
      %690 = vmatprep.subr.mxu0 0.0
      %691 = vmatpush1.xpose.msra.mxu0 0.0
      %692 = vmatprep.subr.mxu0 0.0
      %693 = vmatpush1.xpose.msra.mxu0 0.0
      %694 = vmatprep.subr.mxu0 0.0
      %695 = vmatpush1.xpose.msra.mxu0 0.0
      %696 = vmatprep.subr.mxu0 0.0
      %697 = vmatpush1.xpose.msra.mxu0 0.0
      %698 = vmatprep.subr.mxu0 0.0
      %699 = vmatpush1.xpose.msra.mxu0 0.0
      %700 = vmatprep.subr.mxu0 0.0
      %701 = vmatpush1.xpose.msra.mxu0 0.0
      %702 = vmatprep.subr.mxu0 0.0
      %703 = vmatpush1.xpose.msra.mxu0 0.0
      %704 = vmatprep.subr.mxu0 0.0
      %705 = vmatpush1.xpose.msra.mxu0 0.0
      %706 = vmatprep.subr.mxu0 0.0
      %707 = vmatpush1.xpose.msra.mxu0 0.0
      %708 = vmatprep.subr.mxu0 0.0
      %709 = vmatpush1.xpose.msra.mxu0 0.0
      %710 = vmatprep.subr.mxu0 0.0
      %711 = vmatpush1.xpose.msra.mxu0 0.0
      %712 = vmatprep.subr.mxu0 0.0
      %713 = vmatpush1.xpose.msra.mxu0 0.0
      %714 = vmatprep.subr.mxu0 0.0
      %715 = vmatpush1.xpose.msra.mxu0 0.0
      %716 = vmatprep.subr.mxu0 0.0
      %717 = vmatpush1.xpose.msra.mxu0 0.0
      %718 = vmatprep.subr.mxu0 0.0
      %v719 = vand.u32 %v265, 4294901760
      %720 = vmatpush1.xpose.msra.mxu0 %v719
      %721 = vmatprep.subr.mxu0 0.0
      %v722 = vand.u32 %v262, 4294901760
      %723 = vmatpush1.xpose.msra.mxu0 %v722
      %724 = vmatprep.subr.mxu0 0.0
      %725 = vmatpush2.xpose.msra.mxu0 0.0
      %726 = vmatprep.subr.mxu0 0.0
      %727 = vmatpush2.xpose.msra.mxu0 0.0
      %728 = vmatprep.subr.mxu0 0.0
      %729 = vmatpush2.xpose.msra.mxu0 0.0
      %730 = vmatprep.subr.mxu0 0.0
      %731 = vmatpush2.xpose.msra.mxu0 0.0
      %732 = vmatprep.subr.mxu0 0.0
      %733 = vmatpush2.xpose.msra.mxu0 0.0
      %734 = vmatprep.subr.mxu0 0.0
      %735 = vmatpush2.xpose.msra.mxu0 0.0
      %736 = vmatprep.subr.mxu0 0.0
      %737 = vmatpush2.xpose.msra.mxu0 0.0
      %738 = vmatprep.subr.mxu0 0.0
      %739 = vmatpush2.xpose.msra.mxu0 0.0
      %740 = vmatprep.subr.mxu0 0.0
      %741 = vmatpush2.xpose.msra.mxu0 0.0
      %742 = vmatprep.subr.mxu0 0.0
      %743 = vmatpush2.xpose.msra.mxu0 0.0
      %744 = vmatprep.subr.mxu0 0.0
      %745 = vmatpush2.xpose.msra.mxu0 0.0
      %746 = vmatprep.subr.mxu0 0.0
      %747 = vmatpush2.xpose.msra.mxu0 0.0
      %748 = vmatprep.subr.mxu0 0.0
      %749 = vmatpush2.xpose.msra.mxu0 0.0
      %750 = vmatprep.subr.mxu0 0.0
      %751 = vmatpush2.xpose.msra.mxu0 0.0
      %752 = vmatprep.subr.mxu0 0.0
      %753 = vmatpush2.xpose.msra.mxu0 0.0
      %754 = vmatprep.subr.mxu0 0.0
      %755 = vmatpush2.xpose.msra.mxu0 0.0
      %756 = vmatprep.mubr.f32.mxu0 0.0
      %v757 = vand.u32 %v256, 4294901760
      %758 = vmatmul.mubr.f32.gmra.mxu0 %v757
      %v759 = vpop.f32.mrf.mxu0
      %v760 = vadd.f32 %v681, %v759
      %v761 = vpop.f32.mrf.mxu0
      %762 = vmatprep.mubr.f32.mxu0 0.0
      %v763 = vand.u32 %v259, 4294901760
      %764 = vmatmul.mubr.f32.gmra.mxu0 %v763
      %v765 = vpop.f32.mrf.mxu0
      %v766 = vadd.f32 %v687, %v765
      %v767 = vpop.f32.mrf.mxu0
      %768 = vdwg.mxu0
      %v769 = vmul.f32 %v760, 2.0
      %v770 = vmul.f32 %v766, 2.0
      %v771 = vsub.f32 %v769, %v243
      %v772 = vsub.f32 %v770, %v246
      %773 = vxpose.xlu0.b32.start [1/16] %v251, 128
      %774 = vxpose.xlu0.b32.cont [2/16] %v254, 128
      %775 = vxpose.xlu0.b32.cont [3/16] 0.0, 128
      %776 = vxpose.xlu0.b32.cont [4/16] 0.0, 128
      %777 = vxpose.xlu0.b32.cont [5/16] 0.0, 128
      %778 = vxpose.xlu0.b32.cont [6/16] 0.0, 128
      %779 = vxpose.xlu0.b32.cont [7/16] 0.0, 128
      %780 = vxpose.xlu0.b32.cont [8/16] 0.0, 128
      %781 = vxpose.xlu0.b32.cont [9/16] 0.0, 128
      %782 = vxpose.xlu0.b32.cont [10/16] 0.0, 128
      %783 = vxpose.xlu0.b32.cont [11/16] 0.0, 128
      %784 = vxpose.xlu0.b32.cont [12/16] 0.0, 128
      %785 = vxpose.xlu0.b32.cont [13/16] 0.0, 128
      %786 = vxpose.xlu0.b32.cont [14/16] 0.0, 128
      %787 = vxpose.xlu0.b32.cont [15/16] 0.0, 128
      %788 = vxpose.xlu0.b32.end [16/16] 0.0, 128
      %v789 = vpop.trf.xlu0
      %v790 = vpop.trf.xlu0
      %v791 = vpop.trf.xlu0
      %v792 = vpop.trf.xlu0
      %v793 = vpop.trf.xlu0
      %v794 = vpop.trf.xlu0
      %v795 = vpop.trf.xlu0
      %v796 = vpop.trf.xlu0
      %v797 = vpop.trf.xlu0
      %v798 = vpop.trf.xlu0
      %v799 = vpop.trf.xlu0
      %v800 = vpop.trf.xlu0
      %v801 = vpop.trf.xlu0
      %v802 = vpop.trf.xlu0
      %v803 = vpop.trf.xlu0
      %v804 = vpop.trf.xlu0
      %v805 = vlaneseq
      %v806 = vshrl.u32 %v805, 7
      %v807 = vsub.s32 0, %v806
      %v808 = vrot.slane %v789, %v807
      %v809 = vsub.f32 %v771, %v808
      %v810 = vsub.f32 %v772, %v808
      %vm811 = vcmask 130048
      %812 = vst.msk [vmem:[%s232] sm:$0xff] %vm811, %v809
      %813 = vst.msk [vmem:[%s232 + $0x8] sm:$0xff] %vm811, %v810
      %s814 = smul.u32 2, %s19
      %p815 = scmp.lt.s32.totalorder %s18, 1
      %s816 = scalar_select %p815, %s18, 1
      %p817 = scmp.lt.s32.totalorder %s814, 1
      %s818 = scalar_select %p817, %s814, 1
      %p819 = scmp.lt.s32.totalorder %s20, 0
      %s820 = scalar_select %p819, %s20, 0
      %s821 = sadd.s32 %s820, %s818
      %s822 = smul.addr %s816, 2
      %s823 = sadd.s32 %s821, %s822
      %s824 = smul.addr %s823, 8
      %s825 = scalar_lea.vmem %s2, %s824
      // Predicated region
      $region29: #{_lambda_.2} parent=27 // pred_check
        %p826 = pneg %p110
      $region30: #{_lambda_.2} parent=27 // pred_check_branch
        %828 = sbr.rel (%p826) target = $region32
      $region31: #{_lambda_.2} parent=27 // pred_region
        %s829 = smul.u32 2, %s19
      $region32: #{_lambda_.2} parent=27 // pred_fallthru
        _
    $region28: #{_lambda_.2} parent=5 // pred_fallthru
      _
    %p830 = scmp.le.s32.totalorder 2, %s8
    // Predicated region
    $region33: #{_lambda_.2} parent=5 // pred_check
      %p831 = pneg %p830
    $region34: #{_lambda_.2} parent=5 // pred_check_branch
      %833 = sbr.rel (%p831) target = $region36
    $region35: #{_lambda_.2} parent=5 // pred_region
      %s834 = ssub.s32 %s8, 2
      // Predicated region
      $region37: #{_lambda_.2} parent=35 // pred_check
        %p835 = pneg %p116
      $region38: #{_lambda_.2} parent=35 // pred_check_branch
        %837 = sbr.rel (%p835) target = $region40
      $region39: #{_lambda_.2} parent=35 // pred_region
        %s838 = smul.u32 2, %s22
        %p839 = scmp.lt.s32.totalorder %s21, 1
        %s840 = scalar_select %p839, %s21, 1
        %p841 = scmp.lt.s32.totalorder %s838, 1
        %s842 = scalar_select %p841, %s838, 1
        %p843 = scmp.lt.s32.totalorder %s23, 0
        %s844 = scalar_select %p843, %s23, 0
        %s845 = sadd.s32 %s844, %s842
        %s846 = smul.addr %s840, 2
        %s847 = sadd.s32 %s845, %s846
        %s848 = smul.addr %s847, 8
        %s849 = scalar_lea.vmem %s2, %s848
      $region40: #{_lambda_.2} parent=35 // pred_fallthru
        _
    $region36: #{_lambda_.2} parent=5 // pred_fallthru
      _
  $region6: #{_lambda_.2} parent=0 // loop_footer
    %s12 = sadd.s32 1, %s8
  $region7: #{_lambda_.2} parent=0 // loop_footer_branch
    %7 = sbr.rel target = $region3
  $region8: #{_lambda_.2} parent=0 // loop_exit
    _

// kernel: _lambda_.3
$region0: #{_lambda_.3}
  #allocation0 [shape = 'u32[]', space=smem, size = 0x4, offset = 0x4, fixed_abs, tag = 'smem constant byte address 0x4 - core index']
  #allocation1 [shape = 'u32[144,128]{1,0:T(1,128)}', space=vmem, size = 0x12000, scoped, tag = 'internal scratch']
  #allocation2 [shape = 'f32[8,16,16]{2,1,0:T(8,128)}', space=vmem, size = 0x10000, scoped, tag = 'scratch operand']
  #allocation3 [shape = 'f32[1]{0:T(128)S(6)}', space=smem, size = 0x200, scoped, tag = 'scoped memory for _lambda_.3']
  %s0 = inlined_call_operand.vmem [shape: f32[2,8,16], index: 0, kind: input, shape index: {}]
  %s1 = inlined_call_operand.vmem [shape: f32[2,8,8,16], index: 1, kind: input, shape index: {}]
  %s2 = inlined_call_operand.vmem [shape: f32[2,8,16], index: 2, kind: input, shape index: {}]
  %s3 = inlined_call_operand.vmem [shape: f32[2,1,16], index: 3, kind: input, shape index: {}]
  %s4 = inlined_call_operand.<no memory space> [shape: f32[1], index: 4, kind: input, shape index: {}]
  %s5 = inlined_call_operand.vmem [shape: f32[8,16], index: 5, kind: input, shape index: {}]
  %s6 = inlined_call_operand.vmem [shape: f32[8,16], index: 6, kind: input, shape index: {}]
  %s7 = inlined_call_operand.vmem [shape: f32[16,8], index: 7, kind: input, shape index: {}]
  %s8 = inlined_call_operand.vmem [shape: f32[8,16,16], index: 8, kind: input, shape index: {}, may-alias: {8,11}]
  %s9 = inlined_call_operand.vmem [shape: f32[8,16,16], index: 9, kind: input, shape index: {}, may-alias: {9,12}]
  %s10 = inlined_call_operand.vmem [shape: f32[16,16], index: 10, kind: input, shape index: {}]
  %s11 = inlined_call_operand.vmem [shape: f32[8,16,16], index: 11, kind: input, shape index: {}, may-alias: {8,11}]
  %s12 = inlined_call_operand.vmem [shape: f32[8,16,16], index: 12, kind: input, shape index: {}, may-alias: {9,12}]
  %s13 = inlined_call_operand.hbm [shape: f32[2,16,16], index: 13, kind: output, shape index: {}]
  %s14 = sld [smem:[#allocation0]]
  $region85: #{_lambda_.3} parent=0
    _
  %s16 = ssub.s32 1, %s14
  %s17 = scalar_select 0, %s16, %s14
  %18 = sst [smem:[#allocation3]] %s4
  $region1: #{_lambda_.3} parent=0
    #allocation4 [shape = 'u8[16384]{0}', space=vmem, size = 0x4000, scoped, tag = 'output window, operand 0']
    #allocation5 [shape = 's32[2]{0}', space=sflag, size = 0x8, scoped, tag = 'scoped memory for _lambda_.3']
    %19 = vsyncpa [#allocation5], 0
    %s20 = scalar_lea.sflag [#allocation5], 1
    %21 = vsyncpa %s20, 0
    loop: start=0, step=1, limit=4
    $region2: #{_lambda_.3} parent=1 // loop_pre_header
      _
    $region3: #{_lambda_.3} parent=1 // loop_header
      %s23 = sphi 0, %s27
      %p24 = scmp.ge.s32.totalorder %s23, 4
      %s33 = sphi 0, %s35
      %s36 = sphi 0, %s33
      %s37 = sphi 0, %s36
      %s53 = sphi 0, %s37
      %s59 = sphi 0, %s61
      %s62 = sphi 0, %s59
      %s63 = sphi 0, %s62
      %s79 = sphi 0, %s63
      %s85 = sphi 0, %s87
      %s88 = sphi 0, %s85
      %s89 = sphi 0, %s88
      %s105 = sphi 0, %s89
      %s111 = sphi 0, %s113
      %s114 = sphi 0, %s111
      %s115 = sphi 0, %s114
      %s131 = sphi 0, %s115
      %s135 = sphi 0, %s135
      %s137 = sphi 0, %s135
      %s138 = sphi 0, %s137
      %s152 = sphi 0, %s138
      %s156 = sphi 0, %s156
      %s158 = sphi 0, %s156
      %s159 = sphi 0, %s158
      %s173 = sphi 0, %s159
      %s177 = sphi 0, %s177
      %s179 = sphi 0, %s177
      %s180 = sphi 0, %s179
      %s194 = sphi 0, %s180
      %s198 = sphi 0, %s198
      %s200 = sphi 0, %s198
      %s201 = sphi 0, %s200
      %s215 = sphi 0, %s201
      %s219 = sphi 0, %s219
      %s221 = sphi 0, %s219
      %s222 = sphi 0, %s221
      %s236 = sphi 0, %s222
      %s240 = sphi 0, %s240
      %s242 = sphi 0, %s240
      %s243 = sphi 0, %s242
      %s257 = sphi 0, %s243
      %s261 = sphi 0, %s261
      %s263 = sphi 0, %s261
      %s264 = sphi 0, %s263
      %s278 = sphi 0, %s264
      %s282 = sphi 0, %s282
      %s284 = sphi 0, %s282
      %s285 = sphi 0, %s284
      %s299 = sphi 0, %s285
      %s303 = sphi 0, %s303
      %s305 = sphi 0, %s303
      %s306 = sphi 0, %s305
      %s320 = sphi 0, %s306
      %s326 = sphi 0, %s328
      %s329 = sphi 0, %s326
      %s330 = sphi 0, %s329
      %s346 = sphi 0, %s330
    $region4: #{_lambda_.3} parent=1 // loop_header_branch
      %26 = sbr.rel (%p24) target = $region8
    $region5: #{_lambda_.3} parent=1 // loop_body
      %s28 = ssub.s32 %s23, 1
      %s29 = ssub.s32 %s23, 2
      %s30 = sadd.s32 %s23, 1
      %s31 = ssub.s32 %s23, %s30
      %p32 = scmp.eq.s32.totalorder %s31, 0
      %s34 = sadd.s32 %s33, 1
      %s35 = scalar_select %p32, %s33, %s34
      %p38 = pneg %p32
      %p39 = scmp.eq.s32.totalorder %s23, 1
      %p40 = por %p38, %p39
      %p41 = scmp.ne.s32.totalorder %s33, %s36
      %p42 = scmp.eq.s32.totalorder %s23, 0
      %p43 = por %p41, %p42
      %p44 = scmp.ne.s32.totalorder %s33, %s36
      %p45 = scmp.eq.s32.totalorder %s28, 1
      %p46 = por %p44, %p45
      %p47 = scmp.ne.s32.totalorder %s36, %s37
      %p48 = scmp.eq.s32.totalorder %s28, 0
      %p49 = por %p47, %p48
      %p50 = scmp.ne.s32.totalorder %s36, %s37
      %p51 = scmp.eq.s32.totalorder %s29, 1
      %p52 = por %p50, %p51
      %p54 = scmp.ne.s32.totalorder %s37, %s53
      %p55 = scmp.eq.s32.totalorder %s29, 0
      %p56 = por %p54, %p55
      %s57 = ssub.s32 %s23, %s30
      %p58 = scmp.eq.s32.totalorder %s57, 0
      %s60 = sadd.s32 %s59, 1
      %s61 = scalar_select %p58, %s59, %s60
      %p64 = pneg %p58
      %p65 = scmp.eq.s32.totalorder %s23, 1
      %p66 = por %p64, %p65
      %p67 = scmp.ne.s32.totalorder %s59, %s62
      %p68 = scmp.eq.s32.totalorder %s23, 0
      %p69 = por %p67, %p68
      %p70 = scmp.ne.s32.totalorder %s59, %s62
      %p71 = scmp.eq.s32.totalorder %s28, 1
      %p72 = por %p70, %p71
      %p73 = scmp.ne.s32.totalorder %s62, %s63
      %p74 = scmp.eq.s32.totalorder %s28, 0
      %p75 = por %p73, %p74
      %p76 = scmp.ne.s32.totalorder %s62, %s63
      %p77 = scmp.eq.s32.totalorder %s29, 1
      %p78 = por %p76, %p77
      %p80 = scmp.ne.s32.totalorder %s63, %s79
      %p81 = scmp.eq.s32.totalorder %s29, 0
      %p82 = por %p80, %p81
      %s83 = ssub.s32 %s23, %s30
      %p84 = scmp.eq.s32.totalorder %s83, 0
      %s86 = sadd.s32 %s85, 1
      %s87 = scalar_select %p84, %s85, %s86
      %p90 = pneg %p84
      %p91 = scmp.eq.s32.totalorder %s23, 1
      %p92 = por %p90, %p91
      %p93 = scmp.ne.s32.totalorder %s85, %s88
      %p94 = scmp.eq.s32.totalorder %s23, 0
      %p95 = por %p93, %p94
      %p96 = scmp.ne.s32.totalorder %s85, %s88
      %p97 = scmp.eq.s32.totalorder %s28, 1
      %p98 = por %p96, %p97
      %p99 = scmp.ne.s32.totalorder %s88, %s89
      %p100 = scmp.eq.s32.totalorder %s28, 0
      %p101 = por %p99, %p100
      %p102 = scmp.ne.s32.totalorder %s88, %s89
      %p103 = scmp.eq.s32.totalorder %s29, 1
      %p104 = por %p102, %p103
      %p106 = scmp.ne.s32.totalorder %s89, %s105
      %p107 = scmp.eq.s32.totalorder %s29, 0
      %p108 = por %p106, %p107
      %s109 = ssub.s32 %s23, %s30
      %p110 = scmp.eq.s32.totalorder %s109, 0
      %s112 = sadd.s32 %s111, 1
      %s113 = scalar_select %p110, %s111, %s112
      %p116 = pneg %p110
      %p117 = scmp.eq.s32.totalorder %s23, 1
      %p118 = por %p116, %p117
      %p119 = scmp.ne.s32.totalorder %s111, %s114
      %p120 = scmp.eq.s32.totalorder %s23, 0
      %p121 = por %p119, %p120
      %p122 = scmp.ne.s32.totalorder %s111, %s114
      %p123 = scmp.eq.s32.totalorder %s28, 1
      %p124 = por %p122, %p123
      %p125 = scmp.ne.s32.totalorder %s114, %s115
      %p126 = scmp.eq.s32.totalorder %s28, 0
      %p127 = por %p125, %p126
      %p128 = scmp.ne.s32.totalorder %s114, %s115
      %p129 = scmp.eq.s32.totalorder %s29, 1
      %p130 = por %p128, %p129
      %p132 = scmp.ne.s32.totalorder %s115, %s131
      %p133 = scmp.eq.s32.totalorder %s29, 0
      %p134 = por %p132, %p133
      %s136 = sadd.s32 %s135, 1
      %p139 = scmp.eq.s32.totalorder %s23, 1
      %p140 = scmp.ne.s32.totalorder %s135, %s137
      %p141 = scmp.eq.s32.totalorder %s23, 0
      %p142 = por %p140, %p141
      %p143 = scmp.ne.s32.totalorder %s135, %s137
      %p144 = scmp.eq.s32.totalorder %s28, 1
      %p145 = por %p143, %p144
      %p146 = scmp.ne.s32.totalorder %s137, %s138
      %p147 = scmp.eq.s32.totalorder %s28, 0
      %p148 = por %p146, %p147
      %p149 = scmp.ne.s32.totalorder %s137, %s138
      %p150 = scmp.eq.s32.totalorder %s29, 1
      %p151 = por %p149, %p150
      %p153 = scmp.ne.s32.totalorder %s138, %s152
      %p154 = scmp.eq.s32.totalorder %s29, 0
      %p155 = por %p153, %p154
      %s157 = sadd.s32 %s156, 1
      %p160 = scmp.eq.s32.totalorder %s23, 1
      %p161 = scmp.ne.s32.totalorder %s156, %s158
      %p162 = scmp.eq.s32.totalorder %s23, 0
      %p163 = por %p161, %p162
      %p164 = scmp.ne.s32.totalorder %s156, %s158
      %p165 = scmp.eq.s32.totalorder %s28, 1
      %p166 = por %p164, %p165
      %p167 = scmp.ne.s32.totalorder %s158, %s159
      %p168 = scmp.eq.s32.totalorder %s28, 0
      %p169 = por %p167, %p168
      %p170 = scmp.ne.s32.totalorder %s158, %s159
      %p171 = scmp.eq.s32.totalorder %s29, 1
      %p172 = por %p170, %p171
      %p174 = scmp.ne.s32.totalorder %s159, %s173
      %p175 = scmp.eq.s32.totalorder %s29, 0
      %p176 = por %p174, %p175
      %s178 = sadd.s32 %s177, 1
      %p181 = scmp.eq.s32.totalorder %s23, 1
      %p182 = scmp.ne.s32.totalorder %s177, %s179
      %p183 = scmp.eq.s32.totalorder %s23, 0
      %p184 = por %p182, %p183
      %p185 = scmp.ne.s32.totalorder %s177, %s179
      %p186 = scmp.eq.s32.totalorder %s28, 1
      %p187 = por %p185, %p186
      %p188 = scmp.ne.s32.totalorder %s179, %s180
      %p189 = scmp.eq.s32.totalorder %s28, 0
      %p190 = por %p188, %p189
      %p191 = scmp.ne.s32.totalorder %s179, %s180
      %p192 = scmp.eq.s32.totalorder %s29, 1
      %p193 = por %p191, %p192
      %p195 = scmp.ne.s32.totalorder %s180, %s194
      %p196 = scmp.eq.s32.totalorder %s29, 0
      %p197 = por %p195, %p196
      %s199 = sadd.s32 %s198, 1
      %p202 = scmp.eq.s32.totalorder %s23, 1
      %p203 = scmp.ne.s32.totalorder %s198, %s200
      %p204 = scmp.eq.s32.totalorder %s23, 0
      %p205 = por %p203, %p204
      %p206 = scmp.ne.s32.totalorder %s198, %s200
      %p207 = scmp.eq.s32.totalorder %s28, 1
      %p208 = por %p206, %p207
      %p209 = scmp.ne.s32.totalorder %s200, %s201
      %p210 = scmp.eq.s32.totalorder %s28, 0
      %p211 = por %p209, %p210
      %p212 = scmp.ne.s32.totalorder %s200, %s201
      %p213 = scmp.eq.s32.totalorder %s29, 1
      %p214 = por %p212, %p213
      %p216 = scmp.ne.s32.totalorder %s201, %s215
      %p217 = scmp.eq.s32.totalorder %s29, 0
      %p218 = por %p216, %p217
      %s220 = sadd.s32 %s219, 1
      %p223 = scmp.eq.s32.totalorder %s23, 1
      %p224 = scmp.ne.s32.totalorder %s219, %s221
      %p225 = scmp.eq.s32.totalorder %s23, 0
      %p226 = por %p224, %p225
      %p227 = scmp.ne.s32.totalorder %s219, %s221
      %p228 = scmp.eq.s32.totalorder %s28, 1
      %p229 = por %p227, %p228
      %p230 = scmp.ne.s32.totalorder %s221, %s222
      %p231 = scmp.eq.s32.totalorder %s28, 0
      %p232 = por %p230, %p231
      %p233 = scmp.ne.s32.totalorder %s221, %s222
      %p234 = scmp.eq.s32.totalorder %s29, 1
      %p235 = por %p233, %p234
      %p237 = scmp.ne.s32.totalorder %s222, %s236
      %p238 = scmp.eq.s32.totalorder %s29, 0
      %p239 = por %p237, %p238
      %s241 = sadd.s32 %s240, 1
      %p244 = scmp.eq.s32.totalorder %s23, 1
      %p245 = scmp.ne.s32.totalorder %s240, %s242
      %p246 = scmp.eq.s32.totalorder %s23, 0
      %p247 = por %p245, %p246
      %p248 = scmp.ne.s32.totalorder %s240, %s242
      %p249 = scmp.eq.s32.totalorder %s28, 1
      %p250 = por %p248, %p249
      %p251 = scmp.ne.s32.totalorder %s242, %s243
      %p252 = scmp.eq.s32.totalorder %s28, 0
      %p253 = por %p251, %p252
      %p254 = scmp.ne.s32.totalorder %s242, %s243
      %p255 = scmp.eq.s32.totalorder %s29, 1
      %p256 = por %p254, %p255
      %p258 = scmp.ne.s32.totalorder %s243, %s257
      %p259 = scmp.eq.s32.totalorder %s29, 0
      %p260 = por %p258, %p259
      %s262 = sadd.s32 %s261, 1
      %p265 = scmp.eq.s32.totalorder %s23, 1
      %p266 = scmp.ne.s32.totalorder %s261, %s263
      %p267 = scmp.eq.s32.totalorder %s23, 0
      %p268 = por %p266, %p267
      %p269 = scmp.ne.s32.totalorder %s261, %s263
      %p270 = scmp.eq.s32.totalorder %s28, 1
      %p271 = por %p269, %p270
      %p272 = scmp.ne.s32.totalorder %s263, %s264
      %p273 = scmp.eq.s32.totalorder %s28, 0
      %p274 = por %p272, %p273
      %p275 = scmp.ne.s32.totalorder %s263, %s264
      %p276 = scmp.eq.s32.totalorder %s29, 1
      %p277 = por %p275, %p276
      %p279 = scmp.ne.s32.totalorder %s264, %s278
      %p280 = scmp.eq.s32.totalorder %s29, 0
      %p281 = por %p279, %p280
      %s283 = sadd.s32 %s282, 1
      %p286 = scmp.eq.s32.totalorder %s23, 1
      %p287 = scmp.ne.s32.totalorder %s282, %s284
      %p288 = scmp.eq.s32.totalorder %s23, 0
      %p289 = por %p287, %p288
      %p290 = scmp.ne.s32.totalorder %s282, %s284
      %p291 = scmp.eq.s32.totalorder %s28, 1
      %p292 = por %p290, %p291
      %p293 = scmp.ne.s32.totalorder %s284, %s285
      %p294 = scmp.eq.s32.totalorder %s28, 0
      %p295 = por %p293, %p294
      %p296 = scmp.ne.s32.totalorder %s284, %s285
      %p297 = scmp.eq.s32.totalorder %s29, 1
      %p298 = por %p296, %p297
      %p300 = scmp.ne.s32.totalorder %s285, %s299
      %p301 = scmp.eq.s32.totalorder %s29, 0
      %p302 = por %p300, %p301
      %s304 = sadd.s32 %s303, 1
      %p307 = scmp.eq.s32.totalorder %s23, 1
      %p308 = scmp.ne.s32.totalorder %s303, %s305
      %p309 = scmp.eq.s32.totalorder %s23, 0
      %p310 = por %p308, %p309
      %p311 = scmp.ne.s32.totalorder %s303, %s305
      %p312 = scmp.eq.s32.totalorder %s28, 1
      %p313 = por %p311, %p312
      %p314 = scmp.ne.s32.totalorder %s305, %s306
      %p315 = scmp.eq.s32.totalorder %s28, 0
      %p316 = por %p314, %p315
      %p317 = scmp.ne.s32.totalorder %s305, %s306
      %p318 = scmp.eq.s32.totalorder %s29, 1
      %p319 = por %p317, %p318
      %p321 = scmp.ne.s32.totalorder %s306, %s320
      %p322 = scmp.eq.s32.totalorder %s29, 0
      %p323 = por %p321, %p322
      %s324 = ssub.s32 %s23, %s30
      %p325 = scmp.eq.s32.totalorder %s324, 0
      %s327 = sadd.s32 %s326, 1
      %s328 = scalar_select %p325, %s326, %s327
      %p331 = pneg %p325
      %p332 = scmp.eq.s32.totalorder %s23, 1
      %p333 = por %p331, %p332
      %p334 = scmp.ne.s32.totalorder %s326, %s329
      %p335 = scmp.eq.s32.totalorder %s23, 0
      %p336 = por %p334, %p335
      %p337 = scmp.ne.s32.totalorder %s326, %s329
      %p338 = scmp.eq.s32.totalorder %s28, 1
      %p339 = por %p337, %p338
      %p340 = scmp.ne.s32.totalorder %s329, %s330
      %p341 = scmp.eq.s32.totalorder %s28, 0
      %p342 = por %p340, %p341
      %p343 = scmp.ne.s32.totalorder %s329, %s330
      %p344 = scmp.eq.s32.totalorder %s29, 1
      %p345 = por %p343, %p344
      %p347 = scmp.ne.s32.totalorder %s330, %s346
      %p348 = scmp.eq.s32.totalorder %s29, 0
      %p349 = por %p347, %p348
      %p350 = scmp.le.s32.totalorder 1, %s23
      %p351 = scmp.lt.s32.totalorder %s23, 3
      %p352 = pnand %p350, %p351
      %p353 = pneg %p352
      // Predicated region
      $region9: #{_lambda_.3} parent=5 // pred_check
        _
      $region10: #{_lambda_.3} parent=5 // pred_check_branch
        %355 = sbr.rel (%p352) target = $region12
      $region11: #{_lambda_.3} parent=5 // pred_region
        %s356 = ssub.s32 %s23, 1
        // Predicated region
        $region13: #{_lambda_.3} parent=11 // pred_check
          %p357 = pneg %p148
        $region14: #{_lambda_.3} parent=11 // pred_check_branch
          %359 = sbr.rel (%p357) target = $region16
        $region15: #{_lambda_.3} parent=11 // pred_region
          _
        $region16: #{_lambda_.3} parent=11 // pred_fallthru
          _
        // Predicated region
        $region17: #{_lambda_.3} parent=11 // pred_check
          %p360 = pneg %p169
        $region18: #{_lambda_.3} parent=11 // pred_check_branch
          %362 = sbr.rel (%p360) target = $region20
        $region19: #{_lambda_.3} parent=11 // pred_region
          _
        $region20: #{_lambda_.3} parent=11 // pred_fallthru
          _
        // Predicated region
        $region21: #{_lambda_.3} parent=11 // pred_check
          %p363 = pneg %p190
        $region22: #{_lambda_.3} parent=11 // pred_check_branch
          %365 = sbr.rel (%p363) target = $region24
        $region23: #{_lambda_.3} parent=11 // pred_region
          _
        $region24: #{_lambda_.3} parent=11 // pred_fallthru
          _
        // Predicated region
        $region25: #{_lambda_.3} parent=11 // pred_check
          %p366 = pneg %p211
        $region26: #{_lambda_.3} parent=11 // pred_check_branch
          %368 = sbr.rel (%p366) target = $region28
        $region27: #{_lambda_.3} parent=11 // pred_region
          _
        $region28: #{_lambda_.3} parent=11 // pred_fallthru
          _
        // Predicated region
        $region29: #{_lambda_.3} parent=11 // pred_check
          %p369 = pneg %p232
        $region30: #{_lambda_.3} parent=11 // pred_check_branch
          %371 = sbr.rel (%p369) target = $region32
        $region31: #{_lambda_.3} parent=11 // pred_region
          _
        $region32: #{_lambda_.3} parent=11 // pred_fallthru
          _
        // Predicated region
        $region33: #{_lambda_.3} parent=11 // pred_check
          %p372 = pneg %p253
        $region34: #{_lambda_.3} parent=11 // pred_check_branch
          %374 = sbr.rel (%p372) target = $region36
        $region35: #{_lambda_.3} parent=11 // pred_region
          _
        $region36: #{_lambda_.3} parent=11 // pred_fallthru
          _
        // Predicated region
        $region37: #{_lambda_.3} parent=11 // pred_check
          %p375 = pneg %p274
        $region38: #{_lambda_.3} parent=11 // pred_check_branch
          %377 = sbr.rel (%p375) target = $region40
        $region39: #{_lambda_.3} parent=11 // pred_region
          _
        $region40: #{_lambda_.3} parent=11 // pred_fallthru
          _
        // Predicated region
        $region41: #{_lambda_.3} parent=11 // pred_check
          %p378 = pneg %p295
        $region42: #{_lambda_.3} parent=11 // pred_check_branch
          %380 = sbr.rel (%p378) target = $region44
        $region43: #{_lambda_.3} parent=11 // pred_region
          _
        $region44: #{_lambda_.3} parent=11 // pred_fallthru
          _
        // Predicated region
        $region45: #{_lambda_.3} parent=11 // pred_check
          %p381 = pneg %p316
        $region46: #{_lambda_.3} parent=11 // pred_check_branch
          %383 = sbr.rel (%p381) target = $region48
        $region47: #{_lambda_.3} parent=11 // pred_region
          _
        $region48: #{_lambda_.3} parent=11 // pred_fallthru
          _
      $region12: #{_lambda_.3} parent=5 // pred_fallthru
        _
      %p384 = scmp.lt.s32.totalorder %s23, 2
      // Predicated region
      $region49: #{_lambda_.3} parent=5 // pred_check
        %p385 = pneg %p384
      $region50: #{_lambda_.3} parent=5 // pred_check_branch
        %387 = sbr.rel (%p385) target = $region52
      $region51: #{_lambda_.3} parent=5 // pred_region
        // Predicated region
        $region53: #{_lambda_.3} parent=51 // pred_check
          %p388 = pneg %p43
        $region54: #{_lambda_.3} parent=51 // pred_check_branch
          %390 = sbr.rel (%p388) target = $region56
        $region55: #{_lambda_.3} parent=51 // pred_region
          %p391 = scmp.lt.s32.totalorder %s23, 1
          %s392 = scalar_select %p391, %s23, 1
          %s393 = smul.addr %s392, 8
          %s394 = scalar_lea.vmem %s0, %s393
        $region56: #{_lambda_.3} parent=51 // pred_fallthru
          _
        // Predicated region
        $region57: #{_lambda_.3} parent=51 // pred_check
          %p395 = pneg %p69
        $region58: #{_lambda_.3} parent=51 // pred_check_branch
          %397 = sbr.rel (%p395) target = $region60
        $region59: #{_lambda_.3} parent=51 // pred_region
          %p398 = scmp.lt.s32.totalorder %s23, 1
          %s399 = scalar_select %p398, %s23, 1
          %s400 = smul.addr %s399, 8
          %s401 = smul.addr %s400, 8
          %s402 = scalar_lea.vmem %s1, %s401
        $region60: #{_lambda_.3} parent=51 // pred_fallthru
          _
        // Predicated region
        $region61: #{_lambda_.3} parent=51 // pred_check
          %p403 = pneg %p95
        $region62: #{_lambda_.3} parent=51 // pred_check_branch
          %405 = sbr.rel (%p403) target = $region64
        $region63: #{_lambda_.3} parent=51 // pred_region
          %p406 = scmp.lt.s32.totalorder %s23, 1
          %s407 = scalar_select %p406, %s23, 1
          %s408 = smul.addr %s407, 8
          %s409 = scalar_lea.vmem %s2, %s408
        $region64: #{_lambda_.3} parent=51 // pred_fallthru
          _
        // Predicated region
        $region65: #{_lambda_.3} parent=51 // pred_check
          %p410 = pneg %p121
        $region66: #{_lambda_.3} parent=51 // pred_check_branch
          %412 = sbr.rel (%p410) target = $region68
        $region67: #{_lambda_.3} parent=51 // pred_region
          %p413 = scmp.lt.s32.totalorder %s23, 1
          %s414 = scalar_select %p413, %s23, 1
          %s415 = scalar_lea.vmem %s3, %s414
        $region68: #{_lambda_.3} parent=51 // pred_fallthru
          _
      $region52: #{_lambda_.3} parent=5 // pred_fallthru
        _
      %p416 = scmp.le.s32.totalorder 1, %s23
      %p417 = scmp.lt.s32.totalorder %s23, 3
      %p418 = pnand %p416, %p417
      %p419 = pneg %p418
      // Predicated region
      $region69: #{_lambda_.3} parent=5 // pred_check
        _
      $region70: #{_lambda_.3} parent=5 // pred_check_branch
        %421 = sbr.rel (%p418) target = $region72
      $region71: #{_lambda_.3} parent=5 // pred_region
        %s422 = ssub.s32 %s23, 1
        %p423 = scmp.lt.s32.totalorder %s28, 1
        %s424 = scalar_select %p423, %s28, 1
        %s425 = smul.addr %s424, 8
        %s426 = scalar_lea.vmem %s0, %s425
        %p427 = pneg %p49
        %p428 = pneg %p46
        %p429 = scmp.lt.s32.totalorder %s28, 1
        %s430 = scalar_select %p429, %s28, 1
        %s431 = smul.addr %s430, 8
        %s432 = smul.addr %s431, 8
        %s433 = scalar_lea.vmem %s1, %s432
        %p434 = pneg %p75
        %p435 = pneg %p72
        %p436 = scmp.lt.s32.totalorder %s28, 1
        %s437 = scalar_select %p436, %s28, 1
        %s438 = smul.addr %s437, 8
        %s439 = scalar_lea.vmem %s2, %s438
        %p440 = pneg %p101
        %p441 = pneg %p98
        %p442 = scmp.lt.s32.totalorder %s28, 1
        %s443 = scalar_select %p442, %s28, 1
        %s444 = scalar_lea.vmem %s3, %s443
        %p445 = pneg %p127
        %p446 = pneg %p124
        %p447 = pneg %p148
        %p448 = pneg %p145
        %p449 = pneg %p169
        %p450 = pneg %p166
        %p451 = pneg %p190
        %p452 = pneg %p187
        %p453 = pneg %p211
        %p454 = pneg %p208
        %p455 = pneg %p232
        %p456 = pneg %p229
        %p457 = pneg %p253
        %p458 = pneg %p250
        %p459 = pneg %p274
        %p460 = pneg %p271
        %p461 = pneg %p295
        %p462 = pneg %p292
        %p463 = pneg %p316
        %p464 = pneg %p313
        %p465 = pneg %p342
        %p466 = pneg %p339
        %s467 = sand.u32 %s329, 1
        %s468 = scalar_lea.sflag [#allocation5], %s467
        %s469 = sand.u32 %s329, 1
        %s470 = smul.addr %s469, 16
        %s471 = scalar_lea.vmem [#allocation4], %s470
        %p472 = scmp.lt.s32.totalorder %s28, 1
        %s473 = scalar_select %p472, %s28, 1
        %s474 = smul.addr %s473, 8
        %s475 = scalar_lea.vmem %s0, %s474
        %p476 = scmp.lt.s32.totalorder %s28, 1
        %s477 = scalar_select %p476, %s28, 1
        %s478 = smul.addr %s477, 8
        %s479 = smul.addr %s478, 8
        %s480 = scalar_lea.vmem %s1, %s479
        %p481 = scmp.lt.s32.totalorder %s28, 1
        %s482 = scalar_select %p481, %s28, 1
        %s483 = smul.addr %s482, 8
        %s484 = scalar_lea.vmem %s2, %s483
        %p485 = scmp.lt.s32.totalorder %s28, 1
        %s486 = scalar_select %p485, %s28, 1
        %s487 = scalar_lea.vmem %s3, %s486
        %v489 = vld [vmem:[%s475] sm:$0xff]
        %v490 = vld [vmem:[%s480] sm:$0xff]
        %v491 = vld [vmem:[%s480 + $0x8] sm:$0xff]
        %v492 = vld [vmem:[%s480 + $0x10] sm:$0xff]
        %v493 = vld [vmem:[%s480 + $0x18] sm:$0xff]
        %v494 = vld [vmem:[%s480 + $0x20] sm:$0xff]
        %v495 = vld [vmem:[%s480 + $0x28] sm:$0xff]
        %v496 = vld [vmem:[%s480 + $0x30] sm:$0xff]
        %v497 = vld [vmem:[%s480 + $0x38] sm:$0xff]
        %v498 = vld [vmem:[%s484] sm:$0xff]
        %v499 = vld [vmem:[%s487] sm:$0x1]
        %v500 = vmul.f32 %v490, %v490
        %v501 = vmul.f32 %v491, %v490
        %v502 = vmul.f32 %v492, %v490
        %v503 = vmul.f32 %v493, %v490
        %v504 = vmul.f32 %v494, %v490
        %v505 = vmul.f32 %v495, %v490
        %v506 = vmul.f32 %v496, %v490
        %v507 = vmul.f32 %v497, %v490
        %vm508 = vcmask 130048
        %v509 = vsel %vm508, %v500, 0.0
        %v510 = vrot.slane %v509, 4
        %v511 = vadd.f32 %v509, %v510
        %v512 = vrot.slane %v511, 2
        %v513 = vadd.f32 %v511, %v512
        %v514 = vrot.slane %v513, 1
        %v515 = vadd.f32 %v513, %v514
        %v516 = vsel %vm508, %v501, 0.0
        %v517 = vrot.slane %v516, 4
        %v518 = vadd.f32 %v516, %v517
        %v519 = vrot.slane %v518, 2
        %v520 = vadd.f32 %v518, %v519
        %v521 = vrot.slane %v520, 1
        %v522 = vadd.f32 %v520, %v521
        %v523 = vsel %vm508, %v502, 0.0
        %v524 = vrot.slane %v523, 4
        %v525 = vadd.f32 %v523, %v524
        %v526 = vrot.slane %v525, 2
        %v527 = vadd.f32 %v525, %v526
        %v528 = vrot.slane %v527, 1
        %v529 = vadd.f32 %v527, %v528
        %v530 = vsel %vm508, %v503, 0.0
        %v531 = vrot.slane %v530, 4
        %v532 = vadd.f32 %v530, %v531
        %v533 = vrot.slane %v532, 2
        %v534 = vadd.f32 %v532, %v533
        %v535 = vrot.slane %v534, 1
        %v536 = vadd.f32 %v534, %v535
        %v537 = vsel %vm508, %v504, 0.0
        %v538 = vrot.slane %v537, 4
        %v539 = vadd.f32 %v537, %v538
        %v540 = vrot.slane %v539, 2
        %v541 = vadd.f32 %v539, %v540
        %v542 = vrot.slane %v541, 1
        %v543 = vadd.f32 %v541, %v542
        %v544 = vsel %vm508, %v505, 0.0
        %v545 = vrot.slane %v544, 4
        %v546 = vadd.f32 %v544, %v545
        %v547 = vrot.slane %v546, 2
        %v548 = vadd.f32 %v546, %v547
        %v549 = vrot.slane %v548, 1
        %v550 = vadd.f32 %v548, %v549
        %v551 = vsel %vm508, %v506, 0.0
        %v552 = vrot.slane %v551, 4
        %v553 = vadd.f32 %v551, %v552
        %v554 = vrot.slane %v553, 2
        %v555 = vadd.f32 %v553, %v554
        %v556 = vrot.slane %v555, 1
        %v557 = vadd.f32 %v555, %v556
        %v558 = vsel %vm508, %v507, 0.0
        %v559 = vrot.slane %v558, 4
        %v560 = vadd.f32 %v558, %v559
        %v561 = vrot.slane %v560, 2
        %v562 = vadd.f32 %v560, %v561
        %v563 = vrot.slane %v562, 1
        %v564 = vadd.f32 %v562, %v563
        %v565 = vmul.f32 %v515, %v515
        %v566 = vmul.f32 %v522, %v522
        %v567 = vmul.f32 %v529, %v529
        %v568 = vmul.f32 %v536, %v536
        %v569 = vmul.f32 %v543, %v543
        %v570 = vmul.f32 %v550, %v550
        %v571 = vmul.f32 %v557, %v557
        %v572 = vmul.f32 %v564, %v564
        %vm581 = vcmask 1041409
        %v582 = vsel %vm581, %v566, %v565
        %vm583 = vcmask 1042434
        %v584 = vsel %vm583, %v567, %v582
        %vm585 = vcmask 1043459
        %v586 = vsel %vm585, %v568, %v584
        %vm587 = vcmask 1044484
        %v588 = vsel %vm587, %v569, %v586
        %vm589 = vcmask 1045509
        %v590 = vsel %vm589, %v570, %v588
        %vm591 = vcmask 1046534
        %v592 = vsel %vm591, %v571, %v590
        %vm593 = vcmask 1047559
        %v594 = vsel %vm593, %v572, %v592
        %v596 = vsel %vm508, %v594, 0.0
        %597 = vadd.xlane.f32.xlu0 %v596
        %v598 = vpop.xlane.xlu0 %597
        %v599 = vrsqrt.pop %v598
        %v600 = vmul.f32 %v598, %v599
        %vm601 = vcmp.eq.f32.partialorder %v598, inf
        %v602 = vsel %vm601, %v598, %v600
        %vm603 = vcmp.eq.f32.partialorder %v598, 0.0
        %v604 = vand.u32 %v598, 2147483648
        %v605 = vsel %vm603, %v604, %v602
        %v606 = vmax.f32 %v605, 1e-12
        %v608 = vrot.slane %v606, 1
        %v609 = vrot.slane %v606, 2
        %v610 = vrot.slane %v606, 3
        %v611 = vrot.slane %v606, 4
        %v612 = vrot.slane %v606, 5
        %v613 = vrot.slane %v606, 6
        %v614 = vrot.slane %v606, 7
        %v623 = vrcp.pop %v606
        %v624 = vmul.f32 %v515, %v623
        %v625 = vrcp.pop %v608
        %v626 = vmul.f32 %v522, %v625
        %v627 = vrcp.pop %v609
        %v628 = vmul.f32 %v529, %v627
        %v629 = vrcp.pop %v610
        %v630 = vmul.f32 %v536, %v629
        %v631 = vrcp.pop %v611
        %v632 = vmul.f32 %v543, %v631
        %v633 = vrcp.pop %v612
        %v634 = vmul.f32 %v550, %v633
        %v635 = vrcp.pop %v613
        %v636 = vmul.f32 %v557, %v635
        %v637 = vrcp.pop %v614
        %v638 = vmul.f32 %v564, %v637
        %v639 = vmul.f32 %v624, %v624
        %v640 = vmul.f32 %v626, %v626
        %v641 = vmul.f32 %v628, %v628
        %v642 = vmul.f32 %v630, %v630
        %v643 = vmul.f32 %v632, %v632
        %v644 = vmul.f32 %v634, %v634
        %v645 = vmul.f32 %v636, %v636
        %v646 = vmul.f32 %v638, %v638
        %v655 = vrot.slane %v640, 7
        %v656 = vsel %vm581, %v655, %v639
        %v657 = vrot.slane %v641, 6
        %v658 = vsel %vm583, %v657, %v656
        %v659 = vrot.slane %v642, 5
        %v660 = vsel %vm585, %v659, %v658
        %v661 = vrot.slane %v643, 4
        %v662 = vsel %vm587, %v661, %v660
        %v663 = vrot.slane %v644, 3
        %v664 = vsel %vm589, %v663, %v662
        %v665 = vrot.slane %v645, 2
        %v666 = vsel %vm591, %v665, %v664
        %v667 = vrot.slane %v646, 1
        %v668 = vsel %vm593, %v667, %v666
        %v669 = vsel %vm508, %v668, 0
        %671 = vmatprep.subr.mxu0 0.0
        %672 = vmatpush1.xpose.msra.mxu0 0.0
        %673 = vmatprep.subr.mxu0 0.0
        %674 = vmatpush1.xpose.msra.mxu0 0.0
        %675 = vmatprep.subr.mxu0 0.0
        %676 = vmatpush1.xpose.msra.mxu0 0.0
        %677 = vmatprep.subr.mxu0 0.0
        %678 = vmatpush1.xpose.msra.mxu0 0.0
        %679 = vmatprep.subr.mxu0 0.0
        %680 = vmatpush1.xpose.msra.mxu0 0.0
        %681 = vmatprep.subr.mxu0 0.0
        %682 = vmatpush1.xpose.msra.mxu0 0.0
        %683 = vmatprep.subr.mxu0 0.0
        %684 = vmatpush1.xpose.msra.mxu0 0.0
        %685 = vmatprep.subr.mxu0 0.0
        %686 = vmatpush1.xpose.msra.mxu0 0.0
        %687 = vmatprep.subr.mxu0 0.0
        %688 = vmatpush1.xpose.msra.mxu0 0.0
        %689 = vmatprep.subr.mxu0 0.0
        %690 = vmatpush1.xpose.msra.mxu0 0.0
        %691 = vmatprep.subr.mxu0 0.0
        %692 = vmatpush1.xpose.msra.mxu0 0.0
        %693 = vmatprep.subr.mxu0 0.0
        %694 = vmatpush1.xpose.msra.mxu0 0.0
        %695 = vmatprep.subr.mxu0 0.0
        %696 = vmatpush1.xpose.msra.mxu0 0.0
        %697 = vmatprep.subr.mxu0 0.0
        %698 = vmatpush1.xpose.msra.mxu0 0.0
        %699 = vmatprep.subr.mxu0 0.0
        %700 = vmatpush1.xpose.msra.mxu0 0.0
        %701 = vmatprep.subr.mxu0 0.0
        %v702 = vand.u32 %v669, 4294901760
        %703 = vmatpush1.xpose.msra.mxu0 %v702
        %704 = vmatprep.subr.mxu0 0.0
        %705 = vmatpush2.xpose.msra.mxu0 0.0
        %706 = vmatprep.subr.mxu0 0.0
        %707 = vmatpush2.xpose.msra.mxu0 0.0
        %708 = vmatprep.subr.mxu0 0.0
        %709 = vmatpush2.xpose.msra.mxu0 0.0
        %710 = vmatprep.subr.mxu0 0.0
        %711 = vmatpush2.xpose.msra.mxu0 0.0
        %712 = vmatprep.subr.mxu0 0.0
        %713 = vmatpush2.xpose.msra.mxu0 0.0
        %714 = vmatprep.subr.mxu0 0.0
        %715 = vmatpush2.xpose.msra.mxu0 0.0
        %716 = vmatprep.subr.mxu0 0.0
        %717 = vmatpush2.xpose.msra.mxu0 0.0
        %718 = vmatprep.subr.mxu0 0.0
        %719 = vmatpush2.xpose.msra.mxu0 0.0
        %720 = vmatprep.subr.mxu0 0.0
        %721 = vmatpush2.xpose.msra.mxu0 0.0
        %722 = vmatprep.subr.mxu0 0.0
        %723 = vmatpush2.xpose.msra.mxu0 0.0
        %724 = vmatprep.subr.mxu0 0.0
        %725 = vmatpush2.xpose.msra.mxu0 0.0
        %726 = vmatprep.subr.mxu0 0.0
        %727 = vmatpush2.xpose.msra.mxu0 0.0
        %728 = vmatprep.subr.mxu0 0.0
        %729 = vmatpush2.xpose.msra.mxu0 0.0
        %730 = vmatprep.subr.mxu0 0.0
        %731 = vmatpush2.xpose.msra.mxu0 0.0
        %732 = vmatprep.subr.mxu0 0.0
        %733 = vmatpush2.xpose.msra.mxu0 0.0
        %734 = vmatprep.subr.mxu0 0.0
        %735 = vmatpush2.xpose.msra.mxu0 0.0
        %736 = vmatprep.mubr.f32.mxu0 0.0
        %v737 = vand.u32 %v669, 4294901760
        %v738 = vsub.f32 %v669, %v737
        %v739 = vand.u32 %v738, 4294901760
        %v740 = vsub.f32 %v738, %v739
        %v741 = vand.u32 %v740, 4294901760
        %742 = vmatmul.mubr.f32.gmra.mxu0 %v741
        %v743 = vpop.f32.mrf.mxu0
        %v744 = vadd.f32 0.0, %v743
        %v745 = vpop.f32.mrf.mxu0
        %746 = vdwg.mxu0
        %747 = vmatprep.subr.mxu0 0.0
        %748 = vmatpush1.xpose.msra.mxu0 0.0
        %749 = vmatprep.subr.mxu0 0.0
        %750 = vmatpush1.xpose.msra.mxu0 0.0
        %751 = vmatprep.subr.mxu0 0.0
        %752 = vmatpush1.xpose.msra.mxu0 0.0
        %753 = vmatprep.subr.mxu0 0.0
        %754 = vmatpush1.xpose.msra.mxu0 0.0
        %755 = vmatprep.subr.mxu0 0.0
        %756 = vmatpush1.xpose.msra.mxu0 0.0
        %757 = vmatprep.subr.mxu0 0.0
        %758 = vmatpush1.xpose.msra.mxu0 0.0
        %759 = vmatprep.subr.mxu0 0.0
        %760 = vmatpush1.xpose.msra.mxu0 0.0
        %761 = vmatprep.subr.mxu0 0.0
        %762 = vmatpush1.xpose.msra.mxu0 0.0
        %763 = vmatprep.subr.mxu0 0.0
        %764 = vmatpush1.xpose.msra.mxu0 0.0
        %765 = vmatprep.subr.mxu0 0.0
        %766 = vmatpush1.xpose.msra.mxu0 0.0
        %767 = vmatprep.subr.mxu0 0.0
        %768 = vmatpush1.xpose.msra.mxu0 0.0
        %769 = vmatprep.subr.mxu0 0.0
        %770 = vmatpush1.xpose.msra.mxu0 0.0
        %771 = vmatprep.subr.mxu0 0.0
        %772 = vmatpush1.xpose.msra.mxu0 0.0
        %773 = vmatprep.subr.mxu0 0.0
        %774 = vmatpush1.xpose.msra.mxu0 0.0
        %775 = vmatprep.subr.mxu0 0.0
        %776 = vmatpush1.xpose.msra.mxu0 0.0
        %777 = vmatprep.subr.mxu0 0.0
        %v778 = vand.u32 %v669, 4294901760
        %v779 = vsub.f32 %v669, %v778
        %v780 = vand.u32 %v779, 4294901760
        %v781 = vsub.f32 %v779, %v780
        %v782 = vand.u32 %v781, 4294901760
        %783 = vmatpush1.xpose.msra.mxu0 %v782
        %784 = vmatprep.subr.mxu0 0.0
        %785 = vmatpush2.xpose.msra.mxu0 0.0
        %786 = vmatprep.subr.mxu0 0.0
        %787 = vmatpush2.xpose.msra.mxu0 0.0
        %788 = vmatprep.subr.mxu0 0.0
        %789 = vmatpush2.xpose.msra.mxu0 0.0
        %790 = vmatprep.subr.mxu0 0.0
        %791 = vmatpush2.xpose.msra.mxu0 0.0
        %792 = vmatprep.subr.mxu0 0.0
        %793 = vmatpush2.xpose.msra.mxu0 0.0
        %794 = vmatprep.subr.mxu0 0.0
        %795 = vmatpush2.xpose.msra.mxu0 0.0
        %796 = vmatprep.subr.mxu0 0.0
        %797 = vmatpush2.xpose.msra.mxu0 0.0
        %798 = vmatprep.subr.mxu0 0.0
        %799 = vmatpush2.xpose.msra.mxu0 0.0
        %800 = vmatprep.subr.mxu0 0.0
        %801 = vmatpush2.xpose.msra.mxu0 0.0
        %802 = vmatprep.subr.mxu0 0.0
        %803 = vmatpush2.xpose.msra.mxu0 0.0
        %804 = vmatprep.subr.mxu0 0.0
        %805 = vmatpush2.xpose.msra.mxu0 0.0
        %806 = vmatprep.subr.mxu0 0.0
        %807 = vmatpush2.xpose.msra.mxu0 0.0
        %808 = vmatprep.subr.mxu0 0.0
        %809 = vmatpush2.xpose.msra.mxu0 0.0
        %810 = vmatprep.subr.mxu0 0.0
        %811 = vmatpush2.xpose.msra.mxu0 0.0
        %812 = vmatprep.subr.mxu0 0.0
        %813 = vmatpush2.xpose.msra.mxu0 0.0
        %814 = vmatprep.subr.mxu0 0.0
        %815 = vmatpush2.xpose.msra.mxu0 0.0
        %816 = vmatprep.mubr.f32.mxu0 0.0
        %v817 = vand.u32 %v669, 4294901760
        %818 = vmatmul.mubr.f32.gmra.mxu0 %v817
        %v819 = vpop.f32.mrf.mxu0
        %v820 = vadd.f32 %v744, %v819
        %v821 = vpop.f32.mrf.mxu0
        %822 = vdwg.mxu0
        %823 = vmatprep.subr.mxu0 0.0
        %824 = vmatpush1.xpose.msra.mxu0 0.0
        %825 = vmatprep.subr.mxu0 0.0
        %826 = vmatpush1.xpose.msra.mxu0 0.0
        %827 = vmatprep.subr.mxu0 0.0
        %828 = vmatpush1.xpose.msra.mxu0 0.0
        %829 = vmatprep.subr.mxu0 0.0
        %830 = vmatpush1.xpose.msra.mxu0 0.0
        %831 = vmatprep.subr.mxu0 0.0
        %832 = vmatpush1.xpose.msra.mxu0 0.0
        %833 = vmatprep.subr.mxu0 0.0
        %834 = vmatpush1.xpose.msra.mxu0 0.0
        %835 = vmatprep.subr.mxu0 0.0
        %836 = vmatpush1.xpose.msra.mxu0 0.0
        %837 = vmatprep.subr.mxu0 0.0
        %838 = vmatpush1.xpose.msra.mxu0 0.0
        %839 = vmatprep.subr.mxu0 0.0
        %840 = vmatpush1.xpose.msra.mxu0 0.0
        %841 = vmatprep.subr.mxu0 0.0
        %842 = vmatpush1.xpose.msra.mxu0 0.0
        %843 = vmatprep.subr.mxu0 0.0
        %844 = vmatpush1.xpose.msra.mxu0 0.0
        %845 = vmatprep.subr.mxu0 0.0
        %846 = vmatpush1.xpose.msra.mxu0 0.0
        %847 = vmatprep.subr.mxu0 0.0
        %848 = vmatpush1.xpose.msra.mxu0 0.0
        %849 = vmatprep.subr.mxu0 0.0
        %850 = vmatpush1.xpose.msra.mxu0 0.0
        %851 = vmatprep.subr.mxu0 0.0
        %852 = vmatpush1.xpose.msra.mxu0 0.0
        %853 = vmatprep.subr.mxu0 0.0
        %v854 = vand.u32 %v669, 4294901760
        %v855 = vsub.f32 %v669, %v854
        %856 = vmatpush1.xpose.msra.mxu0 %v855
        %857 = vmatprep.subr.mxu0 0.0
        %858 = vmatpush2.xpose.msra.mxu0 0.0
        %859 = vmatprep.subr.mxu0 0.0
        %860 = vmatpush2.xpose.msra.mxu0 0.0
        %861 = vmatprep.subr.mxu0 0.0
        %862 = vmatpush2.xpose.msra.mxu0 0.0
        %863 = vmatprep.subr.mxu0 0.0
        %864 = vmatpush2.xpose.msra.mxu0 0.0
        %865 = vmatprep.subr.mxu0 0.0
        %866 = vmatpush2.xpose.msra.mxu0 0.0
        %867 = vmatprep.subr.mxu0 0.0
        %868 = vmatpush2.xpose.msra.mxu0 0.0
        %869 = vmatprep.subr.mxu0 0.0
        %870 = vmatpush2.xpose.msra.mxu0 0.0
        %871 = vmatprep.subr.mxu0 0.0
        %872 = vmatpush2.xpose.msra.mxu0 0.0
        %873 = vmatprep.subr.mxu0 0.0
        %874 = vmatpush2.xpose.msra.mxu0 0.0
        %875 = vmatprep.subr.mxu0 0.0
        %876 = vmatpush2.xpose.msra.mxu0 0.0
        %877 = vmatprep.subr.mxu0 0.0
        %878 = vmatpush2.xpose.msra.mxu0 0.0
        %879 = vmatprep.subr.mxu0 0.0
        %880 = vmatpush2.xpose.msra.mxu0 0.0
        %881 = vmatprep.subr.mxu0 0.0
        %882 = vmatpush2.xpose.msra.mxu0 0.0
        %883 = vmatprep.subr.mxu0 0.0
        %884 = vmatpush2.xpose.msra.mxu0 0.0
        %885 = vmatprep.subr.mxu0 0.0
        %886 = vmatpush2.xpose.msra.mxu0 0.0
        %887 = vmatprep.subr.mxu0 0.0
        %888 = vmatpush2.xpose.msra.mxu0 0.0
        %889 = vmatprep.mubr.f32.mxu0 0.0
        %v890 = vand.u32 %v669, 4294901760
        %v891 = vsub.f32 %v669, %v890
        %892 = vmatmul.mubr.f32.gmra.mxu0 %v891
        %v893 = vpop.f32.mrf.mxu0
        %v894 = vadd.f32 %v820, %v893
        %v895 = vpop.f32.mrf.mxu0
        %896 = vdwg.mxu0
        %897 = vmatprep.subr.mxu0 0.0
        %898 = vmatpush1.xpose.msra.mxu0 0.0
        %899 = vmatprep.subr.mxu0 0.0
        %900 = vmatpush1.xpose.msra.mxu0 0.0
        %901 = vmatprep.subr.mxu0 0.0
        %902 = vmatpush1.xpose.msra.mxu0 0.0
        %903 = vmatprep.subr.mxu0 0.0
        %904 = vmatpush1.xpose.msra.mxu0 0.0
        %905 = vmatprep.subr.mxu0 0.0
        %906 = vmatpush1.xpose.msra.mxu0 0.0
        %907 = vmatprep.subr.mxu0 0.0
        %908 = vmatpush1.xpose.msra.mxu0 0.0
        %909 = vmatprep.subr.mxu0 0.0
        %910 = vmatpush1.xpose.msra.mxu0 0.0
        %911 = vmatprep.subr.mxu0 0.0
        %912 = vmatpush1.xpose.msra.mxu0 0.0
        %913 = vmatprep.subr.mxu0 0.0
        %914 = vmatpush1.xpose.msra.mxu0 0.0
        %915 = vmatprep.subr.mxu0 0.0
        %916 = vmatpush1.xpose.msra.mxu0 0.0
        %917 = vmatprep.subr.mxu0 0.0
        %918 = vmatpush1.xpose.msra.mxu0 0.0
        %919 = vmatprep.subr.mxu0 0.0
        %920 = vmatpush1.xpose.msra.mxu0 0.0
        %921 = vmatprep.subr.mxu0 0.0
        %922 = vmatpush1.xpose.msra.mxu0 0.0
        %923 = vmatprep.subr.mxu0 0.0
        %924 = vmatpush1.xpose.msra.mxu0 0.0
        %925 = vmatprep.subr.mxu0 0.0
        %926 = vmatpush1.xpose.msra.mxu0 0.0
        %927 = vmatprep.subr.mxu0 0.0
        %v928 = vand.u32 %v669, 4294901760
        %929 = vmatpush1.xpose.msra.mxu0 %v928
        %930 = vmatprep.subr.mxu0 0.0
        %931 = vmatpush2.xpose.msra.mxu0 0.0
        %932 = vmatprep.subr.mxu0 0.0
        %933 = vmatpush2.xpose.msra.mxu0 0.0
        %934 = vmatprep.subr.mxu0 0.0
        %935 = vmatpush2.xpose.msra.mxu0 0.0
        %936 = vmatprep.subr.mxu0 0.0
        %937 = vmatpush2.xpose.msra.mxu0 0.0
        %938 = vmatprep.subr.mxu0 0.0
        %939 = vmatpush2.xpose.msra.mxu0 0.0
        %940 = vmatprep.subr.mxu0 0.0
        %941 = vmatpush2.xpose.msra.mxu0 0.0
        %942 = vmatprep.subr.mxu0 0.0
        %943 = vmatpush2.xpose.msra.mxu0 0.0
        %944 = vmatprep.subr.mxu0 0.0
        %945 = vmatpush2.xpose.msra.mxu0 0.0
        %946 = vmatprep.subr.mxu0 0.0
        %947 = vmatpush2.xpose.msra.mxu0 0.0
        %948 = vmatprep.subr.mxu0 0.0
        %949 = vmatpush2.xpose.msra.mxu0 0.0
        %950 = vmatprep.subr.mxu0 0.0
        %951 = vmatpush2.xpose.msra.mxu0 0.0
        %952 = vmatprep.subr.mxu0 0.0
        %953 = vmatpush2.xpose.msra.mxu0 0.0
        %954 = vmatprep.subr.mxu0 0.0
        %955 = vmatpush2.xpose.msra.mxu0 0.0
        %956 = vmatprep.subr.mxu0 0.0
        %957 = vmatpush2.xpose.msra.mxu0 0.0
        %958 = vmatprep.subr.mxu0 0.0
        %959 = vmatpush2.xpose.msra.mxu0 0.0
        %960 = vmatprep.subr.mxu0 0.0
        %961 = vmatpush2.xpose.msra.mxu0 0.0
        %962 = vmatprep.mubr.f32.mxu0 0.0
        %v963 = vand.u32 %v669, 4294901760
        %v964 = vsub.f32 %v669, %v963
        %v965 = vand.u32 %v964, 4294901760
        %966 = vmatmul.mubr.f32.gmra.mxu0 %v965
        %v967 = vpop.f32.mrf.mxu0
        %v968 = vadd.f32 %v894, %v967
        %v969 = vpop.f32.mrf.mxu0
        %970 = vdwg.mxu0
        %971 = vmatprep.subr.mxu0 0.0
        %972 = vmatpush1.xpose.msra.mxu0 0.0
        %973 = vmatprep.subr.mxu0 0.0
        %974 = vmatpush1.xpose.msra.mxu0 0.0
        %975 = vmatprep.subr.mxu0 0.0
        %976 = vmatpush1.xpose.msra.mxu0 0.0
        %977 = vmatprep.subr.mxu0 0.0
        %978 = vmatpush1.xpose.msra.mxu0 0.0
        %979 = vmatprep.subr.mxu0 0.0
        %980 = vmatpush1.xpose.msra.mxu0 0.0
        %981 = vmatprep.subr.mxu0 0.0
        %982 = vmatpush1.xpose.msra.mxu0 0.0
        %983 = vmatprep.subr.mxu0 0.0
        %984 = vmatpush1.xpose.msra.mxu0 0.0
        %985 = vmatprep.subr.mxu0 0.0
        %986 = vmatpush1.xpose.msra.mxu0 0.0
        %987 = vmatprep.subr.mxu0 0.0
        %988 = vmatpush1.xpose.msra.mxu0 0.0
        %989 = vmatprep.subr.mxu0 0.0
        %990 = vmatpush1.xpose.msra.mxu0 0.0
        %991 = vmatprep.subr.mxu0 0.0
        %992 = vmatpush1.xpose.msra.mxu0 0.0
        %993 = vmatprep.subr.mxu0 0.0
        %994 = vmatpush1.xpose.msra.mxu0 0.0
        %995 = vmatprep.subr.mxu0 0.0
        %996 = vmatpush1.xpose.msra.mxu0 0.0
        %997 = vmatprep.subr.mxu0 0.0
        %998 = vmatpush1.xpose.msra.mxu0 0.0
        %999 = vmatprep.subr.mxu0 0.0
        %1000 = vmatpush1.xpose.msra.mxu0 0.0
        %1001 = vmatprep.subr.mxu0 0.0
        %v1002 = vand.u32 %v669, 4294901760
        %v1003 = vsub.f32 %v669, %v1002
        %v1004 = vand.u32 %v1003, 4294901760
        %1005 = vmatpush1.xpose.msra.mxu0 %v1004
        %1006 = vmatprep.subr.mxu0 0.0
        %1007 = vmatpush2.xpose.msra.mxu0 0.0
        %1008 = vmatprep.subr.mxu0 0.0
        %1009 = vmatpush2.xpose.msra.mxu0 0.0
        %1010 = vmatprep.subr.mxu0 0.0
        %1011 = vmatpush2.xpose.msra.mxu0 0.0
        %1012 = vmatprep.subr.mxu0 0.0
        %1013 = vmatpush2.xpose.msra.mxu0 0.0
        %1014 = vmatprep.subr.mxu0 0.0
        %1015 = vmatpush2.xpose.msra.mxu0 0.0
        %1016 = vmatprep.subr.mxu0 0.0
        %1017 = vmatpush2.xpose.msra.mxu0 0.0
        %1018 = vmatprep.subr.mxu0 0.0
        %1019 = vmatpush2.xpose.msra.mxu0 0.0
        %1020 = vmatprep.subr.mxu0 0.0
        %1021 = vmatpush2.xpose.msra.mxu0 0.0
        %1022 = vmatprep.subr.mxu0 0.0
        %1023 = vmatpush2.xpose.msra.mxu0 0.0
        %1024 = vmatprep.subr.mxu0 0.0
        %1025 = vmatpush2.xpose.msra.mxu0 0.0
        %1026 = vmatprep.subr.mxu0 0.0
        %1027 = vmatpush2.xpose.msra.mxu0 0.0
        %1028 = vmatprep.subr.mxu0 0.0
        %1029 = vmatpush2.xpose.msra.mxu0 0.0
        %1030 = vmatprep.subr.mxu0 0.0
        %1031 = vmatpush2.xpose.msra.mxu0 0.0
        %1032 = vmatprep.subr.mxu0 0.0
        %1033 = vmatpush2.xpose.msra.mxu0 0.0
        %1034 = vmatprep.subr.mxu0 0.0
        %1035 = vmatpush2.xpose.msra.mxu0 0.0
        %1036 = vmatprep.subr.mxu0 0.0
        %1037 = vmatpush2.xpose.msra.mxu0 0.0
        %1038 = vmatprep.mubr.f32.mxu0 0.0
        %v1039 = vand.u32 %v669, 4294901760
        %1040 = vmatmul.mubr.f32.gmra.mxu0 %v1039
        %v1041 = vpop.f32.mrf.mxu0
        %v1042 = vadd.f32 %v968, %v1041
        %v1043 = vpop.f32.mrf.mxu0
        %1044 = vdwg.mxu0
        %1045 = vmatprep.subr.mxu0 0.0
        %1046 = vmatpush1.xpose.msra.mxu0 0.0
        %1047 = vmatprep.subr.mxu0 0.0
        %1048 = vmatpush1.xpose.msra.mxu0 0.0
        %1049 = vmatprep.subr.mxu0 0.0
        %1050 = vmatpush1.xpose.msra.mxu0 0.0
        %1051 = vmatprep.subr.mxu0 0.0
        %1052 = vmatpush1.xpose.msra.mxu0 0.0
        %1053 = vmatprep.subr.mxu0 0.0
        %1054 = vmatpush1.xpose.msra.mxu0 0.0
        %1055 = vmatprep.subr.mxu0 0.0
        %1056 = vmatpush1.xpose.msra.mxu0 0.0
        %1057 = vmatprep.subr.mxu0 0.0
        %1058 = vmatpush1.xpose.msra.mxu0 0.0
        %1059 = vmatprep.subr.mxu0 0.0
        %1060 = vmatpush1.xpose.msra.mxu0 0.0
        %1061 = vmatprep.subr.mxu0 0.0
        %1062 = vmatpush1.xpose.msra.mxu0 0.0
        %1063 = vmatprep.subr.mxu0 0.0
        %1064 = vmatpush1.xpose.msra.mxu0 0.0
        %1065 = vmatprep.subr.mxu0 0.0
        %1066 = vmatpush1.xpose.msra.mxu0 0.0
        %1067 = vmatprep.subr.mxu0 0.0
        %1068 = vmatpush1.xpose.msra.mxu0 0.0
        %1069 = vmatprep.subr.mxu0 0.0
        %1070 = vmatpush1.xpose.msra.mxu0 0.0
        %1071 = vmatprep.subr.mxu0 0.0
        %1072 = vmatpush1.xpose.msra.mxu0 0.0
        %1073 = vmatprep.subr.mxu0 0.0
        %1074 = vmatpush1.xpose.msra.mxu0 0.0
        %1075 = vmatprep.subr.mxu0 0.0
        %v1076 = vand.u32 %v669, 4294901760
        %1077 = vmatpush1.xpose.msra.mxu0 %v1076
        %1078 = vmatprep.subr.mxu0 0.0
        %1079 = vmatpush2.xpose.msra.mxu0 0.0
        %1080 = vmatprep.subr.mxu0 0.0
        %1081 = vmatpush2.xpose.msra.mxu0 0.0
        %1082 = vmatprep.subr.mxu0 0.0
        %1083 = vmatpush2.xpose.msra.mxu0 0.0
        %1084 = vmatprep.subr.mxu0 0.0
        %1085 = vmatpush2.xpose.msra.mxu0 0.0
        %1086 = vmatprep.subr.mxu0 0.0
        %1087 = vmatpush2.xpose.msra.mxu0 0.0
        %1088 = vmatprep.subr.mxu0 0.0
        %1089 = vmatpush2.xpose.msra.mxu0 0.0
        %1090 = vmatprep.subr.mxu0 0.0
        %1091 = vmatpush2.xpose.msra.mxu0 0.0
        %1092 = vmatprep.subr.mxu0 0.0
        %1093 = vmatpush2.xpose.msra.mxu0 0.0
        %1094 = vmatprep.subr.mxu0 0.0
        %1095 = vmatpush2.xpose.msra.mxu0 0.0
        %1096 = vmatprep.subr.mxu0 0.0
        %1097 = vmatpush2.xpose.msra.mxu0 0.0
        %1098 = vmatprep.subr.mxu0 0.0
        %1099 = vmatpush2.xpose.msra.mxu0 0.0
        %1100 = vmatprep.subr.mxu0 0.0
        %1101 = vmatpush2.xpose.msra.mxu0 0.0
        %1102 = vmatprep.subr.mxu0 0.0
        %1103 = vmatpush2.xpose.msra.mxu0 0.0
        %1104 = vmatprep.subr.mxu0 0.0
        %1105 = vmatpush2.xpose.msra.mxu0 0.0
        %1106 = vmatprep.subr.mxu0 0.0
        %1107 = vmatpush2.xpose.msra.mxu0 0.0
        %1108 = vmatprep.subr.mxu0 0.0
        %1109 = vmatpush2.xpose.msra.mxu0 0.0
        %1110 = vmatprep.mubr.f32.mxu0 0.0
        %v1111 = vand.u32 %v669, 4294901760
        %1112 = vmatmul.mubr.f32.gmra.mxu0 %v1111
        %v1113 = vpop.f32.mrf.mxu0
        %v1114 = vadd.f32 %v1042, %v1113
        %v1115 = vpop.f32.mrf.mxu0
        %1116 = vdwg.mxu0
        %v1117 = vrsqrt.pop %v1114
        %v1118 = vmul.f32 %v1114, %v1117
        %vm1119 = vcmp.eq.f32.partialorder %v1114, inf
        %v1120 = vsel %vm1119, %v1114, %v1118
        %vm1121 = vcmp.eq.f32.partialorder %v1114, 0.0
        %v1122 = vand.u32 %v1114, 2147483648
        %v1123 = vsel %vm1121, %v1122, %v1120
        %v1124 = vmax.f32 %v1123, 1e-12
        %s1125 = sld [smem:[#allocation3]]
        %v1126 = vstv %s1125
        %v1127 = vmul.f32 %v498, %v1126
        %v1128 = vsel %vm508, %v1127, 0.0
        %1129 = vadd.xlane.f32.xlu0 %v1128
        %v1130 = vpop.xlane.xlu0 %1129
        %v1131 = vrot.slane %v1130, 4
        %v1132 = vadd.f32 %v1130, %v1131
        %v1133 = vrot.slane %v1132, 2
        %v1134 = vadd.f32 %v1132, %v1133
        %v1135 = vrot.slane %v1134, 1
        %v1136 = vadd.f32 %v1134, %v1135
        %s1137 = vtos %v1136
        %v1138 = vrcp.pop 128.0
        %s1139 = vtos %v1138
        %s1140 = smul.f32 %s1137, %s1139
        %v1141 = vmul.f32 %v1127, %v1127
        %v1142 = vsel %vm508, %v1141, 0.0
        %1143 = vadd.xlane.f32.xlu0 %v1142
        %v1144 = vpop.xlane.xlu0 %1143
        %v1145 = vrot.slane %v1144, 4
        %v1146 = vadd.f32 %v1144, %v1145
        %v1147 = vrot.slane %v1146, 2
        %v1148 = vadd.f32 %v1146, %v1147
        %v1149 = vrot.slane %v1148, 1
        %v1150 = vadd.f32 %v1148, %v1149
        %s1151 = vtos %v1150
        %v1152 = vrcp.pop 128.0
        %s1153 = vtos %v1152
        %s1154 = smul.f32 %s1151, %s1153
        %s1155 = smul.f32 %s1140, %s1140
        %s1156 = ssub.f32 %s1154, %s1155
        %s1157 = smax.f32 %s1156, 0.0
        %v1158 = vstv %s1140
        %v1159 = vsub.f32 %v1127, %v1158
        %s1160 = sadd.f32 %s1157, 1e-05
        %v1161 = vstv %s1160
        %v1162 = vrsqrt.pop %v1161
        %s1163 = vtos %v1162
        %v1164 = vstv %s1163
        %v1165 = vmul.f32 %v1159, %v1164
        %v1166 = vld [vmem:[%s5] sm:$0xff]
        %v1167 = vmul.f32 %v1165, %v1166
        %v1168 = vld [vmem:[%s6] sm:$0xff]
        %v1169 = vadd.f32 %v1167, %v1168
        %v1170 = vxor.u32 %v1169, 2147483648
        %v1171 = vmul.f32 %v1170, 1.442695
        %v1172 = vpow.pop %v1171
        %v1173 = vadd.f32 %v1172, 1.0
        %v1174 = vrcp.pop %v1173
        %v1175 = vmul.f32 1.0, %v1174
        %v1176 = vld [vmem:[%s7] sm:$0xff]
        %v1177 = vld [vmem:[%s7 + $0x8] sm:$0xff]
        %v1178 = vpack.c.bf16 %v1177, %v1176
        %v1179 = vpack.c.bf16 %v489, %v489
        %vm1180 = vcmask 64512
        %v1182 = vsel %vm1180, %v1178, 0
        %vm1184 = vcmask 1043456
        %v1186 = vsel %vm1184, %v1179, 0
        %1188 = vmatprep.subr.bf16.mxu0 0
        %1189 = vmatpush1.bf16.msra.mxu0 0
        %1190 = vmatprep.subr.bf16.mxu0 0
        %1191 = vmatpush1.bf16.msra.mxu0 0
        %1192 = vmatprep.subr.bf16.mxu0 0
        %1193 = vmatpush1.bf16.msra.mxu0 0
        %1194 = vmatprep.subr.bf16.mxu0 0
        %1195 = vmatpush1.bf16.msra.mxu0 0
        %1196 = vmatprep.subr.bf16.mxu0 0
        %1197 = vmatpush1.bf16.msra.mxu0 0
        %1198 = vmatprep.subr.bf16.mxu0 0
        %1199 = vmatpush1.bf16.msra.mxu0 0
        %1200 = vmatprep.subr.bf16.mxu0 0
        %1201 = vmatpush1.bf16.msra.mxu0 0
        %1202 = vmatprep.subr.bf16.mxu0 0
        %1203 = vmatpush1.bf16.msra.mxu0 %v1186
        %1204 = vmatprep.subr.bf16.mxu0 0
        %1205 = vmatpush2.bf16.msra.mxu0 0
        %1206 = vmatprep.subr.bf16.mxu0 0
        %1207 = vmatpush2.bf16.msra.mxu0 0
        %1208 = vmatprep.subr.bf16.mxu0 0
        %1209 = vmatpush2.bf16.msra.mxu0 0
        %1210 = vmatprep.subr.bf16.mxu0 0
        %1211 = vmatpush2.bf16.msra.mxu0 0
        %1212 = vmatprep.subr.bf16.mxu0 0
        %1213 = vmatpush2.bf16.msra.mxu0 0
        %1214 = vmatprep.subr.bf16.mxu0 0
        %1215 = vmatpush2.bf16.msra.mxu0 0
        %1216 = vmatprep.subr.bf16.mxu0 0
        %1217 = vmatpush2.bf16.msra.mxu0 0
        %1218 = vmatprep.subr.bf16.mxu0 0
        %1219 = vmatpush2.bf16.msra.mxu0 0
        %1220 = vmatprep.mubr.bf16.mxu0 0
        %1221 = vmatmul.mubr.bf16.gmra.mxu0 %v1182
        %v1222 = vpop.f32.mrf.mxu0
        %v1223 = vadd.f32 0.0, %v1222
        %v1224 = vpop.f32.mrf.mxu0
        %v1225 = vpop.f32.mrf.mxu0
        %v1226 = vadd.f32 0.0, %v1225
        %v1227 = vpop.f32.mrf.mxu0
        %1228 = vdwg.mxu0
        %v1229 = vsel %vm508, %v1223, 0.0
        %v1230 = vsel %vm508, %v1226, 0.0
        %v1231 = vadd.f32 %v1229, %v1230
        %1232 = vadd.xlane.f32.xlu0 %v1231
        %v1233 = vpop.xlane.xlu0 %1232
        %v1234 = vrot.slane %v1233, 4
        %v1235 = vadd.f32 %v1233, %v1234
        %v1236 = vrot.slane %v1235, 2
        %v1237 = vadd.f32 %v1235, %v1236
        %v1238 = vrot.slane %v1237, 1
        %v1239 = vadd.f32 %v1237, %v1238
        %s1240 = vtos %v1239
        %v1241 = vrcp.pop 256.0
        %s1242 = vtos %v1241
        %s1243 = smul.f32 %s1240, %s1242
        %v1244 = vmul.f32 %v1223, %v1223
        %v1245 = vmul.f32 %v1226, %v1226
        %v1246 = vsel %vm508, %v1244, 0.0
        %v1247 = vsel %vm508, %v1245, 0.0
        %v1248 = vadd.f32 %v1246, %v1247
        %1249 = vadd.xlane.f32.xlu0 %v1248
        %v1250 = vpop.xlane.xlu0 %1249
        %v1251 = vrot.slane %v1250, 4
        %v1252 = vadd.f32 %v1250, %v1251
        %v1253 = vrot.slane %v1252, 2
        %v1254 = vadd.f32 %v1252, %v1253
        %v1255 = vrot.slane %v1254, 1
        %v1256 = vadd.f32 %v1254, %v1255
        %s1257 = vtos %v1256
        %v1258 = vrcp.pop 256.0
        %s1259 = vtos %v1258
        %s1260 = smul.f32 %s1257, %s1259
        %s1261 = smul.f32 %s1243, %s1243
        %s1262 = ssub.f32 %s1260, %s1261
        %s1263 = smax.f32 %s1262, 0.0
        %v1264 = vstv %s1243
        %v1265 = vsub.f32 %v1223, %v1264
        %v1266 = vsub.f32 %v1226, %v1264
        %s1267 = sadd.f32 %s1263, 1e-05
        %v1268 = vstv %s1267
        %v1269 = vrsqrt.pop %v1268
        %s1270 = vtos %v1269
        %v1271 = vstv %s1270
        %v1272 = vmul.f32 %v1265, %v1271
        %v1273 = vmul.f32 %v1266, %v1271
        %v1274 = vld [vmem:[%s10] sm:$0xff]
        %v1275 = vld [vmem:[%s10 + $0x8] sm:$0xff]
        %v1276 = vpack.c.bf16 %v1275, %v1274
        %v1277 = vlaneseq
        %v1278 = vshrl.u32 %v1277, 7
        %v1279 = vsub.s32 0, %v1278
        %v1280 = vrot.slane %v624, %v1279
        %v1281 = vmul.f32 %v624, %v1280
        %v1282 = vmul.f32 %v626, %v1280
        %v1283 = vmul.f32 %v628, %v1280
        %v1284 = vmul.f32 %v630, %v1280
        %v1285 = vmul.f32 %v632, %v1280
        %v1286 = vmul.f32 %v634, %v1280
        %v1287 = vmul.f32 %v636, %v1280
        %v1288 = vmul.f32 %v638, %v1280
        %1290 = vset.pattern.permute.xlu0 0
        %1291 = vperm.xlu0 %1290, %v1124
        %v1292 = vpop.permute.xlu0 %1291
        %v1293 = vrot.slane %v1292, 1
        %v1294 = vrot.slane %v1292, 2
        %v1295 = vrot.slane %v1292, 3
        %v1296 = vrot.slane %v1292, 4
        %v1297 = vrot.slane %v1292, 5
        %v1298 = vrot.slane %v1292, 6
        %v1299 = vrot.slane %v1292, 7
        %v1308 = vrcp.pop %v1292
        %v1309 = vmul.f32 %v1281, %v1308
        %v1310 = vrcp.pop %v1293
        %v1311 = vmul.f32 %v1282, %v1310
        %v1312 = vrcp.pop %v1294
        %v1313 = vmul.f32 %v1283, %v1312
        %v1314 = vrcp.pop %v1295
        %v1315 = vmul.f32 %v1284, %v1314
        %v1316 = vrcp.pop %v1296
        %v1317 = vmul.f32 %v1285, %v1316
        %v1318 = vrcp.pop %v1297
        %v1319 = vmul.f32 %v1286, %v1318
        %v1320 = vrcp.pop %v1298
        %v1321 = vmul.f32 %v1287, %v1320
        %v1322 = vrcp.pop %v1299
        %v1323 = vmul.f32 %v1288, %v1322
        %v1332 = vrot.slane %v1311, 7
        %v1333 = vsel %vm581, %v1332, %v1309
        %v1334 = vrot.slane %v1313, 6
        %v1335 = vsel %vm583, %v1334, %v1333
        %v1336 = vrot.slane %v1315, 5
        %v1337 = vsel %vm585, %v1336, %v1335
        %v1338 = vrot.slane %v1317, 4
        %v1339 = vsel %vm587, %v1338, %v1337
        %v1340 = vrot.slane %v1319, 3
        %v1341 = vsel %vm589, %v1340, %v1339
        %v1342 = vrot.slane %v1321, 2
        %v1343 = vsel %vm591, %v1342, %v1341
        %v1344 = vrot.slane %v1323, 1
        %v1345 = vsel %vm593, %v1344, %v1343
        %v1347 = vld [vmem:[%s8] sm:$0xff]
        %v1348 = vld [vmem:[%s8 + $0x8] sm:$0xff]
        %v1349 = vmul.f32 %v1272, %v1347
        %v1350 = vmul.f32 %v1273, %v1348
        %v1351 = vld [vmem:[%s9] sm:$0xff]
        %v1352 = vld [vmem:[%s9 + $0x8] sm:$0xff]
        %v1353 = vadd.f32 %v1349, %v1351
        %v1354 = vadd.f32 %v1350, %v1352
        %v1355 = vxor.u32 %v1353, 2147483648
        %v1356 = vxor.u32 %v1354, 2147483648
        %v1357 = vmul.f32 %v1355, 1.442695
        %v1358 = vpow.pop %v1357
        %v1359 = vmul.f32 %v1356, 1.442695
        %v1360 = vpow.pop %v1359
        %v1361 = vadd.f32 %v1358, 1.0
        %v1362 = vadd.f32 %v1360, 1.0
        %v1363 = vrcp.pop %v1361
        %v1364 = vmul.f32 1.0, %v1363
        %v1365 = vrcp.pop %v1362
        %v1366 = vmul.f32 1.0, %v1365
        %v1367 = vlaneseq
        %v1368 = vshrl.u32 %v1367, 7
        %v1369 = vsub.s32 0, %v1368
        %v1370 = vrot.slane %v1175, %v1369
        %v1371 = vmul.f32 %v1370, %v490
        %v1372 = vmul.f32 %v1370, %v1345
        %v1373 = vadd.f32 %v1371, %v1364
        %v1374 = vadd.f32 %v1372, %v1366
        %v1375 = vpack.c.bf16 %v1374, %v1373
        %v1377 = vsel %vm508, %v1276, 0
        %1379 = vmatprep.subr.bf16.mxu0 0
        %1380 = vmatpush1.bf16.msra.mxu0 0
        %1381 = vmatprep.subr.bf16.mxu0 0
        %1382 = vmatpush1.bf16.msra.mxu0 0
        %1383 = vmatprep.subr.bf16.mxu0 0
        %1384 = vmatpush1.bf16.msra.mxu0 0
        %1385 = vmatprep.subr.bf16.mxu0 0
        %1386 = vmatpush1.bf16.msra.mxu0 0
        %1387 = vmatprep.subr.bf16.mxu0 0
        %1388 = vmatpush1.bf16.msra.mxu0 0
        %1389 = vmatprep.subr.bf16.mxu0 0
        %1390 = vmatpush1.bf16.msra.mxu0 0
        %1391 = vmatprep.subr.bf16.mxu0 0
        %1392 = vmatpush1.bf16.msra.mxu0 0
        %1393 = vmatprep.subr.bf16.mxu0 0
        %1394 = vmatpush1.bf16.msra.mxu0 %v1375
        %1395 = vmatprep.subr.bf16.mxu0 0
        %1396 = vmatpush2.bf16.msra.mxu0 0
        %1397 = vmatprep.subr.bf16.mxu0 0
        %1398 = vmatpush2.bf16.msra.mxu0 0
        %1399 = vmatprep.subr.bf16.mxu0 0
        %1400 = vmatpush2.bf16.msra.mxu0 0
        %1401 = vmatprep.subr.bf16.mxu0 0
        %1402 = vmatpush2.bf16.msra.mxu0 0
        %1403 = vmatprep.subr.bf16.mxu0 0
        %1404 = vmatpush2.bf16.msra.mxu0 0
        %1405 = vmatprep.subr.bf16.mxu0 0
        %1406 = vmatpush2.bf16.msra.mxu0 0
        %1407 = vmatprep.subr.bf16.mxu0 0
        %1408 = vmatpush2.bf16.msra.mxu0 0
        %1409 = vmatprep.subr.bf16.mxu0 0
        %1410 = vmatpush2.bf16.msra.mxu0 0
        %1411 = vmatprep.mubr.bf16.mxu0 0
        %1412 = vmatmul.mubr.bf16.gmra.mxu0 %v1377
        %v1413 = vpop.f32.mrf.mxu0
        %v1414 = vadd.f32 0.0, %v1413
        %v1415 = vpop.f32.mrf.mxu0
        %v1416 = vpop.f32.mrf.mxu0
        %v1417 = vadd.f32 0.0, %v1416
        %v1418 = vpop.f32.mrf.mxu0
        %1419 = vdwg.mxu0
        %1420 = vst.msk [vmem:[#allocation2] sm:$0xff] %vm508, %v1414
        %1421 = vst.msk [vmem:[#allocation2 + $0x8] sm:$0xff] %vm508, %v1417
        %v1422 = vsel %vm508, %v1414, 0.0
        %v1423 = vsel %vm508, %v1417, 0.0
        %v1424 = vadd.f32 %v1422, %v1423
        %1425 = vadd.xlane.f32.xlu0 %v1424
        %v1426 = vpop.xlane.xlu0 %1425
        %v1427 = vrot.slane %v1426, 4
        %v1428 = vadd.f32 %v1426, %v1427
        %v1429 = vrot.slane %v1428, 2
        %v1430 = vadd.f32 %v1428, %v1429
        %v1431 = vrot.slane %v1430, 1
        %v1432 = vadd.f32 %v1430, %v1431
        %s1433 = vtos %v1432
        %s1434 = sadd.f32 %s1433, 0.0
        %v1435 = vmul.f32 %v1414, %v1414
        %v1436 = vmul.f32 %v1417, %v1417
        %v1437 = vsel %vm508, %v1435, 0.0
        %v1438 = vsel %vm508, %v1436, 0.0
        %v1439 = vadd.f32 %v1437, %v1438
        %1440 = vadd.xlane.f32.xlu0 %v1439
        %v1441 = vpop.xlane.xlu0 %1440
        %v1442 = vrot.slane %v1441, 4
        %v1443 = vadd.f32 %v1441, %v1442
        %v1444 = vrot.slane %v1443, 2
        %v1445 = vadd.f32 %v1443, %v1444
        %v1446 = vrot.slane %v1445, 1
        %v1447 = vadd.f32 %v1445, %v1446
        %s1448 = vtos %v1447
        %s1449 = sadd.f32 %s1448, 0.0
        %v1450 = vlaneseq
        %v1451 = vshrl.u32 %v1450, 7
        %v1452 = vsub.s32 0, %v1451
        %v1453 = vrot.slane %v626, %v1452
        %v1454 = vmul.f32 %v624, %v1453
        %v1455 = vmul.f32 %v626, %v1453
        %v1456 = vmul.f32 %v628, %v1453
        %v1457 = vmul.f32 %v630, %v1453
        %v1458 = vmul.f32 %v632, %v1453
        %v1459 = vmul.f32 %v634, %v1453
        %v1460 = vmul.f32 %v636, %v1453
        %v1461 = vmul.f32 %v638, %v1453
        %1462 = vset.pattern.permute.xlu0 1
        %1463 = vperm.xlu0 %1462, %v1124
        %v1464 = vpop.permute.xlu0 %1463
        %v1465 = vrot.slane %v1464, 1
        %v1466 = vrot.slane %v1464, 2
        %v1467 = vrot.slane %v1464, 3
        %v1468 = vrot.slane %v1464, 4
        %v1469 = vrot.slane %v1464, 5
        %v1470 = vrot.slane %v1464, 6
        %v1471 = vrot.slane %v1464, 7
        %v1480 = vrcp.pop %v1464
        %v1481 = vmul.f32 %v1454, %v1480
        %v1482 = vrcp.pop %v1465
        %v1483 = vmul.f32 %v1455, %v1482
        %v1484 = vrcp.pop %v1466
        %v1485 = vmul.f32 %v1456, %v1484
        %v1486 = vrcp.pop %v1467
        %v1487 = vmul.f32 %v1457, %v1486
        %v1488 = vrcp.pop %v1468
        %v1489 = vmul.f32 %v1458, %v1488
        %v1490 = vrcp.pop %v1469
        %v1491 = vmul.f32 %v1459, %v1490
        %v1492 = vrcp.pop %v1470
        %v1493 = vmul.f32 %v1460, %v1492
        %v1494 = vrcp.pop %v1471
        %v1495 = vmul.f32 %v1461, %v1494
        %v1504 = vrot.slane %v1483, 7
        %v1505 = vsel %vm581, %v1504, %v1481
        %v1506 = vrot.slane %v1485, 6
        %v1507 = vsel %vm583, %v1506, %v1505
        %v1508 = vrot.slane %v1487, 5
        %v1509 = vsel %vm585, %v1508, %v1507
        %v1510 = vrot.slane %v1489, 4
        %v1511 = vsel %vm587, %v1510, %v1509
        %v1512 = vrot.slane %v1491, 3
        %v1513 = vsel %vm589, %v1512, %v1511
        %v1514 = vrot.slane %v1493, 2
        %v1515 = vsel %vm591, %v1514, %v1513
        %v1516 = vrot.slane %v1495, 1
        %v1517 = vsel %vm593, %v1516, %v1515
        %s1519 = scalar_lea.vmem %s8, 16
        %v1520 = vld [vmem:[%s1519] sm:$0xff]
        %v1521 = vld [vmem:[%s1519 + $0x8] sm:$0xff]
        %v1522 = vmul.f32 %v1272, %v1520
        %v1523 = vmul.f32 %v1273, %v1521
        %s1524 = scalar_lea.vmem %s9, 16
        %v1525 = vld [vmem:[%s1524] sm:$0xff]
        %v1526 = vld [vmem:[%s1524 + $0x8] sm:$0xff]
        %v1527 = vadd.f32 %v1522, %v1525
        %v1528 = vadd.f32 %v1523, %v1526
        %v1529 = vxor.u32 %v1527, 2147483648
        %v1530 = vxor.u32 %v1528, 2147483648
        %v1531 = vmul.f32 %v1529, 1.442695
        %v1532 = vpow.pop %v1531
        %v1533 = vmul.f32 %v1530, 1.442695
        %v1534 = vpow.pop %v1533
        %v1535 = vadd.f32 %v1532, 1.0
        %v1536 = vadd.f32 %v1534, 1.0
        %v1537 = vrcp.pop %v1535
        %v1538 = vmul.f32 1.0, %v1537
        %v1539 = vrcp.pop %v1536
        %v1540 = vmul.f32 1.0, %v1539
        %v1541 = vlaneseq
        %v1542 = vshrl.u32 %v1541, 7
        %v1543 = vsub.s32 1, %v1542
        %v1544 = vrot.slane %v1175, %v1543
        %v1545 = vmul.f32 %v1544, %v491
        %v1546 = vmul.f32 %v1544, %v1517
        %v1547 = vadd.f32 %v1545, %v1538
        %v1548 = vadd.f32 %v1546, %v1540
        %v1549 = vpack.c.bf16 %v1548, %v1547
        %1550 = vmatprep.subr.bf16.mxu0 0
        %1551 = vmatpush1.bf16.msra.mxu0 0
        %1552 = vmatprep.subr.bf16.mxu0 0
        %1553 = vmatpush1.bf16.msra.mxu0 0
        %1554 = vmatprep.subr.bf16.mxu0 0
        %1555 = vmatpush1.bf16.msra.mxu0 0
        %1556 = vmatprep.subr.bf16.mxu0 0
        %1557 = vmatpush1.bf16.msra.mxu0 0
        %1558 = vmatprep.subr.bf16.mxu0 0
        %1559 = vmatpush1.bf16.msra.mxu0 0
        %1560 = vmatprep.subr.bf16.mxu0 0
        %1561 = vmatpush1.bf16.msra.mxu0 0
        %1562 = vmatprep.subr.bf16.mxu0 0
        %1563 = vmatpush1.bf16.msra.mxu0 0
        %1564 = vmatprep.subr.bf16.mxu0 0
        %1565 = vmatpush1.bf16.msra.mxu0 %v1549
        %1566 = vmatprep.subr.bf16.mxu0 0
        %1567 = vmatpush2.bf16.msra.mxu0 0
        %1568 = vmatprep.subr.bf16.mxu0 0
        %1569 = vmatpush2.bf16.msra.mxu0 0
        %1570 = vmatprep.subr.bf16.mxu0 0
        %1571 = vmatpush2.bf16.msra.mxu0 0
        %1572 = vmatprep.subr.bf16.mxu0 0
        %1573 = vmatpush2.bf16.msra.mxu0 0
        %1574 = vmatprep.subr.bf16.mxu0 0
        %1575 = vmatpush2.bf16.msra.mxu0 0
        %1576 = vmatprep.subr.bf16.mxu0 0
        %1577 = vmatpush2.bf16.msra.mxu0 0
        %1578 = vmatprep.subr.bf16.mxu0 0
        %1579 = vmatpush2.bf16.msra.mxu0 0
        %1580 = vmatprep.subr.bf16.mxu0 0
        %1581 = vmatpush2.bf16.msra.mxu0 0
        %1582 = vmatprep.mubr.bf16.mxu0 0
        %1583 = vmatmul.mubr.bf16.gmra.mxu0 %v1377
        %v1584 = vpop.f32.mrf.mxu0
        %v1585 = vadd.f32 0.0, %v1584
        %v1586 = vpop.f32.mrf.mxu0
        %v1587 = vpop.f32.mrf.mxu0
        %v1588 = vadd.f32 0.0, %v1587
        %v1589 = vpop.f32.mrf.mxu0
        %1590 = vdwg.mxu0
        %s1591 = scalar_lea.vmem [#allocation2], 16
        %1592 = vst.msk [vmem:[%s1591] sm:$0xff] %vm508, %v1585
        %1593 = vst.msk [vmem:[%s1591 + $0x8] sm:$0xff] %vm508, %v1588
        %v1594 = vsel %vm508, %v1585, 0.0
        %v1595 = vsel %vm508, %v1588, 0.0
        %v1596 = vadd.f32 %v1594, %v1595
        %1597 = vadd.xlane.f32.xlu0 %v1596
        %v1598 = vpop.xlane.xlu0 %1597
        %v1599 = vrot.slane %v1598, 4
        %v1600 = vadd.f32 %v1598, %v1599
        %v1601 = vrot.slane %v1600, 2
        %v1602 = vadd.f32 %v1600, %v1601
        %v1603 = vrot.slane %v1602, 1
        %v1604 = vadd.f32 %v1602, %v1603
        %s1605 = vtos %v1604
        %s1606 = sadd.f32 %s1434, %s1605
        %v1607 = vmul.f32 %v1585, %v1585
        %v1608 = vmul.f32 %v1588, %v1588
        %v1609 = vsel %vm508, %v1607, 0.0
        %v1610 = vsel %vm508, %v1608, 0.0
        %v1611 = vadd.f32 %v1609, %v1610
        %1612 = vadd.xlane.f32.xlu0 %v1611
        %v1613 = vpop.xlane.xlu0 %1612
        %v1614 = vrot.slane %v1613, 4
        %v1615 = vadd.f32 %v1613, %v1614
        %v1616 = vrot.slane %v1615, 2
        %v1617 = vadd.f32 %v1615, %v1616
        %v1618 = vrot.slane %v1617, 1
        %v1619 = vadd.f32 %v1617, %v1618
        %s1620 = vtos %v1619
        %s1621 = sadd.f32 %s1449, %s1620
        %v1622 = vlaneseq
        %v1623 = vshrl.u32 %v1622, 7
        %v1624 = vsub.s32 0, %v1623
        %v1625 = vrot.slane %v628, %v1624
        %v1626 = vmul.f32 %v624, %v1625
        %v1627 = vmul.f32 %v626, %v1625
        %v1628 = vmul.f32 %v628, %v1625
        %v1629 = vmul.f32 %v630, %v1625
        %v1630 = vmul.f32 %v632, %v1625
        %v1631 = vmul.f32 %v634, %v1625
        %v1632 = vmul.f32 %v636, %v1625
        %v1633 = vmul.f32 %v638, %v1625
        %1634 = vset.pattern.permute.xlu0 2
        %1635 = vperm.xlu0 %1634, %v1124
        %v1636 = vpop.permute.xlu0 %1635
        %v1637 = vrot.slane %v1636, 1
        %v1638 = vrot.slane %v1636, 2
        %v1639 = vrot.slane %v1636, 3
        %v1640 = vrot.slane %v1636, 4
        %v1641 = vrot.slane %v1636, 5
        %v1642 = vrot.slane %v1636, 6
        %v1643 = vrot.slane %v1636, 7
        %v1652 = vrcp.pop %v1636
        %v1653 = vmul.f32 %v1626, %v1652
        %v1654 = vrcp.pop %v1637
        %v1655 = vmul.f32 %v1627, %v1654
        %v1656 = vrcp.pop %v1638
        %v1657 = vmul.f32 %v1628, %v1656
        %v1658 = vrcp.pop %v1639
        %v1659 = vmul.f32 %v1629, %v1658
        %v1660 = vrcp.pop %v1640
        %v1661 = vmul.f32 %v1630, %v1660
        %v1662 = vrcp.pop %v1641
        %v1663 = vmul.f32 %v1631, %v1662
        %v1664 = vrcp.pop %v1642
        %v1665 = vmul.f32 %v1632, %v1664
        %v1666 = vrcp.pop %v1643
        %v1667 = vmul.f32 %v1633, %v1666
        %v1676 = vrot.slane %v1655, 7
        %v1677 = vsel %vm581, %v1676, %v1653
        %v1678 = vrot.slane %v1657, 6
        %v1679 = vsel %vm583, %v1678, %v1677
        %v1680 = vrot.slane %v1659, 5
        %v1681 = vsel %vm585, %v1680, %v1679
        %v1682 = vrot.slane %v1661, 4
        %v1683 = vsel %vm587, %v1682, %v1681
        %v1684 = vrot.slane %v1663, 3
        %v1685 = vsel %vm589, %v1684, %v1683
        %v1686 = vrot.slane %v1665, 2
        %v1687 = vsel %vm591, %v1686, %v1685
        %v1688 = vrot.slane %v1667, 1
        %v1689 = vsel %vm593, %v1688, %v1687
        %s1691 = scalar_lea.vmem %s8, 32
        %v1692 = vld [vmem:[%s1691] sm:$0xff]
        %v1693 = vld [vmem:[%s1691 + $0x8] sm:$0xff]
        %v1694 = vmul.f32 %v1272, %v1692
        %v1695 = vmul.f32 %v1273, %v1693
        %s1696 = scalar_lea.vmem %s9, 32
        %v1697 = vld [vmem:[%s1696] sm:$0xff]
        %v1698 = vld [vmem:[%s1696 + $0x8] sm:$0xff]
        %v1699 = vadd.f32 %v1694, %v1697
        %v1700 = vadd.f32 %v1695, %v1698
        %v1701 = vxor.u32 %v1699, 2147483648
        %v1702 = vxor.u32 %v1700, 2147483648
        %v1703 = vmul.f32 %v1701, 1.442695
        %v1704 = vpow.pop %v1703
        %v1705 = vmul.f32 %v1702, 1.442695
        %v1706 = vpow.pop %v1705
        %v1707 = vadd.f32 %v1704, 1.0
        %v1708 = vadd.f32 %v1706, 1.0
        %v1709 = vrcp.pop %v1707
        %v1710 = vmul.f32 1.0, %v1709
        %v1711 = vrcp.pop %v1708
        %v1712 = vmul.f32 1.0, %v1711
        %v1713 = vlaneseq
        %v1714 = vshrl.u32 %v1713, 7
        %v1715 = vsub.s32 2, %v1714
        %v1716 = vrot.slane %v1175, %v1715
        %v1717 = vmul.f32 %v1716, %v492
        %v1718 = vmul.f32 %v1716, %v1689
        %v1719 = vadd.f32 %v1717, %v1710
        %v1720 = vadd.f32 %v1718, %v1712
        %v1721 = vpack.c.bf16 %v1720, %v1719
        %1722 = vmatprep.subr.bf16.mxu0 0
        %1723 = vmatpush1.bf16.msra.mxu0 0
        %1724 = vmatprep.subr.bf16.mxu0 0
        %1725 = vmatpush1.bf16.msra.mxu0 0
        %1726 = vmatprep.subr.bf16.mxu0 0
        %1727 = vmatpush1.bf16.msra.mxu0 0
        %1728 = vmatprep.subr.bf16.mxu0 0
        %1729 = vmatpush1.bf16.msra.mxu0 0
        %1730 = vmatprep.subr.bf16.mxu0 0
        %1731 = vmatpush1.bf16.msra.mxu0 0
        %1732 = vmatprep.subr.bf16.mxu0 0
        %1733 = vmatpush1.bf16.msra.mxu0 0
        %1734 = vmatprep.subr.bf16.mxu0 0
        %1735 = vmatpush1.bf16.msra.mxu0 0
        %1736 = vmatprep.subr.bf16.mxu0 0
        %1737 = vmatpush1.bf16.msra.mxu0 %v1721
        %1738 = vmatprep.subr.bf16.mxu0 0
        %1739 = vmatpush2.bf16.msra.mxu0 0
        %1740 = vmatprep.subr.bf16.mxu0 0
        %1741 = vmatpush2.bf16.msra.mxu0 0
        %1742 = vmatprep.subr.bf16.mxu0 0
        %1743 = vmatpush2.bf16.msra.mxu0 0
        %1744 = vmatprep.subr.bf16.mxu0 0
        %1745 = vmatpush2.bf16.msra.mxu0 0
        %1746 = vmatprep.subr.bf16.mxu0 0
        %1747 = vmatpush2.bf16.msra.mxu0 0
        %1748 = vmatprep.subr.bf16.mxu0 0
        %1749 = vmatpush2.bf16.msra.mxu0 0
        %1750 = vmatprep.subr.bf16.mxu0 0
        %1751 = vmatpush2.bf16.msra.mxu0 0
        %1752 = vmatprep.subr.bf16.mxu0 0
        %1753 = vmatpush2.bf16.msra.mxu0 0
        %1754 = vmatprep.mubr.bf16.mxu0 0
        %1755 = vmatmul.mubr.bf16.gmra.mxu0 %v1377
        %v1756 = vpop.f32.mrf.mxu0
        %v1757 = vadd.f32 0.0, %v1756
        %v1758 = vpop.f32.mrf.mxu0
        %v1759 = vpop.f32.mrf.mxu0
        %v1760 = vadd.f32 0.0, %v1759
        %v1761 = vpop.f32.mrf.mxu0
        %1762 = vdwg.mxu0
        %s1763 = scalar_lea.vmem [#allocation2], 32
        %1764 = vst.msk [vmem:[%s1763] sm:$0xff] %vm508, %v1757
        %1765 = vst.msk [vmem:[%s1763 + $0x8] sm:$0xff] %vm508, %v1760
        %v1766 = vsel %vm508, %v1757, 0.0
        %v1767 = vsel %vm508, %v1760, 0.0
        %v1768 = vadd.f32 %v1766, %v1767
        %1769 = vadd.xlane.f32.xlu0 %v1768
        %v1770 = vpop.xlane.xlu0 %1769
        %v1771 = vrot.slane %v1770, 4
        %v1772 = vadd.f32 %v1770, %v1771
        %v1773 = vrot.slane %v1772, 2
        %v1774 = vadd.f32 %v1772, %v1773
        %v1775 = vrot.slane %v1774, 1
        %v1776 = vadd.f32 %v1774, %v1775
        %s1777 = vtos %v1776
        %s1778 = sadd.f32 %s1606, %s1777
        %v1779 = vmul.f32 %v1757, %v1757
        %v1780 = vmul.f32 %v1760, %v1760
        %v1781 = vsel %vm508, %v1779, 0.0
        %v1782 = vsel %vm508, %v1780, 0.0
        %v1783 = vadd.f32 %v1781, %v1782
        %1784 = vadd.xlane.f32.xlu0 %v1783
        %v1785 = vpop.xlane.xlu0 %1784
        %v1786 = vrot.slane %v1785, 4
        %v1787 = vadd.f32 %v1785, %v1786
        %v1788 = vrot.slane %v1787, 2
        %v1789 = vadd.f32 %v1787, %v1788
        %v1790 = vrot.slane %v1789, 1
        %v1791 = vadd.f32 %v1789, %v1790
        %s1792 = vtos %v1791
        %s1793 = sadd.f32 %s1621, %s1792
        %v1794 = vlaneseq
        %v1795 = vshrl.u32 %v1794, 7
        %v1796 = vsub.s32 0, %v1795
        %v1797 = vrot.slane %v630, %v1796
        %v1798 = vmul.f32 %v624, %v1797
        %v1799 = vmul.f32 %v626, %v1797
        %v1800 = vmul.f32 %v628, %v1797
        %v1801 = vmul.f32 %v630, %v1797
        %v1802 = vmul.f32 %v632, %v1797
        %v1803 = vmul.f32 %v634, %v1797
        %v1804 = vmul.f32 %v636, %v1797
        %v1805 = vmul.f32 %v638, %v1797
        %1806 = vset.pattern.permute.xlu0 3
        %1807 = vperm.xlu0 %1806, %v1124
        %v1808 = vpop.permute.xlu0 %1807
        %v1809 = vrot.slane %v1808, 1
        %v1810 = vrot.slane %v1808, 2
        %v1811 = vrot.slane %v1808, 3
        %v1812 = vrot.slane %v1808, 4
        %v1813 = vrot.slane %v1808, 5
        %v1814 = vrot.slane %v1808, 6
        %v1815 = vrot.slane %v1808, 7
        %v1824 = vrcp.pop %v1808
        %v1825 = vmul.f32 %v1798, %v1824
        %v1826 = vrcp.pop %v1809
        %v1827 = vmul.f32 %v1799, %v1826
        %v1828 = vrcp.pop %v1810
        %v1829 = vmul.f32 %v1800, %v1828
        %v1830 = vrcp.pop %v1811
        %v1831 = vmul.f32 %v1801, %v1830
        %v1832 = vrcp.pop %v1812
        %v1833 = vmul.f32 %v1802, %v1832
        %v1834 = vrcp.pop %v1813
        %v1835 = vmul.f32 %v1803, %v1834
        %v1836 = vrcp.pop %v1814
        %v1837 = vmul.f32 %v1804, %v1836
        %v1838 = vrcp.pop %v1815
        %v1839 = vmul.f32 %v1805, %v1838
        %v1848 = vrot.slane %v1827, 7
        %v1849 = vsel %vm581, %v1848, %v1825
        %v1850 = vrot.slane %v1829, 6
        %v1851 = vsel %vm583, %v1850, %v1849
        %v1852 = vrot.slane %v1831, 5
        %v1853 = vsel %vm585, %v1852, %v1851
        %v1854 = vrot.slane %v1833, 4
        %v1855 = vsel %vm587, %v1854, %v1853
        %v1856 = vrot.slane %v1835, 3
        %v1857 = vsel %vm589, %v1856, %v1855
        %v1858 = vrot.slane %v1837, 2
        %v1859 = vsel %vm591, %v1858, %v1857
        %v1860 = vrot.slane %v1839, 1
        %v1861 = vsel %vm593, %v1860, %v1859
        %s1863 = scalar_lea.vmem %s8, 48
        %v1864 = vld [vmem:[%s1863] sm:$0xff]
        %v1865 = vld [vmem:[%s1863 + $0x8] sm:$0xff]
        %v1866 = vmul.f32 %v1272, %v1864
        %v1867 = vmul.f32 %v1273, %v1865
        %s1868 = scalar_lea.vmem %s9, 48
        %v1869 = vld [vmem:[%s1868] sm:$0xff]
        %v1870 = vld [vmem:[%s1868 + $0x8] sm:$0xff]
        %v1871 = vadd.f32 %v1866, %v1869
        %v1872 = vadd.f32 %v1867, %v1870
        %v1873 = vxor.u32 %v1871, 2147483648
        %v1874 = vxor.u32 %v1872, 2147483648
        %v1875 = vmul.f32 %v1873, 1.442695
        %v1876 = vpow.pop %v1875
        %v1877 = vmul.f32 %v1874, 1.442695
        %v1878 = vpow.pop %v1877
        %v1879 = vadd.f32 %v1876, 1.0
        %v1880 = vadd.f32 %v1878, 1.0
        %v1881 = vrcp.pop %v1879
        %v1882 = vmul.f32 1.0, %v1881
        %v1883 = vrcp.pop %v1880
        %v1884 = vmul.f32 1.0, %v1883
        %v1885 = vlaneseq
        %v1886 = vshrl.u32 %v1885, 7
        %v1887 = vsub.s32 3, %v1886
        %v1888 = vrot.slane %v1175, %v1887
        %v1889 = vmul.f32 %v1888, %v493
        %v1890 = vmul.f32 %v1888, %v1861
        %v1891 = vadd.f32 %v1889, %v1882
        %v1892 = vadd.f32 %v1890, %v1884
        %v1893 = vpack.c.bf16 %v1892, %v1891
        %1894 = vmatprep.subr.bf16.mxu0 0
        %1895 = vmatpush1.bf16.msra.mxu0 0
        %1896 = vmatprep.subr.bf16.mxu0 0
        %1897 = vmatpush1.bf16.msra.mxu0 0
        %1898 = vmatprep.subr.bf16.mxu0 0
        %1899 = vmatpush1.bf16.msra.mxu0 0
        %1900 = vmatprep.subr.bf16.mxu0 0
        %1901 = vmatpush1.bf16.msra.mxu0 0
        %1902 = vmatprep.subr.bf16.mxu0 0
        %1903 = vmatpush1.bf16.msra.mxu0 0
        %1904 = vmatprep.subr.bf16.mxu0 0
        %1905 = vmatpush1.bf16.msra.mxu0 0
        %1906 = vmatprep.subr.bf16.mxu0 0
        %1907 = vmatpush1.bf16.msra.mxu0 0
        %1908 = vmatprep.subr.bf16.mxu0 0
        %1909 = vmatpush1.bf16.msra.mxu0 %v1893
        %1910 = vmatprep.subr.bf16.mxu0 0
        %1911 = vmatpush2.bf16.msra.mxu0 0
        %1912 = vmatprep.subr.bf16.mxu0 0
        %1913 = vmatpush2.bf16.msra.mxu0 0
        %1914 = vmatprep.subr.bf16.mxu0 0
        %1915 = vmatpush2.bf16.msra.mxu0 0
        %1916 = vmatprep.subr.bf16.mxu0 0
        %1917 = vmatpush2.bf16.msra.mxu0 0
        %1918 = vmatprep.subr.bf16.mxu0 0
        %1919 = vmatpush2.bf16.msra.mxu0 0
        %1920 = vmatprep.subr.bf16.mxu0 0
        %1921 = vmatpush2.bf16.msra.mxu0 0
        %1922 = vmatprep.subr.bf16.mxu0 0
        %1923 = vmatpush2.bf16.msra.mxu0 0
        %1924 = vmatprep.subr.bf16.mxu0 0
        %1925 = vmatpush2.bf16.msra.mxu0 0
        %1926 = vmatprep.mubr.bf16.mxu0 0
        %1927 = vmatmul.mubr.bf16.gmra.mxu0 %v1377
        %v1928 = vpop.f32.mrf.mxu0
        %v1929 = vadd.f32 0.0, %v1928
        %v1930 = vpop.f32.mrf.mxu0
        %v1931 = vpop.f32.mrf.mxu0
        %v1932 = vadd.f32 0.0, %v1931
        %v1933 = vpop.f32.mrf.mxu0
        %1934 = vdwg.mxu0
        %s1935 = scalar_lea.vmem [#allocation2], 48
        %1936 = vst.msk [vmem:[%s1935] sm:$0xff] %vm508, %v1929
        %1937 = vst.msk [vmem:[%s1935 + $0x8] sm:$0xff] %vm508, %v1932
        %v1938 = vsel %vm508, %v1929, 0.0
        %v1939 = vsel %vm508, %v1932, 0.0
        %v1940 = vadd.f32 %v1938, %v1939
        %1941 = vadd.xlane.f32.xlu0 %v1940
        %v1942 = vpop.xlane.xlu0 %1941
        %v1943 = vrot.slane %v1942, 4
        %v1944 = vadd.f32 %v1942, %v1943
        %v1945 = vrot.slane %v1944, 2
        %v1946 = vadd.f32 %v1944, %v1945
        %v1947 = vrot.slane %v1946, 1
        %v1948 = vadd.f32 %v1946, %v1947
        %s1949 = vtos %v1948
        %s1950 = sadd.f32 %s1778, %s1949
        %v1951 = vmul.f32 %v1929, %v1929
        %v1952 = vmul.f32 %v1932, %v1932
        %v1953 = vsel %vm508, %v1951, 0.0
        %v1954 = vsel %vm508, %v1952, 0.0
        %v1955 = vadd.f32 %v1953, %v1954
        %1956 = vadd.xlane.f32.xlu0 %v1955
        %v1957 = vpop.xlane.xlu0 %1956
        %v1958 = vrot.slane %v1957, 4
        %v1959 = vadd.f32 %v1957, %v1958
        %v1960 = vrot.slane %v1959, 2
        %v1961 = vadd.f32 %v1959, %v1960
        %v1962 = vrot.slane %v1961, 1
        %v1963 = vadd.f32 %v1961, %v1962
        %s1964 = vtos %v1963
        %s1965 = sadd.f32 %s1793, %s1964
        %v1966 = vlaneseq
        %v1967 = vshrl.u32 %v1966, 7
        %v1968 = vsub.s32 0, %v1967
        %v1969 = vrot.slane %v632, %v1968
        %v1970 = vmul.f32 %v624, %v1969
        %v1971 = vmul.f32 %v626, %v1969
        %v1972 = vmul.f32 %v628, %v1969
        %v1973 = vmul.f32 %v630, %v1969
        %v1974 = vmul.f32 %v632, %v1969
        %v1975 = vmul.f32 %v634, %v1969
        %v1976 = vmul.f32 %v636, %v1969
        %v1977 = vmul.f32 %v638, %v1969
        %1978 = vset.pattern.permute.xlu0 4
        %1979 = vperm.xlu0 %1978, %v1124
        %v1980 = vpop.permute.xlu0 %1979
        %v1981 = vrot.slane %v1980, 1
        %v1982 = vrot.slane %v1980, 2
        %v1983 = vrot.slane %v1980, 3
        %v1984 = vrot.slane %v1980, 4
        %v1985 = vrot.slane %v1980, 5
        %v1986 = vrot.slane %v1980, 6
        %v1987 = vrot.slane %v1980, 7
        %v1996 = vrcp.pop %v1980
        %v1997 = vmul.f32 %v1970, %v1996
        %v1998 = vrcp.pop %v1981
        %v1999 = vmul.f32 %v1971, %v1998
        %v2000 = vrcp.pop %v1982
        %v2001 = vmul.f32 %v1972, %v2000
        %v2002 = vrcp.pop %v1983
        %v2003 = vmul.f32 %v1973, %v2002
        %v2004 = vrcp.pop %v1984
        %v2005 = vmul.f32 %v1974, %v2004
        %v2006 = vrcp.pop %v1985
        %v2007 = vmul.f32 %v1975, %v2006
        %v2008 = vrcp.pop %v1986
        %v2009 = vmul.f32 %v1976, %v2008
        %v2010 = vrcp.pop %v1987
        %v2011 = vmul.f32 %v1977, %v2010
        %v2020 = vrot.slane %v1999, 7
        %v2021 = vsel %vm581, %v2020, %v1997
        %v2022 = vrot.slane %v2001, 6
        %v2023 = vsel %vm583, %v2022, %v2021
        %v2024 = vrot.slane %v2003, 5
        %v2025 = vsel %vm585, %v2024, %v2023
        %v2026 = vrot.slane %v2005, 4
        %v2027 = vsel %vm587, %v2026, %v2025
        %v2028 = vrot.slane %v2007, 3
        %v2029 = vsel %vm589, %v2028, %v2027
        %v2030 = vrot.slane %v2009, 2
        %v2031 = vsel %vm591, %v2030, %v2029
        %v2032 = vrot.slane %v2011, 1
        %v2033 = vsel %vm593, %v2032, %v2031
        %s2035 = scalar_lea.vmem %s8, 64
        %v2036 = vld [vmem:[%s2035] sm:$0xff]
        %v2037 = vld [vmem:[%s2035 + $0x8] sm:$0xff]
        %v2038 = vmul.f32 %v1272, %v2036
        %v2039 = vmul.f32 %v1273, %v2037
        %s2040 = scalar_lea.vmem %s9, 64
        %v2041 = vld [vmem:[%s2040] sm:$0xff]
        %v2042 = vld [vmem:[%s2040 + $0x8] sm:$0xff]
        %v2043 = vadd.f32 %v2038, %v2041
        %v2044 = vadd.f32 %v2039, %v2042
        %v2045 = vxor.u32 %v2043, 2147483648
        %v2046 = vxor.u32 %v2044, 2147483648
        %v2047 = vmul.f32 %v2045, 1.442695
        %v2048 = vpow.pop %v2047
        %v2049 = vmul.f32 %v2046, 1.442695
        %v2050 = vpow.pop %v2049
        %v2051 = vadd.f32 %v2048, 1.0
        %v2052 = vadd.f32 %v2050, 1.0
        %v2053 = vrcp.pop %v2051
        %v2054 = vmul.f32 1.0, %v2053
        %v2055 = vrcp.pop %v2052
        %v2056 = vmul.f32 1.0, %v2055
        %v2057 = vlaneseq
        %v2058 = vshrl.u32 %v2057, 7
        %v2059 = vsub.s32 4, %v2058
        %v2060 = vrot.slane %v1175, %v2059
        %v2061 = vmul.f32 %v2060, %v494
        %v2062 = vmul.f32 %v2060, %v2033
        %v2063 = vadd.f32 %v2061, %v2054
        %v2064 = vadd.f32 %v2062, %v2056
        %v2065 = vpack.c.bf16 %v2064, %v2063
        %2066 = vmatprep.subr.bf16.mxu0 0
        %2067 = vmatpush1.bf16.msra.mxu0 0
        %2068 = vmatprep.subr.bf16.mxu0 0
        %2069 = vmatpush1.bf16.msra.mxu0 0
        %2070 = vmatprep.subr.bf16.mxu0 0
        %2071 = vmatpush1.bf16.msra.mxu0 0
        %2072 = vmatprep.subr.bf16.mxu0 0
        %2073 = vmatpush1.bf16.msra.mxu0 0
        %2074 = vmatprep.subr.bf16.mxu0 0
        %2075 = vmatpush1.bf16.msra.mxu0 0
        %2076 = vmatprep.subr.bf16.mxu0 0
        %2077 = vmatpush1.bf16.msra.mxu0 0
        %2078 = vmatprep.subr.bf16.mxu0 0
        %2079 = vmatpush1.bf16.msra.mxu0 0
        %2080 = vmatprep.subr.bf16.mxu0 0
        %2081 = vmatpush1.bf16.msra.mxu0 %v2065
        %2082 = vmatprep.subr.bf16.mxu0 0
        %2083 = vmatpush2.bf16.msra.mxu0 0
        %2084 = vmatprep.subr.bf16.mxu0 0
        %2085 = vmatpush2.bf16.msra.mxu0 0
        %2086 = vmatprep.subr.bf16.mxu0 0
        %2087 = vmatpush2.bf16.msra.mxu0 0
        %2088 = vmatprep.subr.bf16.mxu0 0
        %2089 = vmatpush2.bf16.msra.mxu0 0
        %2090 = vmatprep.subr.bf16.mxu0 0
        %2091 = vmatpush2.bf16.msra.mxu0 0
        %2092 = vmatprep.subr.bf16.mxu0 0
        %2093 = vmatpush2.bf16.msra.mxu0 0
        %2094 = vmatprep.subr.bf16.mxu0 0
        %2095 = vmatpush2.bf16.msra.mxu0 0
        %2096 = vmatprep.subr.bf16.mxu0 0
        %2097 = vmatpush2.bf16.msra.mxu0 0
        %2098 = vmatprep.mubr.bf16.mxu0 0
        %2099 = vmatmul.mubr.bf16.gmra.mxu0 %v1377
        %v2100 = vpop.f32.mrf.mxu0
        %v2101 = vadd.f32 0.0, %v2100
        %v2102 = vpop.f32.mrf.mxu0
        %v2103 = vpop.f32.mrf.mxu0
        %v2104 = vadd.f32 0.0, %v2103
        %v2105 = vpop.f32.mrf.mxu0
        %2106 = vdwg.mxu0
        %s2107 = scalar_lea.vmem [#allocation2], 64
        %2108 = vst.msk [vmem:[%s2107] sm:$0xff] %vm508, %v2101
        %2109 = vst.msk [vmem:[%s2107 + $0x8] sm:$0xff] %vm508, %v2104
        %v2110 = vsel %vm508, %v2101, 0.0
        %v2111 = vsel %vm508, %v2104, 0.0
        %v2112 = vadd.f32 %v2110, %v2111
        %2113 = vadd.xlane.f32.xlu0 %v2112
        %v2114 = vpop.xlane.xlu0 %2113
        %v2115 = vrot.slane %v2114, 4
        %v2116 = vadd.f32 %v2114, %v2115
        %v2117 = vrot.slane %v2116, 2
        %v2118 = vadd.f32 %v2116, %v2117
        %v2119 = vrot.slane %v2118, 1
        %v2120 = vadd.f32 %v2118, %v2119
        %s2121 = vtos %v2120
        %s2122 = sadd.f32 %s1950, %s2121
        %v2123 = vmul.f32 %v2101, %v2101
        %v2124 = vmul.f32 %v2104, %v2104
        %v2125 = vsel %vm508, %v2123, 0.0
        %v2126 = vsel %vm508, %v2124, 0.0
        %v2127 = vadd.f32 %v2125, %v2126
        %2128 = vadd.xlane.f32.xlu0 %v2127
        %v2129 = vpop.xlane.xlu0 %2128
        %v2130 = vrot.slane %v2129, 4
        %v2131 = vadd.f32 %v2129, %v2130
        %v2132 = vrot.slane %v2131, 2
        %v2133 = vadd.f32 %v2131, %v2132
        %v2134 = vrot.slane %v2133, 1
        %v2135 = vadd.f32 %v2133, %v2134
        %s2136 = vtos %v2135
        %s2137 = sadd.f32 %s1965, %s2136
        %v2138 = vlaneseq
        %v2139 = vshrl.u32 %v2138, 7
        %v2140 = vsub.s32 0, %v2139
        %v2141 = vrot.slane %v634, %v2140
        %v2142 = vmul.f32 %v624, %v2141
        %v2143 = vmul.f32 %v626, %v2141
        %v2144 = vmul.f32 %v628, %v2141
        %v2145 = vmul.f32 %v630, %v2141
        %v2146 = vmul.f32 %v632, %v2141
        %v2147 = vmul.f32 %v634, %v2141
        %v2148 = vmul.f32 %v636, %v2141
        %v2149 = vmul.f32 %v638, %v2141
        %2150 = vset.pattern.permute.xlu0 5
        %2151 = vperm.xlu0 %2150, %v1124
        %v2152 = vpop.permute.xlu0 %2151
        %v2153 = vrot.slane %v2152, 1
        %v2154 = vrot.slane %v2152, 2
        %v2155 = vrot.slane %v2152, 3
        %v2156 = vrot.slane %v2152, 4
        %v2157 = vrot.slane %v2152, 5
        %v2158 = vrot.slane %v2152, 6
        %v2159 = vrot.slane %v2152, 7
        %v2168 = vrcp.pop %v2152
        %v2169 = vmul.f32 %v2142, %v2168
        %v2170 = vrcp.pop %v2153
        %v2171 = vmul.f32 %v2143, %v2170
        %v2172 = vrcp.pop %v2154
        %v2173 = vmul.f32 %v2144, %v2172
        %v2174 = vrcp.pop %v2155
        %v2175 = vmul.f32 %v2145, %v2174
        %v2176 = vrcp.pop %v2156
        %v2177 = vmul.f32 %v2146, %v2176
        %v2178 = vrcp.pop %v2157
        %v2179 = vmul.f32 %v2147, %v2178
        %v2180 = vrcp.pop %v2158
        %v2181 = vmul.f32 %v2148, %v2180
        %v2182 = vrcp.pop %v2159
        %v2183 = vmul.f32 %v2149, %v2182
        %v2192 = vrot.slane %v2171, 7
        %v2193 = vsel %vm581, %v2192, %v2169
        %v2194 = vrot.slane %v2173, 6
        %v2195 = vsel %vm583, %v2194, %v2193
        %v2196 = vrot.slane %v2175, 5
        %v2197 = vsel %vm585, %v2196, %v2195
        %v2198 = vrot.slane %v2177, 4
        %v2199 = vsel %vm587, %v2198, %v2197
        %v2200 = vrot.slane %v2179, 3
        %v2201 = vsel %vm589, %v2200, %v2199
        %v2202 = vrot.slane %v2181, 2
        %v2203 = vsel %vm591, %v2202, %v2201
        %v2204 = vrot.slane %v2183, 1
        %v2205 = vsel %vm593, %v2204, %v2203
        %s2207 = scalar_lea.vmem %s8, 80
        %v2208 = vld [vmem:[%s2207] sm:$0xff]
        %v2209 = vld [vmem:[%s2207 + $0x8] sm:$0xff]
        %v2210 = vmul.f32 %v1272, %v2208
        %v2211 = vmul.f32 %v1273, %v2209
        %s2212 = scalar_lea.vmem %s9, 80
        %v2213 = vld [vmem:[%s2212] sm:$0xff]
        %v2214 = vld [vmem:[%s2212 + $0x8] sm:$0xff]
        %v2215 = vadd.f32 %v2210, %v2213
        %v2216 = vadd.f32 %v2211, %v2214
        %v2217 = vxor.u32 %v2215, 2147483648
        %v2218 = vxor.u32 %v2216, 2147483648
        %v2219 = vmul.f32 %v2217, 1.442695
        %v2220 = vpow.pop %v2219
        %v2221 = vmul.f32 %v2218, 1.442695
        %v2222 = vpow.pop %v2221
        %v2223 = vadd.f32 %v2220, 1.0
        %v2224 = vadd.f32 %v2222, 1.0
        %v2225 = vrcp.pop %v2223
        %v2226 = vmul.f32 1.0, %v2225
        %v2227 = vrcp.pop %v2224
        %v2228 = vmul.f32 1.0, %v2227
        %v2229 = vlaneseq
        %v2230 = vshrl.u32 %v2229, 7
        %v2231 = vsub.s32 5, %v2230
        %v2232 = vrot.slane %v1175, %v2231
        %v2233 = vmul.f32 %v2232, %v495
        %v2234 = vmul.f32 %v2232, %v2205
        %v2235 = vadd.f32 %v2233, %v2226
        %v2236 = vadd.f32 %v2234, %v2228
        %v2237 = vpack.c.bf16 %v2236, %v2235
        %2238 = vmatprep.subr.bf16.mxu0 0
        %2239 = vmatpush1.bf16.msra.mxu0 0
        %2240 = vmatprep.subr.bf16.mxu0 0
        %2241 = vmatpush1.bf16.msra.mxu0 0
        %2242 = vmatprep.subr.bf16.mxu0 0
        %2243 = vmatpush1.bf16.msra.mxu0 0
        %2244 = vmatprep.subr.bf16.mxu0 0
        %2245 = vmatpush1.bf16.msra.mxu0 0
        %2246 = vmatprep.subr.bf16.mxu0 0
        %2247 = vmatpush1.bf16.msra.mxu0 0
        %2248 = vmatprep.subr.bf16.mxu0 0
        %2249 = vmatpush1.bf16.msra.mxu0 0
        %2250 = vmatprep.subr.bf16.mxu0 0
        %2251 = vmatpush1.bf16.msra.mxu0 0
        %2252 = vmatprep.subr.bf16.mxu0 0
        %2253 = vmatpush1.bf16.msra.mxu0 %v2237
        %2254 = vmatprep.subr.bf16.mxu0 0
        %2255 = vmatpush2.bf16.msra.mxu0 0
        %2256 = vmatprep.subr.bf16.mxu0 0
        %2257 = vmatpush2.bf16.msra.mxu0 0
        %2258 = vmatprep.subr.bf16.mxu0 0
        %2259 = vmatpush2.bf16.msra.mxu0 0
        %2260 = vmatprep.subr.bf16.mxu0 0
        %2261 = vmatpush2.bf16.msra.mxu0 0
        %2262 = vmatprep.subr.bf16.mxu0 0
        %2263 = vmatpush2.bf16.msra.mxu0 0
        %2264 = vmatprep.subr.bf16.mxu0 0
        %2265 = vmatpush2.bf16.msra.mxu0 0
        %2266 = vmatprep.subr.bf16.mxu0 0
        %2267 = vmatpush2.bf16.msra.mxu0 0
        %2268 = vmatprep.subr.bf16.mxu0 0
        %2269 = vmatpush2.bf16.msra.mxu0 0
        %2270 = vmatprep.mubr.bf16.mxu0 0
        %2271 = vmatmul.mubr.bf16.gmra.mxu0 %v1377
        %v2272 = vpop.f32.mrf.mxu0
        %v2273 = vadd.f32 0.0, %v2272
        %v2274 = vpop.f32.mrf.mxu0
        %v2275 = vpop.f32.mrf.mxu0
        %v2276 = vadd.f32 0.0, %v2275
        %v2277 = vpop.f32.mrf.mxu0
        %2278 = vdwg.mxu0
        %s2279 = scalar_lea.vmem [#allocation2], 80
        %2280 = vst.msk [vmem:[%s2279] sm:$0xff] %vm508, %v2273
        %2281 = vst.msk [vmem:[%s2279 + $0x8] sm:$0xff] %vm508, %v2276
        %v2282 = vsel %vm508, %v2273, 0.0
        %v2283 = vsel %vm508, %v2276, 0.0
        %v2284 = vadd.f32 %v2282, %v2283
        %2285 = vadd.xlane.f32.xlu0 %v2284
        %v2286 = vpop.xlane.xlu0 %2285
        %v2287 = vrot.slane %v2286, 4
        %v2288 = vadd.f32 %v2286, %v2287
        %v2289 = vrot.slane %v2288, 2
        %v2290 = vadd.f32 %v2288, %v2289
        %v2291 = vrot.slane %v2290, 1
        %v2292 = vadd.f32 %v2290, %v2291
        %s2293 = vtos %v2292
        %s2294 = sadd.f32 %s2122, %s2293
        %v2295 = vmul.f32 %v2273, %v2273
        %v2296 = vmul.f32 %v2276, %v2276
        %v2297 = vsel %vm508, %v2295, 0.0
        %v2298 = vsel %vm508, %v2296, 0.0
        %v2299 = vadd.f32 %v2297, %v2298
        %2300 = vadd.xlane.f32.xlu0 %v2299
        %v2301 = vpop.xlane.xlu0 %2300
        %v2302 = vrot.slane %v2301, 4
        %v2303 = vadd.f32 %v2301, %v2302
        %v2304 = vrot.slane %v2303, 2
        %v2305 = vadd.f32 %v2303, %v2304
        %v2306 = vrot.slane %v2305, 1
        %v2307 = vadd.f32 %v2305, %v2306
        %s2308 = vtos %v2307
        %s2309 = sadd.f32 %s2137, %s2308
        %v2310 = vlaneseq
        %v2311 = vshrl.u32 %v2310, 7
        %v2312 = vsub.s32 0, %v2311
        %v2313 = vrot.slane %v636, %v2312
        %v2314 = vmul.f32 %v624, %v2313
        %v2315 = vmul.f32 %v626, %v2313
        %v2316 = vmul.f32 %v628, %v2313
        %v2317 = vmul.f32 %v630, %v2313
        %v2318 = vmul.f32 %v632, %v2313
        %v2319 = vmul.f32 %v634, %v2313
        %v2320 = vmul.f32 %v636, %v2313
        %v2321 = vmul.f32 %v638, %v2313
        %2322 = vset.pattern.permute.xlu0 6
        %2323 = vperm.xlu0 %2322, %v1124
        %v2324 = vpop.permute.xlu0 %2323
        %v2325 = vrot.slane %v2324, 1
        %v2326 = vrot.slane %v2324, 2
        %v2327 = vrot.slane %v2324, 3
        %v2328 = vrot.slane %v2324, 4
        %v2329 = vrot.slane %v2324, 5
        %v2330 = vrot.slane %v2324, 6
        %v2331 = vrot.slane %v2324, 7
        %v2340 = vrcp.pop %v2324
        %v2341 = vmul.f32 %v2314, %v2340
        %v2342 = vrcp.pop %v2325
        %v2343 = vmul.f32 %v2315, %v2342
        %v2344 = vrcp.pop %v2326
        %v2345 = vmul.f32 %v2316, %v2344
        %v2346 = vrcp.pop %v2327
        %v2347 = vmul.f32 %v2317, %v2346
        %v2348 = vrcp.pop %v2328
        %v2349 = vmul.f32 %v2318, %v2348
        %v2350 = vrcp.pop %v2329
        %v2351 = vmul.f32 %v2319, %v2350
        %v2352 = vrcp.pop %v2330
        %v2353 = vmul.f32 %v2320, %v2352
        %v2354 = vrcp.pop %v2331
        %v2355 = vmul.f32 %v2321, %v2354
        %v2364 = vrot.slane %v2343, 7
        %v2365 = vsel %vm581, %v2364, %v2341
        %v2366 = vrot.slane %v2345, 6
        %v2367 = vsel %vm583, %v2366, %v2365
        %v2368 = vrot.slane %v2347, 5
        %v2369 = vsel %vm585, %v2368, %v2367
        %v2370 = vrot.slane %v2349, 4
        %v2371 = vsel %vm587, %v2370, %v2369
        %v2372 = vrot.slane %v2351, 3
        %v2373 = vsel %vm589, %v2372, %v2371
        %v2374 = vrot.slane %v2353, 2
        %v2375 = vsel %vm591, %v2374, %v2373
        %v2376 = vrot.slane %v2355, 1
        %v2377 = vsel %vm593, %v2376, %v2375
        %s2379 = scalar_lea.vmem %s8, 96
        %v2380 = vld [vmem:[%s2379] sm:$0xff]
        %v2381 = vld [vmem:[%s2379 + $0x8] sm:$0xff]
        %v2382 = vmul.f32 %v1272, %v2380
        %v2383 = vmul.f32 %v1273, %v2381
        %s2384 = scalar_lea.vmem %s9, 96
        %v2385 = vld [vmem:[%s2384] sm:$0xff]
        %v2386 = vld [vmem:[%s2384 + $0x8] sm:$0xff]
        %v2387 = vadd.f32 %v2382, %v2385
        %v2388 = vadd.f32 %v2383, %v2386
        %v2389 = vxor.u32 %v2387, 2147483648
        %v2390 = vxor.u32 %v2388, 2147483648
        %v2391 = vmul.f32 %v2389, 1.442695
        %v2392 = vpow.pop %v2391
        %v2393 = vmul.f32 %v2390, 1.442695
        %v2394 = vpow.pop %v2393
        %v2395 = vadd.f32 %v2392, 1.0
        %v2396 = vadd.f32 %v2394, 1.0
        %v2397 = vrcp.pop %v2395
        %v2398 = vmul.f32 1.0, %v2397
        %v2399 = vrcp.pop %v2396
        %v2400 = vmul.f32 1.0, %v2399
        %v2401 = vlaneseq
        %v2402 = vshrl.u32 %v2401, 7
        %v2403 = vsub.s32 6, %v2402
        %v2404 = vrot.slane %v1175, %v2403
        %v2405 = vmul.f32 %v2404, %v496
        %v2406 = vmul.f32 %v2404, %v2377
        %v2407 = vadd.f32 %v2405, %v2398
        %v2408 = vadd.f32 %v2406, %v2400
        %v2409 = vpack.c.bf16 %v2408, %v2407
        %2410 = vmatprep.subr.bf16.mxu0 0
        %2411 = vmatpush1.bf16.msra.mxu0 0
        %2412 = vmatprep.subr.bf16.mxu0 0
        %2413 = vmatpush1.bf16.msra.mxu0 0
        %2414 = vmatprep.subr.bf16.mxu0 0
        %2415 = vmatpush1.bf16.msra.mxu0 0
        %2416 = vmatprep.subr.bf16.mxu0 0
        %2417 = vmatpush1.bf16.msra.mxu0 0
        %2418 = vmatprep.subr.bf16.mxu0 0
        %2419 = vmatpush1.bf16.msra.mxu0 0
        %2420 = vmatprep.subr.bf16.mxu0 0
        %2421 = vmatpush1.bf16.msra.mxu0 0
        %2422 = vmatprep.subr.bf16.mxu0 0
        %2423 = vmatpush1.bf16.msra.mxu0 0
        %2424 = vmatprep.subr.bf16.mxu0 0
        %2425 = vmatpush1.bf16.msra.mxu0 %v2409
        %2426 = vmatprep.subr.bf16.mxu0 0
        %2427 = vmatpush2.bf16.msra.mxu0 0
        %2428 = vmatprep.subr.bf16.mxu0 0
        %2429 = vmatpush2.bf16.msra.mxu0 0
        %2430 = vmatprep.subr.bf16.mxu0 0
        %2431 = vmatpush2.bf16.msra.mxu0 0
        %2432 = vmatprep.subr.bf16.mxu0 0
        %2433 = vmatpush2.bf16.msra.mxu0 0
        %2434 = vmatprep.subr.bf16.mxu0 0
        %2435 = vmatpush2.bf16.msra.mxu0 0
        %2436 = vmatprep.subr.bf16.mxu0 0
        %2437 = vmatpush2.bf16.msra.mxu0 0
        %2438 = vmatprep.subr.bf16.mxu0 0
        %2439 = vmatpush2.bf16.msra.mxu0 0
        %2440 = vmatprep.subr.bf16.mxu0 0
        %2441 = vmatpush2.bf16.msra.mxu0 0
        %2442 = vmatprep.mubr.bf16.mxu0 0
        %2443 = vmatmul.mubr.bf16.gmra.mxu0 %v1377
        %v2444 = vpop.f32.mrf.mxu0
        %v2445 = vadd.f32 0.0, %v2444
        %v2446 = vpop.f32.mrf.mxu0
        %v2447 = vpop.f32.mrf.mxu0
        %v2448 = vadd.f32 0.0, %v2447
        %v2449 = vpop.f32.mrf.mxu0
        %2450 = vdwg.mxu0
        %s2451 = scalar_lea.vmem [#allocation2], 96
        %2452 = vst.msk [vmem:[%s2451] sm:$0xff] %vm508, %v2445
        %2453 = vst.msk [vmem:[%s2451 + $0x8] sm:$0xff] %vm508, %v2448
        %v2454 = vsel %vm508, %v2445, 0.0
        %v2455 = vsel %vm508, %v2448, 0.0
        %v2456 = vadd.f32 %v2454, %v2455
        %2457 = vadd.xlane.f32.xlu0 %v2456
        %v2458 = vpop.xlane.xlu0 %2457
        %v2459 = vrot.slane %v2458, 4
        %v2460 = vadd.f32 %v2458, %v2459
        %v2461 = vrot.slane %v2460, 2
        %v2462 = vadd.f32 %v2460, %v2461
        %v2463 = vrot.slane %v2462, 1
        %v2464 = vadd.f32 %v2462, %v2463
        %s2465 = vtos %v2464
        %s2466 = sadd.f32 %s2294, %s2465
        %v2467 = vmul.f32 %v2445, %v2445
        %v2468 = vmul.f32 %v2448, %v2448
        %v2469 = vsel %vm508, %v2467, 0.0
        %v2470 = vsel %vm508, %v2468, 0.0
        %v2471 = vadd.f32 %v2469, %v2470
        %2472 = vadd.xlane.f32.xlu0 %v2471
        %v2473 = vpop.xlane.xlu0 %2472
        %v2474 = vrot.slane %v2473, 4
        %v2475 = vadd.f32 %v2473, %v2474
        %v2476 = vrot.slane %v2475, 2
        %v2477 = vadd.f32 %v2475, %v2476
        %v2478 = vrot.slane %v2477, 1
        %v2479 = vadd.f32 %v2477, %v2478
        %s2480 = vtos %v2479
        %s2481 = sadd.f32 %s2309, %s2480
        %v2482 = vlaneseq
        %v2483 = vshrl.u32 %v2482, 7
        %v2484 = vsub.s32 0, %v2483
        %v2485 = vrot.slane %v638, %v2484
        %v2486 = vmul.f32 %v624, %v2485
        %v2487 = vmul.f32 %v626, %v2485
        %v2488 = vmul.f32 %v628, %v2485
        %v2489 = vmul.f32 %v630, %v2485
        %v2490 = vmul.f32 %v632, %v2485
        %v2491 = vmul.f32 %v634, %v2485
        %v2492 = vmul.f32 %v636, %v2485
        %v2493 = vmul.f32 %v638, %v2485
        %2494 = vset.pattern.permute.xlu0 7
        %2495 = vperm.xlu0 %2494, %v1124
        %v2496 = vpop.permute.xlu0 %2495
        %v2497 = vrot.slane %v2496, 1
        %v2498 = vrot.slane %v2496, 2
        %v2499 = vrot.slane %v2496, 3
        %v2500 = vrot.slane %v2496, 4
        %v2501 = vrot.slane %v2496, 5
        %v2502 = vrot.slane %v2496, 6
        %v2503 = vrot.slane %v2496, 7
        %v2512 = vrcp.pop %v2496
        %v2513 = vmul.f32 %v2486, %v2512
        %v2514 = vrcp.pop %v2497
        %v2515 = vmul.f32 %v2487, %v2514
        %v2516 = vrcp.pop %v2498
        %v2517 = vmul.f32 %v2488, %v2516
        %v2518 = vrcp.pop %v2499
        %v2519 = vmul.f32 %v2489, %v2518
        %v2520 = vrcp.pop %v2500
        %v2521 = vmul.f32 %v2490, %v2520
        %v2522 = vrcp.pop %v2501
        %v2523 = vmul.f32 %v2491, %v2522
        %v2524 = vrcp.pop %v2502
        %v2525 = vmul.f32 %v2492, %v2524
        %v2526 = vrcp.pop %v2503
        %v2527 = vmul.f32 %v2493, %v2526
        %v2536 = vrot.slane %v2515, 7
        %v2537 = vsel %vm581, %v2536, %v2513
        %v2538 = vrot.slane %v2517, 6
        %v2539 = vsel %vm583, %v2538, %v2537
        %v2540 = vrot.slane %v2519, 5
        %v2541 = vsel %vm585, %v2540, %v2539
        %v2542 = vrot.slane %v2521, 4
        %v2543 = vsel %vm587, %v2542, %v2541
        %v2544 = vrot.slane %v2523, 3
        %v2545 = vsel %vm589, %v2544, %v2543
        %v2546 = vrot.slane %v2525, 2
        %v2547 = vsel %vm591, %v2546, %v2545
        %v2548 = vrot.slane %v2527, 1
        %v2549 = vsel %vm593, %v2548, %v2547
        %s2551 = scalar_lea.vmem %s8, 112
        %v2552 = vld [vmem:[%s2551] sm:$0xff]
        %v2553 = vld [vmem:[%s2551 + $0x8] sm:$0xff]
        %v2554 = vmul.f32 %v1272, %v2552
        %v2555 = vmul.f32 %v1273, %v2553
        %s2556 = scalar_lea.vmem %s9, 112
        %v2557 = vld [vmem:[%s2556] sm:$0xff]
        %v2558 = vld [vmem:[%s2556 + $0x8] sm:$0xff]
        %v2559 = vadd.f32 %v2554, %v2557
        %v2560 = vadd.f32 %v2555, %v2558
        %v2561 = vxor.u32 %v2559, 2147483648
        %v2562 = vxor.u32 %v2560, 2147483648
        %v2563 = vmul.f32 %v2561, 1.442695
        %v2564 = vpow.pop %v2563
        %v2565 = vmul.f32 %v2562, 1.442695
        %v2566 = vpow.pop %v2565
        %v2567 = vadd.f32 %v2564, 1.0
        %v2568 = vadd.f32 %v2566, 1.0
        %v2569 = vrcp.pop %v2567
        %v2570 = vmul.f32 1.0, %v2569
        %v2571 = vrcp.pop %v2568
        %v2572 = vmul.f32 1.0, %v2571
        %v2573 = vlaneseq
        %v2574 = vshrl.u32 %v2573, 7
        %v2575 = vsub.s32 7, %v2574
        %v2576 = vrot.slane %v1175, %v2575
        %v2577 = vmul.f32 %v2576, %v497
        %v2578 = vmul.f32 %v2576, %v2549
        %v2579 = vadd.f32 %v2577, %v2570
        %v2580 = vadd.f32 %v2578, %v2572
        %v2581 = vpack.c.bf16 %v2580, %v2579
        %2582 = vmatprep.subr.bf16.mxu0 0
        %2583 = vmatpush1.bf16.msra.mxu0 0
        %2584 = vmatprep.subr.bf16.mxu0 0
        %2585 = vmatpush1.bf16.msra.mxu0 0
        %2586 = vmatprep.subr.bf16.mxu0 0
        %2587 = vmatpush1.bf16.msra.mxu0 0
        %2588 = vmatprep.subr.bf16.mxu0 0
        %2589 = vmatpush1.bf16.msra.mxu0 0
        %2590 = vmatprep.subr.bf16.mxu0 0
        %2591 = vmatpush1.bf16.msra.mxu0 0
        %2592 = vmatprep.subr.bf16.mxu0 0
        %2593 = vmatpush1.bf16.msra.mxu0 0
        %2594 = vmatprep.subr.bf16.mxu0 0
        %2595 = vmatpush1.bf16.msra.mxu0 0
        %2596 = vmatprep.subr.bf16.mxu0 0
        %2597 = vmatpush1.bf16.msra.mxu0 %v2581
        %2598 = vmatprep.subr.bf16.mxu0 0
        %2599 = vmatpush2.bf16.msra.mxu0 0
        %2600 = vmatprep.subr.bf16.mxu0 0
        %2601 = vmatpush2.bf16.msra.mxu0 0
        %2602 = vmatprep.subr.bf16.mxu0 0
        %2603 = vmatpush2.bf16.msra.mxu0 0
        %2604 = vmatprep.subr.bf16.mxu0 0
        %2605 = vmatpush2.bf16.msra.mxu0 0
        %2606 = vmatprep.subr.bf16.mxu0 0
        %2607 = vmatpush2.bf16.msra.mxu0 0
        %2608 = vmatprep.subr.bf16.mxu0 0
        %2609 = vmatpush2.bf16.msra.mxu0 0
        %2610 = vmatprep.subr.bf16.mxu0 0
        %2611 = vmatpush2.bf16.msra.mxu0 0
        %2612 = vmatprep.subr.bf16.mxu0 0
        %2613 = vmatpush2.bf16.msra.mxu0 0
        %2614 = vmatprep.mubr.bf16.mxu0 0
        %2615 = vmatmul.mubr.bf16.gmra.mxu0 %v1377
        %v2616 = vpop.f32.mrf.mxu0
        %v2617 = vadd.f32 0.0, %v2616
        %v2618 = vpop.f32.mrf.mxu0
        %v2619 = vpop.f32.mrf.mxu0
        %v2620 = vadd.f32 0.0, %v2619
        %v2621 = vpop.f32.mrf.mxu0
        %2622 = vdwg.mxu0
        %s2623 = scalar_lea.vmem [#allocation2], 112
        %2624 = vst.msk [vmem:[%s2623] sm:$0xff] %vm508, %v2617
        %2625 = vst.msk [vmem:[%s2623 + $0x8] sm:$0xff] %vm508, %v2620
        %v2626 = vsel %vm508, %v2617, 0.0
        %v2627 = vsel %vm508, %v2620, 0.0
        %v2628 = vadd.f32 %v2626, %v2627
        %2629 = vadd.xlane.f32.xlu0 %v2628
        %v2630 = vpop.xlane.xlu0 %2629
        %v2631 = vrot.slane %v2630, 4
        %v2632 = vadd.f32 %v2630, %v2631
        %v2633 = vrot.slane %v2632, 2
        %v2634 = vadd.f32 %v2632, %v2633
        %v2635 = vrot.slane %v2634, 1
        %v2636 = vadd.f32 %v2634, %v2635
        %s2637 = vtos %v2636
        %s2638 = sadd.f32 %s2466, %s2637
        %v2639 = vmul.f32 %v2617, %v2617
        %v2640 = vmul.f32 %v2620, %v2620
        %v2641 = vsel %vm508, %v2639, 0.0
        %v2642 = vsel %vm508, %v2640, 0.0
        %v2643 = vadd.f32 %v2641, %v2642
        %2644 = vadd.xlane.f32.xlu0 %v2643
        %v2645 = vpop.xlane.xlu0 %2644
        %v2646 = vrot.slane %v2645, 4
        %v2647 = vadd.f32 %v2645, %v2646
        %v2648 = vrot.slane %v2647, 2
        %v2649 = vadd.f32 %v2647, %v2648
        %v2650 = vrot.slane %v2649, 1
        %v2651 = vadd.f32 %v2649, %v2650
        %s2652 = vtos %v2651
        %s2653 = sadd.f32 %s2481, %s2652
        %v2654 = vrcp.pop 2048.0
        %s2655 = vtos %v2654
        %s2656 = smul.f32 %s2638, %s2655
        %v2657 = vrcp.pop 2048.0
        %s2658 = vtos %v2657
        %s2659 = smul.f32 %s2653, %s2658
        %s2660 = smul.f32 %s2656, %s2656
        %s2661 = ssub.f32 %s2659, %s2660
        %s2662 = smax.f32 %s2661, 0.0
        %s2663 = sadd.f32 %s2662, 1e-05
        %v2664 = vstv %s2663
        %v2665 = vrsqrt.pop %v2664
        %s2666 = vtos %v2665
        %v2667 = vld [vmem:[#allocation2] sm:$0xff]
        %v2668 = vld [vmem:[#allocation2 + $0x8] sm:$0xff]
        %v2669 = vstv %s2656
        %v2670 = vsub.f32 %v2667, %v2669
        %v2671 = vsub.f32 %v2668, %v2669
        %v2672 = vstv %s2666
        %v2673 = vmul.f32 %v2670, %v2672
        %v2674 = vmul.f32 %v2671, %v2672
        %v2675 = vld [vmem:[%s11] sm:$0xff]
        %v2676 = vld [vmem:[%s11 + $0x8] sm:$0xff]
        %v2677 = vmul.f32 %v2673, %v2675
        %v2678 = vmul.f32 %v2674, %v2676
        %v2679 = vld [vmem:[%s12] sm:$0xff]
        %v2680 = vld [vmem:[%s12 + $0x8] sm:$0xff]
        %v2681 = vadd.f32 %v2677, %v2679
        %v2682 = vadd.f32 %v2678, %v2680
        %vm2683 = vcmp.gt.f32.partialorder %v2681, 20.0
        %vm2684 = vcmp.gt.f32.partialorder %v2682, 20.0
        %v2685 = vmin.f32 %v2681, 20.0
        %v2686 = vmin.f32 %v2682, 20.0
        %v2687 = vmul.f32 %v2685, 1.442695
        %v2688 = vpow.pop %v2687
        %v2689 = vmul.f32 %v2686, 1.442695
        %v2690 = vpow.pop %v2689
        %v2691 = vadd.f32 %v2688, 1.0
        %v2692 = vlog2.pop %v2691
        %v2693 = vmul.f32 %v2692, 0.6931472
        %v2694 = vmul.f32 -0.5, %v2688
        %v2695 = vadd.f32 %v2694, 1.0
        %v2696 = vmul.f32 %v2695, %v2688
        %v2697 = vand.u32 2147483647, %v2688
        %vm2698 = vcmp.lt.f32.partialorder %v2697, 0.0004427343
        %v2699 = vsel %vm2698, %v2696, %v2693
        %v2700 = vadd.f32 %v2690, 1.0
        %v2701 = vlog2.pop %v2700
        %v2702 = vmul.f32 %v2701, 0.6931472
        %v2703 = vmul.f32 -0.5, %v2690
        %v2704 = vadd.f32 %v2703, 1.0
        %v2705 = vmul.f32 %v2704, %v2690
        %v2706 = vand.u32 2147483647, %v2690
        %vm2707 = vcmp.lt.f32.partialorder %v2706, 0.0004427343
        %v2708 = vsel %vm2707, %v2705, %v2702
        %v2709 = vsel %vm2683, %v2681, %v2699
        %v2710 = vsel %vm2684, %v2682, %v2708
        %v2711 = vadd.f32 %v2709, 0.0
        %v2712 = vadd.f32 %v2710, 0.0
        %v2713 = vld [vmem:[%s1591] sm:$0xff]
        %v2714 = vld [vmem:[%s1591 + $0x8] sm:$0xff]
        %v2715 = vsub.f32 %v2713, %v2669
        %v2716 = vsub.f32 %v2714, %v2669
        %v2717 = vmul.f32 %v2715, %v2672
        %v2718 = vmul.f32 %v2716, %v2672
        %s2719 = scalar_lea.vmem %s11, 16
        %v2720 = vld [vmem:[%s2719] sm:$0xff]
        %v2721 = vld [vmem:[%s2719 + $0x8] sm:$0xff]
        %v2722 = vmul.f32 %v2717, %v2720
        %v2723 = vmul.f32 %v2718, %v2721
        %s2724 = scalar_lea.vmem %s12, 16
        %v2725 = vld [vmem:[%s2724] sm:$0xff]
        %v2726 = vld [vmem:[%s2724 + $0x8] sm:$0xff]
        %v2727 = vadd.f32 %v2722, %v2725
        %v2728 = vadd.f32 %v2723, %v2726
        %vm2729 = vcmp.gt.f32.partialorder %v2727, 20.0
        %vm2730 = vcmp.gt.f32.partialorder %v2728, 20.0
        %v2731 = vmin.f32 %v2727, 20.0
        %v2732 = vmin.f32 %v2728, 20.0
        %v2733 = vmul.f32 %v2731, 1.442695
        %v2734 = vpow.pop %v2733
        %v2735 = vmul.f32 %v2732, 1.442695
        %v2736 = vpow.pop %v2735
        %v2737 = vadd.f32 %v2734, 1.0
        %v2738 = vlog2.pop %v2737
        %v2739 = vmul.f32 %v2738, 0.6931472
        %v2740 = vmul.f32 -0.5, %v2734
        %v2741 = vadd.f32 %v2740, 1.0
        %v2742 = vmul.f32 %v2741, %v2734
        %v2743 = vand.u32 2147483647, %v2734
        %vm2744 = vcmp.lt.f32.partialorder %v2743, 0.0004427343
        %v2745 = vsel %vm2744, %v2742, %v2739
        %v2746 = vadd.f32 %v2736, 1.0
        %v2747 = vlog2.pop %v2746
        %v2748 = vmul.f32 %v2747, 0.6931472
        %v2749 = vmul.f32 -0.5, %v2736
        %v2750 = vadd.f32 %v2749, 1.0
        %v2751 = vmul.f32 %v2750, %v2736
        %v2752 = vand.u32 2147483647, %v2736
        %vm2753 = vcmp.lt.f32.partialorder %v2752, 0.0004427343
        %v2754 = vsel %vm2753, %v2751, %v2748
        %v2755 = vsel %vm2729, %v2727, %v2745
        %v2756 = vsel %vm2730, %v2728, %v2754
        %v2757 = vadd.f32 %v2711, %v2755
        %v2758 = vadd.f32 %v2712, %v2756
        %v2759 = vld [vmem:[%s1763] sm:$0xff]
        %v2760 = vld [vmem:[%s1763 + $0x8] sm:$0xff]
        %v2761 = vsub.f32 %v2759, %v2669
        %v2762 = vsub.f32 %v2760, %v2669
        %v2763 = vmul.f32 %v2761, %v2672
        %v2764 = vmul.f32 %v2762, %v2672
        %s2765 = scalar_lea.vmem %s11, 32
        %v2766 = vld [vmem:[%s2765] sm:$0xff]
        %v2767 = vld [vmem:[%s2765 + $0x8] sm:$0xff]
        %v2768 = vmul.f32 %v2763, %v2766
        %v2769 = vmul.f32 %v2764, %v2767
        %s2770 = scalar_lea.vmem %s12, 32
        %v2771 = vld [vmem:[%s2770] sm:$0xff]
        %v2772 = vld [vmem:[%s2770 + $0x8] sm:$0xff]
        %v2773 = vadd.f32 %v2768, %v2771
        %v2774 = vadd.f32 %v2769, %v2772
        %vm2775 = vcmp.gt.f32.partialorder %v2773, 20.0
        %vm2776 = vcmp.gt.f32.partialorder %v2774, 20.0
        %v2777 = vmin.f32 %v2773, 20.0
        %v2778 = vmin.f32 %v2774, 20.0
        %v2779 = vmul.f32 %v2777, 1.442695
        %v2780 = vpow.pop %v2779
        %v2781 = vmul.f32 %v2778, 1.442695
        %v2782 = vpow.pop %v2781
        %v2783 = vadd.f32 %v2780, 1.0
        %v2784 = vlog2.pop %v2783
        %v2785 = vmul.f32 %v2784, 0.6931472
        %v2786 = vmul.f32 -0.5, %v2780
        %v2787 = vadd.f32 %v2786, 1.0
        %v2788 = vmul.f32 %v2787, %v2780
        %v2789 = vand.u32 2147483647, %v2780
        %vm2790 = vcmp.lt.f32.partialorder %v2789, 0.0004427343
        %v2791 = vsel %vm2790, %v2788, %v2785
        %v2792 = vadd.f32 %v2782, 1.0
        %v2793 = vlog2.pop %v2792
        %v2794 = vmul.f32 %v2793, 0.6931472
        %v2795 = vmul.f32 -0.5, %v2782
        %v2796 = vadd.f32 %v2795, 1.0
        %v2797 = vmul.f32 %v2796, %v2782
        %v2798 = vand.u32 2147483647, %v2782
        %vm2799 = vcmp.lt.f32.partialorder %v2798, 0.0004427343
        %v2800 = vsel %vm2799, %v2797, %v2794
        %v2801 = vsel %vm2775, %v2773, %v2791
        %v2802 = vsel %vm2776, %v2774, %v2800
        %v2803 = vadd.f32 %v2757, %v2801
        %v2804 = vadd.f32 %v2758, %v2802
        %v2805 = vld [vmem:[%s1935] sm:$0xff]
        %v2806 = vld [vmem:[%s1935 + $0x8] sm:$0xff]
        %v2807 = vsub.f32 %v2805, %v2669
        %v2808 = vsub.f32 %v2806, %v2669
        %v2809 = vmul.f32 %v2807, %v2672
        %v2810 = vmul.f32 %v2808, %v2672
        %s2811 = scalar_lea.vmem %s11, 48
        %v2812 = vld [vmem:[%s2811] sm:$0xff]
        %v2813 = vld [vmem:[%s2811 + $0x8] sm:$0xff]
        %v2814 = vmul.f32 %v2809, %v2812
        %v2815 = vmul.f32 %v2810, %v2813
        %s2816 = scalar_lea.vmem %s12, 48
        %v2817 = vld [vmem:[%s2816] sm:$0xff]
        %v2818 = vld [vmem:[%s2816 + $0x8] sm:$0xff]
        %v2819 = vadd.f32 %v2814, %v2817
        %v2820 = vadd.f32 %v2815, %v2818
        %vm2821 = vcmp.gt.f32.partialorder %v2819, 20.0
        %vm2822 = vcmp.gt.f32.partialorder %v2820, 20.0
        %v2823 = vmin.f32 %v2819, 20.0
        %v2824 = vmin.f32 %v2820, 20.0
        %v2825 = vmul.f32 %v2823, 1.442695
        %v2826 = vpow.pop %v2825
        %v2827 = vmul.f32 %v2824, 1.442695
        %v2828 = vpow.pop %v2827
        %v2829 = vadd.f32 %v2826, 1.0
        %v2830 = vlog2.pop %v2829
        %v2831 = vmul.f32 %v2830, 0.6931472
        %v2832 = vmul.f32 -0.5, %v2826
        %v2833 = vadd.f32 %v2832, 1.0
        %v2834 = vmul.f32 %v2833, %v2826
        %v2835 = vand.u32 2147483647, %v2826
        %vm2836 = vcmp.lt.f32.partialorder %v2835, 0.0004427343
        %v2837 = vsel %vm2836, %v2834, %v2831
        %v2838 = vadd.f32 %v2828, 1.0
        %v2839 = vlog2.pop %v2838
        %v2840 = vmul.f32 %v2839, 0.6931472
        %v2841 = vmul.f32 -0.5, %v2828
        %v2842 = vadd.f32 %v2841, 1.0
        %v2843 = vmul.f32 %v2842, %v2828
        %v2844 = vand.u32 2147483647, %v2828
        %vm2845 = vcmp.lt.f32.partialorder %v2844, 0.0004427343
        %v2846 = vsel %vm2845, %v2843, %v2840
        %v2847 = vsel %vm2821, %v2819, %v2837
        %v2848 = vsel %vm2822, %v2820, %v2846
        %v2849 = vadd.f32 %v2803, %v2847
        %v2850 = vadd.f32 %v2804, %v2848
        %v2851 = vld [vmem:[%s2107] sm:$0xff]
        %v2852 = vld [vmem:[%s2107 + $0x8] sm:$0xff]
        %v2853 = vsub.f32 %v2851, %v2669
        %v2854 = vsub.f32 %v2852, %v2669
        %v2855 = vmul.f32 %v2853, %v2672
        %v2856 = vmul.f32 %v2854, %v2672
        %s2857 = scalar_lea.vmem %s11, 64
        %v2858 = vld [vmem:[%s2857] sm:$0xff]
        %v2859 = vld [vmem:[%s2857 + $0x8] sm:$0xff]
        %v2860 = vmul.f32 %v2855, %v2858
        %v2861 = vmul.f32 %v2856, %v2859
        %s2862 = scalar_lea.vmem %s12, 64
        %v2863 = vld [vmem:[%s2862] sm:$0xff]
        %v2864 = vld [vmem:[%s2862 + $0x8] sm:$0xff]
        %v2865 = vadd.f32 %v2860, %v2863
        %v2866 = vadd.f32 %v2861, %v2864
        %vm2867 = vcmp.gt.f32.partialorder %v2865, 20.0
        %vm2868 = vcmp.gt.f32.partialorder %v2866, 20.0
        %v2869 = vmin.f32 %v2865, 20.0
        %v2870 = vmin.f32 %v2866, 20.0
        %v2871 = vmul.f32 %v2869, 1.442695
        %v2872 = vpow.pop %v2871
        %v2873 = vmul.f32 %v2870, 1.442695
        %v2874 = vpow.pop %v2873
        %v2875 = vadd.f32 %v2872, 1.0
        %v2876 = vlog2.pop %v2875
        %v2877 = vmul.f32 %v2876, 0.6931472
        %v2878 = vmul.f32 -0.5, %v2872
        %v2879 = vadd.f32 %v2878, 1.0
        %v2880 = vmul.f32 %v2879, %v2872
        %v2881 = vand.u32 2147483647, %v2872
        %vm2882 = vcmp.lt.f32.partialorder %v2881, 0.0004427343
        %v2883 = vsel %vm2882, %v2880, %v2877
        %v2884 = vadd.f32 %v2874, 1.0
        %v2885 = vlog2.pop %v2884
        %v2886 = vmul.f32 %v2885, 0.6931472
        %v2887 = vmul.f32 -0.5, %v2874
        %v2888 = vadd.f32 %v2887, 1.0
        %v2889 = vmul.f32 %v2888, %v2874
        %v2890 = vand.u32 2147483647, %v2874
        %vm2891 = vcmp.lt.f32.partialorder %v2890, 0.0004427343
        %v2892 = vsel %vm2891, %v2889, %v2886
        %v2893 = vsel %vm2867, %v2865, %v2883
        %v2894 = vsel %vm2868, %v2866, %v2892
        %v2895 = vadd.f32 %v2849, %v2893
        %v2896 = vadd.f32 %v2850, %v2894
        %v2897 = vld [vmem:[%s2279] sm:$0xff]
        %v2898 = vld [vmem:[%s2279 + $0x8] sm:$0xff]
        %v2899 = vsub.f32 %v2897, %v2669
        %v2900 = vsub.f32 %v2898, %v2669
        %v2901 = vmul.f32 %v2899, %v2672
        %v2902 = vmul.f32 %v2900, %v2672
        %s2903 = scalar_lea.vmem %s11, 80
        %v2904 = vld [vmem:[%s2903] sm:$0xff]
        %v2905 = vld [vmem:[%s2903 + $0x8] sm:$0xff]
        %v2906 = vmul.f32 %v2901, %v2904
        %v2907 = vmul.f32 %v2902, %v2905
        %s2908 = scalar_lea.vmem %s12, 80
        %v2909 = vld [vmem:[%s2908] sm:$0xff]
        %v2910 = vld [vmem:[%s2908 + $0x8] sm:$0xff]
        %v2911 = vadd.f32 %v2906, %v2909
        %v2912 = vadd.f32 %v2907, %v2910
        %vm2913 = vcmp.gt.f32.partialorder %v2911, 20.0
        %vm2914 = vcmp.gt.f32.partialorder %v2912, 20.0
        %v2915 = vmin.f32 %v2911, 20.0
        %v2916 = vmin.f32 %v2912, 20.0
        %v2917 = vmul.f32 %v2915, 1.442695
        %v2918 = vpow.pop %v2917
        %v2919 = vmul.f32 %v2916, 1.442695
        %v2920 = vpow.pop %v2919
        %v2921 = vadd.f32 %v2918, 1.0
        %v2922 = vlog2.pop %v2921
        %v2923 = vmul.f32 %v2922, 0.6931472
        %v2924 = vmul.f32 -0.5, %v2918
        %v2925 = vadd.f32 %v2924, 1.0
        %v2926 = vmul.f32 %v2925, %v2918
        %v2927 = vand.u32 2147483647, %v2918
        %vm2928 = vcmp.lt.f32.partialorder %v2927, 0.0004427343
        %v2929 = vsel %vm2928, %v2926, %v2923
        %v2930 = vadd.f32 %v2920, 1.0
        %v2931 = vlog2.pop %v2930
        %v2932 = vmul.f32 %v2931, 0.6931472
        %v2933 = vmul.f32 -0.5, %v2920
        %v2934 = vadd.f32 %v2933, 1.0
        %v2935 = vmul.f32 %v2934, %v2920
        %v2936 = vand.u32 2147483647, %v2920
        %vm2937 = vcmp.lt.f32.partialorder %v2936, 0.0004427343
        %v2938 = vsel %vm2937, %v2935, %v2932
        %v2939 = vsel %vm2913, %v2911, %v2929
        %v2940 = vsel %vm2914, %v2912, %v2938
        %v2941 = vadd.f32 %v2895, %v2939
        %v2942 = vadd.f32 %v2896, %v2940
        %v2943 = vld [vmem:[%s2451] sm:$0xff]
        %v2944 = vld [vmem:[%s2451 + $0x8] sm:$0xff]
        %v2945 = vsub.f32 %v2943, %v2669
        %v2946 = vsub.f32 %v2944, %v2669
        %v2947 = vmul.f32 %v2945, %v2672
        %v2948 = vmul.f32 %v2946, %v2672
        %s2949 = scalar_lea.vmem %s11, 96
        %v2950 = vld [vmem:[%s2949] sm:$0xff]
        %v2951 = vld [vmem:[%s2949 + $0x8] sm:$0xff]
        %v2952 = vmul.f32 %v2947, %v2950
        %v2953 = vmul.f32 %v2948, %v2951
        %s2954 = scalar_lea.vmem %s12, 96
        %v2955 = vld [vmem:[%s2954] sm:$0xff]
        %v2956 = vld [vmem:[%s2954 + $0x8] sm:$0xff]
        %v2957 = vadd.f32 %v2952, %v2955
        %v2958 = vadd.f32 %v2953, %v2956
        %vm2959 = vcmp.gt.f32.partialorder %v2957, 20.0
        %vm2960 = vcmp.gt.f32.partialorder %v2958, 20.0
        %v2961 = vmin.f32 %v2957, 20.0
        %v2962 = vmin.f32 %v2958, 20.0
        %v2963 = vmul.f32 %v2961, 1.442695
        %v2964 = vpow.pop %v2963
        %v2965 = vmul.f32 %v2962, 1.442695
        %v2966 = vpow.pop %v2965
        %v2967 = vadd.f32 %v2964, 1.0
        %v2968 = vlog2.pop %v2967
        %v2969 = vmul.f32 %v2968, 0.6931472
        %v2970 = vmul.f32 -0.5, %v2964
        %v2971 = vadd.f32 %v2970, 1.0
        %v2972 = vmul.f32 %v2971, %v2964
        %v2973 = vand.u32 2147483647, %v2964
        %vm2974 = vcmp.lt.f32.partialorder %v2973, 0.0004427343
        %v2975 = vsel %vm2974, %v2972, %v2969
        %v2976 = vadd.f32 %v2966, 1.0
        %v2977 = vlog2.pop %v2976
        %v2978 = vmul.f32 %v2977, 0.6931472
        %v2979 = vmul.f32 -0.5, %v2966
        %v2980 = vadd.f32 %v2979, 1.0
        %v2981 = vmul.f32 %v2980, %v2966
        %v2982 = vand.u32 2147483647, %v2966
        %vm2983 = vcmp.lt.f32.partialorder %v2982, 0.0004427343
        %v2984 = vsel %vm2983, %v2981, %v2978
        %v2985 = vsel %vm2959, %v2957, %v2975
        %v2986 = vsel %vm2960, %v2958, %v2984
        %v2987 = vadd.f32 %v2941, %v2985
        %v2988 = vadd.f32 %v2942, %v2986
        %v2989 = vld [vmem:[%s2623] sm:$0xff]
        %v2990 = vld [vmem:[%s2623 + $0x8] sm:$0xff]
        %v2991 = vsub.f32 %v2989, %v2669
        %v2992 = vsub.f32 %v2990, %v2669
        %v2993 = vmul.f32 %v2991, %v2672
        %v2994 = vmul.f32 %v2992, %v2672
        %s2995 = scalar_lea.vmem %s11, 112
        %v2996 = vld [vmem:[%s2995] sm:$0xff]
        %v2997 = vld [vmem:[%s2995 + $0x8] sm:$0xff]
        %v2998 = vmul.f32 %v2993, %v2996
        %v2999 = vmul.f32 %v2994, %v2997
        %s3000 = scalar_lea.vmem %s12, 112
        %v3001 = vld [vmem:[%s3000] sm:$0xff]
        %v3002 = vld [vmem:[%s3000 + $0x8] sm:$0xff]
        %v3003 = vadd.f32 %v2998, %v3001
        %v3004 = vadd.f32 %v2999, %v3002
        %vm3005 = vcmp.gt.f32.partialorder %v3003, 20.0
        %vm3006 = vcmp.gt.f32.partialorder %v3004, 20.0
        %v3007 = vmin.f32 %v3003, 20.0
        %v3008 = vmin.f32 %v3004, 20.0
        %v3009 = vmul.f32 %v3007, 1.442695
        %v3010 = vpow.pop %v3009
        %v3011 = vmul.f32 %v3008, 1.442695
        %v3012 = vpow.pop %v3011
        %v3013 = vadd.f32 %v3010, 1.0
        %v3014 = vlog2.pop %v3013
        %v3015 = vmul.f32 %v3014, 0.6931472
        %v3016 = vmul.f32 -0.5, %v3010
        %v3017 = vadd.f32 %v3016, 1.0
        %v3018 = vmul.f32 %v3017, %v3010
        %v3019 = vand.u32 2147483647, %v3010
        %vm3020 = vcmp.lt.f32.partialorder %v3019, 0.0004427343
        %v3021 = vsel %vm3020, %v3018, %v3015
        %v3022 = vadd.f32 %v3012, 1.0
        %v3023 = vlog2.pop %v3022
        %v3024 = vmul.f32 %v3023, 0.6931472
        %v3025 = vmul.f32 -0.5, %v3012
        %v3026 = vadd.f32 %v3025, 1.0
        %v3027 = vmul.f32 %v3026, %v3012
        %v3028 = vand.u32 2147483647, %v3012
        %vm3029 = vcmp.lt.f32.partialorder %v3028, 0.0004427343
        %v3030 = vsel %vm3029, %v3027, %v3024
        %v3031 = vsel %vm3005, %v3003, %v3021
        %v3032 = vsel %vm3006, %v3004, %v3030
        %v3033 = vadd.f32 %v2987, %v3031
        %v3034 = vadd.f32 %v2988, %v3032
        %vm3035 = vcmask 122880
        %v3036 = vsel %vm3035, %v499, 0.0
        %3037 = vadd.xlane.f32.xlu0 %v3036
        %v3038 = vpop.xlane.xlu0 %3037
        %v3039 = vrot.slane %v3038, 4
        %v3040 = vadd.f32 %v3038, %v3039
        %v3041 = vrot.slane %v3040, 2
        %v3042 = vadd.f32 %v3040, %v3041
        %v3043 = vrot.slane %v3042, 1
        %v3044 = vadd.f32 %v3042, %v3043
        %s3045 = vtos %v3044
        %s3046 = smax.f32 %s3045, 0.1
        %v3048 = vlaneseq
        %v3049 = vshrl.u32 %v3048, 7
        %v3050 = vsub.s32 0, %v3049
        %v3051 = vrot.slane %v499, %v3050
        %v3053 = vmul.f32 %v3033, %v3051
        %v3054 = vmul.f32 %v3034, %v3051
        %v3055 = vstv %s3046
        %v3056 = vrcp.pop %v3055
        %s3057 = vtos %v3056
        %v3058 = vstv %s3057
        %v3059 = vmul.f32 %v3053, %v3058
        %v3060 = vmul.f32 %v3054, %v3058
        %3061 = vst.msk [vmem:[%s471] sm:$0xff] %vm508, %v3059
        %3062 = vst.msk [vmem:[%s471 + $0x8] sm:$0xff] %vm508, %v3060
        %s3063 = sand.u32 %s329, 1
        %s3064 = scalar_lea.sflag [#allocation5], %s3063
        %s3065 = sand.u32 %s329, 1
        %s3066 = smul.addr %s3065, 16
        %s3067 = scalar_lea.vmem [#allocation4], %s3066
        // Predicated region
        $region73: #{_lambda_.3} parent=71 // pred_check
          %p3068 = pneg %p339
        $region74: #{_lambda_.3} parent=71 // pred_check_branch
          %3070 = sbr.rel (%p3068) target = $region76
        $region75: #{_lambda_.3} parent=71 // pred_region
          %s3072 = ssub.s32 256, 256
          %3073 = vsyncadd %s3064, %s3072
          %s3074 = smul.addr %s28, 2
          %s3075 = smul.addr %s3074, 128
          %s3076 = scalar_lea.hbm %s13, %s3075
          %s3077 = sshll.u32 %s3067, 4
          %s3078 = int_to_ptr.vmem [resolvable:$true] %s3077
          %3083 = dma.vmem_to_hbm [thread:$0]  %s3078, 256, %s3076, %s3064, 128, 128, 8
        $region76: #{_lambda_.3} parent=71 // pred_fallthru
          _
      $region72: #{_lambda_.3} parent=5 // pred_fallthru
        _
      %p3084 = scmp.le.s32.totalorder 2, %s23
      // Predicated region
      $region77: #{_lambda_.3} parent=5 // pred_check
        %p3085 = pneg %p3084
      $region78: #{_lambda_.3} parent=5 // pred_check_branch
        %3087 = sbr.rel (%p3085) target = $region80
      $region79: #{_lambda_.3} parent=5 // pred_region
        %s3088 = ssub.s32 %s23, 2
        // Predicated region
        $region81: #{_lambda_.3} parent=79 // pred_check
          %p3089 = pneg %p345
        $region82: #{_lambda_.3} parent=79 // pred_check_branch
          %3091 = sbr.rel (%p3089) target = $region84
        $region83: #{_lambda_.3} parent=79 // pred_region
          %s3092 = sand.u32 %s330, 1
          %s3093 = scalar_lea.sflag [#allocation5], %s3092
          %s3094 = sand.u32 %s330, 1
          %s3095 = smul.addr %s3094, 16
          %s3096 = scalar_lea.vmem [#allocation4], %s3095
          %3097 = dma.done %s3093, 256
        $region84: #{_lambda_.3} parent=79 // pred_fallthru
          _
      $region80: #{_lambda_.3} parent=5 // pred_fallthru
        _
    $region6: #{_lambda_.3} parent=1 // loop_footer
      %s27 = sadd.s32 1, %s23
    $region7: #{_lambda_.3} parent=1 // loop_footer_branch
      %22 = sbr.rel target = $region3
    $region8: #{_lambda_.3} parent=1 // loop_exit
      _
    %3098 = vsyncpa [#allocation5], 1
    %s3099 = scalar_lea.sflag [#allocation5], 1
    %3100 = vsyncpa %s3099, 1

</llo_original>
